<compile_context>
chip_gen: v7x
topology: tpu7x:2x2x1
jax: 0.10.0
libtpu: 0.0.40
codegen_flags: <defaults>
</compile_context>

<pallas_src>
import functools

import jax
import jax.numpy as jnp
from jax import lax
from jax.experimental import pallas as pl
from jax.experimental.pallas import tpu as pltpu

LATENT = 128
IN_DIR = 42
D_IN = LATENT + IN_DIR   # 170
W_HID = 256


def _mlp_kernel(x_ref,
                w1_ref, b1_ref,
                w2_ref, b2_ref,
                w3_ref, b3_ref,
                w4_ref, b4_ref,
                w5t_ref, b5_ref,
                o_ref):
    # Fused MLP on a tile of rows: 4 x (bf16 MXU matmul -> f32 bias+ReLU), then the final
    # (256 -> 1) layer computed against the transposed activations so the result row
    # (1, tile_m) — and therefore the store — is lane-dense.
    x = x_ref[...].astype(jnp.bfloat16)                      # (tile_m, 170)

    h = jnp.dot(x, w1_ref[...], preferred_element_type=jnp.float32) + b1_ref[...]
    h = jnp.maximum(h, 0.0)

    h = jnp.dot(h.astype(jnp.bfloat16), w2_ref[...],
                preferred_element_type=jnp.float32) + b2_ref[...]
    h = jnp.maximum(h, 0.0)

    h = jnp.dot(h.astype(jnp.bfloat16), w3_ref[...],
                preferred_element_type=jnp.float32) + b3_ref[...]
    h = jnp.maximum(h, 0.0)

    h = jnp.dot(h.astype(jnp.bfloat16), w4_ref[...],
                preferred_element_type=jnp.float32) + b4_ref[...]
    h = jnp.maximum(h, 0.0)                                  # (tile_m, 256) f32

    # Final layer "w5t @ h.T" without an explicit transpose: contract last dims of
    # (1, 256) and (tile_m, 256)  ->  (1, tile_m)  (same structure as q @ k.T).
    z = lax.dot_general(w5t_ref[...], h, (((1,), (1,)), ((), ())),
                        preferred_element_type=jnp.float32) + b5_ref[...]

    # sigmoid = 1 / (1 + exp(-z)); exp + approx reciprocal both go to the EUP slot.
    sig = pl.reciprocal(1.0 + jnp.exp(-z), approx=True)
    o_ref[...] = sig.astype(o_ref.dtype)


@functools.partial(jax.jit, static_argnames=("tile_m",))
def implicit_mask_forward(x, params, tile_m=1024):
    """x: [N, 170] float32.  Returns mask: [N, 1] float32."""
    (w1, b1), (w2, b2), (w3, b3), (w4, b4), (w5, b5) = params
    N, D = x.shape
    assert D == D_IN
    assert tile_m % 128 == 0, "tile_m must be a multiple of 128 (lane-dense output tile)"

    # Pad the row count up to a multiple of tile_m (padded rows are sliced off at the end).
    n_pad = (-N) % tile_m
    x_p = jnp.pad(x, ((0, n_pad), (0, 0))) if n_pad else x
    Np = N + n_pad
    num_tiles = Np // tile_m

    # bf16 weights for the MXU; biases stay f32 (added on the f32 accumulator).
    w1b, w2b, w3b, w4b = (w.astype(jnp.bfloat16) for w in (w1, w2, w3, w4))
    b1r, b2r, b3r, b4r = (b.reshape(1, -1).astype(jnp.float32) for b in (b1, b2, b3, b4))
    w5t = w5.reshape(1, W_HID).astype(jnp.float32)   # (256,1) -> (1,256), final layer in f32
    b5r = b5.reshape(1, 1).astype(jnp.float32)

    full = lambda i: (0, 0)  # weights/biases: same (full) block every grid step (resident)

    flops = 2 * Np * (D_IN * W_HID + 3 * W_HID * W_HID + W_HID)
    weight_bytes = (D_IN * W_HID + 3 * W_HID * W_HID) * 2 + W_HID * 4 + (4 * W_HID + 1) * 4
    cost = pl.CostEstimate(
        flops=flops,
        transcendentals=2 * Np,                      # exp + reciprocal per output element
        bytes_accessed=Np * D_IN * 4 + Np * 4 + weight_bytes,
    )

    out_row = pl.pallas_call(
        _mlp_kernel,
        out_shape=jax.ShapeDtypeStruct((1, Np), jnp.float32),   # lane-dense single-row output
        grid_spec=pltpu.PrefetchScalarGridSpec(
            num_scalar_prefetch=0,
            grid=(num_tiles,),
            in_specs=[
                pl.BlockSpec((tile_m, D_IN), lambda i: (i, 0)),   # x tile
                pl.BlockSpec((D_IN, W_HID), full), pl.BlockSpec((1, W_HID), full),
                pl.BlockSpec((W_HID, W_HID), full), pl.BlockSpec((1, W_HID), full),
                pl.BlockSpec((W_HID, W_HID), full), pl.BlockSpec((1, W_HID), full),
                pl.BlockSpec((W_HID, W_HID), full), pl.BlockSpec((1, W_HID), full),
                pl.BlockSpec((1, W_HID), full), pl.BlockSpec((1, 1), full),
            ],
            out_specs=pl.BlockSpec((1, tile_m), lambda i: (0, i)),
        ),
        compiler_params=pltpu.CompilerParams(
            dimension_semantics=("parallel",),
            vmem_limit_bytes=(32 * 1024 * 1024 if tile_m >= 2048 else None),
        ),
        cost_estimate=cost,
    )(x_p, w1b, b1r, w2b, b2r, w3b, b3r, w4b, b4r, w5t, b5r)

    # Free layout plumbing: (1, Np) row -> (Np, 1) column, drop padded rows.
    return out_row.reshape(Np, 1)[:N]


def init_params(key):
    """Deterministic init mimicking PyTorch nn.Linear default (U[-1/sqrt(fan_in), +1/sqrt(fan_in)]).
    Weights stored as [in, out] so the kernel does x @ W (PyTorch stores [out, in], does x @ W.T)."""
    dims = [(D_IN, W_HID), (W_HID, W_HID), (W_HID, W_HID), (W_HID, W_HID), (W_HID, 1)]
    params = []
    for (fan_in, fan_out) in dims:
        key, kw, kb = jax.random.split(key, 3)
        bound = 1.0 / jnp.sqrt(float(fan_in))
        w = jax.random.uniform(kw, (fan_in, fan_out), jnp.float32, -bound, bound)
        b = jax.random.uniform(kb, (fan_out,), jnp.float32, -bound, bound)
        params.append((w, b))
    return params


def reference_forward(x, params):
    """Pure-JAX f32 reference of the PyTorch module."""
    h = x
    for i, (w, b) in enumerate(params):
        h = h @ w + b
        if i < len(params) - 1:
            h = jnp.maximum(h, 0.0)
    return 1.0 / (1.0 + jnp.exp(-h))


if __name__ == "__main__":
    key = jax.random.PRNGKey(0)
    kx, kp = jax.random.split(key)

    N = 1500  # not a multiple of tile_m on purpose (exercises the row-padding path; grid = 2)
    x = jax.random.normal(kx, (N, D_IN), jnp.float32)
    params = init_params(kp)

    out = implicit_mask_forward(x, params)
    out = jax.block_until_ready(out)

    ref = reference_forward(x, params)
    assert out.shape == (N, 1)
    # bf16 hidden matmuls + approx reciprocal => loosened tolerance vs. the f32 reference.
    max_err = float(jnp.max(jnp.abs(out - ref)))
    assert max_err < 2e-2, f"mismatch vs reference MLP: max abs err {max_err}"

    print("KERNEL_OK")
</pallas_src>

<mosaic_0001>
module attributes {stable_mosaic.version = 11 : i64} {
  func.func @_mlp_kernel(%arg0: i32, %arg1: memref<1024x170xf32, #tpu.memory_space<vmem>>, %arg2: memref<170x256xbf16, #tpu.memory_space<vmem>>, %arg3: memref<1x256xf32, #tpu.memory_space<vmem>>, %arg4: memref<256x256xbf16, #tpu.memory_space<vmem>>, %arg5: memref<1x256xf32, #tpu.memory_space<vmem>>, %arg6: memref<256x256xbf16, #tpu.memory_space<vmem>>, %arg7: memref<1x256xf32, #tpu.memory_space<vmem>>, %arg8: memref<256x256xbf16, #tpu.memory_space<vmem>>, %arg9: memref<1x256xf32, #tpu.memory_space<vmem>>, %arg10: memref<1x256xf32, #tpu.memory_space<vmem>>, %arg11: memref<1x1xf32, #tpu.memory_space<vmem>>, %arg12: memref<1x1024xf32, #tpu.memory_space<vmem>>) attributes {dimension_semantics = [#tpu.dimension_semantics<parallel>], iteration_bounds = array<i64: 2>, scalar_prefetch = 0 : i64, scratch_operands = 0 : i64, tpu.core_type = #tpu.core_type<tc>, window_params = [{transform_indices = @transform_0, window_bounds = array<i64: 1024, 170>}, {pipeline_mode = #tpu.pipeline_mode<synchronous>, transform_indices = @transform_1, window_bounds = array<i64: 170, 256>}, {pipeline_mode = #tpu.pipeline_mode<synchronous>, transform_indices = @transform_2, window_bounds = array<i64: 1, 256>}, {pipeline_mode = #tpu.pipeline_mode<synchronous>, transform_indices = @transform_3, window_bounds = array<i64: 256, 256>}, {pipeline_mode = #tpu.pipeline_mode<synchronous>, transform_indices = @transform_4, window_bounds = array<i64: 1, 256>}, {pipeline_mode = #tpu.pipeline_mode<synchronous>, transform_indices = @transform_5, window_bounds = array<i64: 256, 256>}, {pipeline_mode = #tpu.pipeline_mode<synchronous>, transform_indices = @transform_6, window_bounds = array<i64: 1, 256>}, {pipeline_mode = #tpu.pipeline_mode<synchronous>, transform_indices = @transform_7, window_bounds = array<i64: 256, 256>}, {pipeline_mode = #tpu.pipeline_mode<synchronous>, transform_indices = @transform_8, window_bounds = array<i64: 1, 256>}, {pipeline_mode = #tpu.pipeline_mode<synchronous>, transform_indices = @transform_9, window_bounds = array<i64: 1, 256>}, {pipeline_mode = #tpu.pipeline_mode<synchronous>, transform_indices = @transform_10, window_bounds = array<i64: 1, 1>}, {transform_indices = @transform_11, window_bounds = array<i64: 1, 1024>}]} {
    %c0 = arith.constant 0 : index
    %c0_0 = arith.constant 0 : index
    %0 = vector.load %arg1[%c0, %c0_0] : memref<1024x170xf32, #tpu.memory_space<vmem>>, vector<1024x170xf32>
    %1 = arith.truncf %0 : vector<1024x170xf32> to vector<1024x170xbf16>
    %c0_1 = arith.constant 0 : index
    %c0_2 = arith.constant 0 : index
    %2 = vector.load %arg2[%c0_1, %c0_2] : memref<170x256xbf16, #tpu.memory_space<vmem>>, vector<170x256xbf16>
    %cst = arith.constant dense<0.000000e+00> : vector<1024x256xf32>
    %3 = tpu.matmul %1, %2, %cst {dimension_numbers = #tpu.dot_dimension_numbers<[1], [0], [0], [1], [0, 0, 1, 1], [], []>} : vector<1024x170xbf16>, vector<170x256xbf16>, vector<1024x256xf32> -> vector<1024x256xf32>
    %c0_3 = arith.constant 0 : index
    %c0_4 = arith.constant 0 : index
    %4 = vector.load %arg3[%c0_3, %c0_4] : memref<1x256xf32, #tpu.memory_space<vmem>>, vector<1x256xf32>
    %5 = vector.broadcast %4 : vector<1x256xf32> to vector<1024x256xf32>
    %6 = arith.addf %3, %5 : vector<1024x256xf32>
    %cst_5 = arith.constant 0.000000e+00 : f32
    %7 = vector.broadcast %cst_5 : f32 to vector<1024x256xf32>
    %8 = arith.maximumf %6, %7 : vector<1024x256xf32>
    %9 = arith.truncf %8 : vector<1024x256xf32> to vector<1024x256xbf16>
    %c0_6 = arith.constant 0 : index
    %c0_7 = arith.constant 0 : index
    %10 = vector.load %arg4[%c0_6, %c0_7] : memref<256x256xbf16, #tpu.memory_space<vmem>>, vector<256x256xbf16>
    %cst_8 = arith.constant dense<0.000000e+00> : vector<1024x256xf32>
    %11 = tpu.matmul %9, %10, %cst_8 {dimension_numbers = #tpu.dot_dimension_numbers<[1], [0], [0], [1], [0, 0, 1, 1], [], []>} : vector<1024x256xbf16>, vector<256x256xbf16>, vector<1024x256xf32> -> vector<1024x256xf32>
    %c0_9 = arith.constant 0 : index
    %c0_10 = arith.constant 0 : index
    %12 = vector.load %arg5[%c0_9, %c0_10] : memref<1x256xf32, #tpu.memory_space<vmem>>, vector<1x256xf32>
    %13 = vector.broadcast %12 : vector<1x256xf32> to vector<1024x256xf32>
    %14 = arith.addf %11, %13 : vector<1024x256xf32>
    %cst_11 = arith.constant 0.000000e+00 : f32
    %15 = vector.broadcast %cst_11 : f32 to vector<1024x256xf32>
    %16 = arith.maximumf %14, %15 : vector<1024x256xf32>
    %17 = arith.truncf %16 : vector<1024x256xf32> to vector<1024x256xbf16>
    %c0_12 = arith.constant 0 : index
    %c0_13 = arith.constant 0 : index
    %18 = vector.load %arg6[%c0_12, %c0_13] : memref<256x256xbf16, #tpu.memory_space<vmem>>, vector<256x256xbf16>
    %cst_14 = arith.constant dense<0.000000e+00> : vector<1024x256xf32>
    %19 = tpu.matmul %17, %18, %cst_14 {dimension_numbers = #tpu.dot_dimension_numbers<[1], [0], [0], [1], [0, 0, 1, 1], [], []>} : vector<1024x256xbf16>, vector<256x256xbf16>, vector<1024x256xf32> -> vector<1024x256xf32>
    %c0_15 = arith.constant 0 : index
    %c0_16 = arith.constant 0 : index
    %20 = vector.load %arg7[%c0_15, %c0_16] : memref<1x256xf32, #tpu.memory_space<vmem>>, vector<1x256xf32>
    %21 = vector.broadcast %20 : vector<1x256xf32> to vector<1024x256xf32>
    %22 = arith.addf %19, %21 : vector<1024x256xf32>
    %cst_17 = arith.constant 0.000000e+00 : f32
    %23 = vector.broadcast %cst_17 : f32 to vector<1024x256xf32>
    %24 = arith.maximumf %22, %23 : vector<1024x256xf32>
    %25 = arith.truncf %24 : vector<1024x256xf32> to vector<1024x256xbf16>
    %c0_18 = arith.constant 0 : index
    %c0_19 = arith.constant 0 : index
    %26 = vector.load %arg8[%c0_18, %c0_19] : memref<256x256xbf16, #tpu.memory_space<vmem>>, vector<256x256xbf16>
    %cst_20 = arith.constant dense<0.000000e+00> : vector<1024x256xf32>
    %27 = tpu.matmul %25, %26, %cst_20 {dimension_numbers = #tpu.dot_dimension_numbers<[1], [0], [0], [1], [0, 0, 1, 1], [], []>} : vector<1024x256xbf16>, vector<256x256xbf16>, vector<1024x256xf32> -> vector<1024x256xf32>
    %c0_21 = arith.constant 0 : index
    %c0_22 = arith.constant 0 : index
    %28 = vector.load %arg9[%c0_21, %c0_22] : memref<1x256xf32, #tpu.memory_space<vmem>>, vector<1x256xf32>
    %29 = vector.broadcast %28 : vector<1x256xf32> to vector<1024x256xf32>
    %30 = arith.addf %27, %29 : vector<1024x256xf32>
    %cst_23 = arith.constant 0.000000e+00 : f32
    %31 = vector.broadcast %cst_23 : f32 to vector<1024x256xf32>
    %32 = arith.maximumf %30, %31 : vector<1024x256xf32>
    %c0_24 = arith.constant 0 : index
    %c0_25 = arith.constant 0 : index
    %33 = vector.load %arg10[%c0_24, %c0_25] : memref<1x256xf32, #tpu.memory_space<vmem>>, vector<1x256xf32>
    %cst_26 = arith.constant dense<0.000000e+00> : vector<1x1024xf32>
    %34 = tpu.matmul %33, %32, %cst_26 {dimension_numbers = #tpu.dot_dimension_numbers<[1], [1], [0], [0], [0, 0, 1, 0], [], []>} : vector<1x256xf32>, vector<1024x256xf32>, vector<1x1024xf32> -> vector<1x1024xf32>
    %c0_27 = arith.constant 0 : index
    %c0_28 = arith.constant 0 : index
    %35 = vector.load %arg11[%c0_27, %c0_28] : memref<1x1xf32, #tpu.memory_space<vmem>>, vector<1x1xf32>
    %36 = vector.broadcast %35 : vector<1x1xf32> to vector<1x1024xf32>
    %37 = arith.addf %34, %36 : vector<1x1024xf32>
    %cst_29 = arith.constant 0.000000e+00 : f32
    %38 = vector.broadcast %cst_29 : f32 to vector<1x1024xf32>
    %39 = arith.subf %38, %37 : vector<1x1024xf32>
    %40 = math.exp %39 : vector<1x1024xf32>
    %cst_30 = arith.constant 1.000000e+00 : f32
    %41 = vector.broadcast %cst_30 : f32 to vector<1x1024xf32>
    %42 = arith.addf %41, %40 : vector<1x1024xf32>
    %43 = tpu.reciprocal %42 {approx = true} : vector<1x1024xf32> -> vector<1x1024xf32>
    %c0_31 = arith.constant 0 : index
    %c0_32 = arith.constant 0 : index
    %44 = vector.load %arg12[%c0_31, %c0_32] : memref<1x1024xf32, #tpu.memory_space<vmem>>, vector<1x1024xf32>
    tpu.vector_store %arg12[%c0_31, %c0_32], %43 {strides = array<i32>} : memref<1x1024xf32, #tpu.memory_space<vmem>>, vector<1x1024xf32>,
    return
  }
  func.func @transform_0(%arg0: i32) -> (i32, i32) {
    %c0_i32 = arith.constant 0 : i32
    %c0_i32_0 = arith.constant 0 : i32
    return %arg0, %c0_i32 : i32, i32
  }
  func.func @transform_1(%arg0: i32) -> (i32, i32) {
    %c0_i32 = arith.constant 0 : i32
    %c0_i32_0 = arith.constant 0 : i32
    %c0_i32_1 = arith.constant 0 : i32
    return %c0_i32, %c0_i32_0 : i32, i32
  }
  func.func @transform_2(%arg0: i32) -> (i32, i32) {
    %c0_i32 = arith.constant 0 : i32
    %c0_i32_0 = arith.constant 0 : i32
    %c0_i32_1 = arith.constant 0 : i32
    return %c0_i32, %c0_i32_0 : i32, i32
  }
  func.func @transform_3(%arg0: i32) -> (i32, i32) {
    %c0_i32 = arith.constant 0 : i32
    %c0_i32_0 = arith.constant 0 : i32
    %c0_i32_1 = arith.constant 0 : i32
    return %c0_i32, %c0_i32_0 : i32, i32
  }
  func.func @transform_4(%arg0: i32) -> (i32, i32) {
    %c0_i32 = arith.constant 0 : i32
    %c0_i32_0 = arith.constant 0 : i32
    %c0_i32_1 = arith.constant 0 : i32
    return %c0_i32, %c0_i32_0 : i32, i32
  }
  func.func @transform_5(%arg0: i32) -> (i32, i32) {
    %c0_i32 = arith.constant 0 : i32
    %c0_i32_0 = arith.constant 0 : i32
    %c0_i32_1 = arith.constant 0 : i32
    return %c0_i32, %c0_i32_0 : i32, i32
  }
  func.func @transform_6(%arg0: i32) -> (i32, i32) {
    %c0_i32 = arith.constant 0 : i32
    %c0_i32_0 = arith.constant 0 : i32
    %c0_i32_1 = arith.constant 0 : i32
    return %c0_i32, %c0_i32_0 : i32, i32
  }
  func.func @transform_7(%arg0: i32) -> (i32, i32) {
    %c0_i32 = arith.constant 0 : i32
    %c0_i32_0 = arith.constant 0 : i32
    %c0_i32_1 = arith.constant 0 : i32
    return %c0_i32, %c0_i32_0 : i32, i32
  }
  func.func @transform_8(%arg0: i32) -> (i32, i32) {
    %c0_i32 = arith.constant 0 : i32
    %c0_i32_0 = arith.constant 0 : i32
    %c0_i32_1 = arith.constant 0 : i32
    return %c0_i32, %c0_i32_0 : i32, i32
  }
  func.func @transform_9(%arg0: i32) -> (i32, i32) {
    %c0_i32 = arith.constant 0 : i32
    %c0_i32_0 = arith.constant 0 : i32
    %c0_i32_1 = arith.constant 0 : i32
    return %c0_i32, %c0_i32_0 : i32, i32
  }
  func.func @transform_10(%arg0: i32) -> (i32, i32) {
    %c0_i32 = arith.constant 0 : i32
    %c0_i32_0 = arith.constant 0 : i32
    %c0_i32_1 = arith.constant 0 : i32
    return %c0_i32, %c0_i32_0 : i32, i32
  }
  func.func @transform_11(%arg0: i32) -> (i32, i32) {
    %c0_i32 = arith.constant 0 : i32
    %c0_i32_0 = arith.constant 0 : i32
    return %c0_i32, %arg0 : i32, i32
  }
}

</mosaic_0001>

<llo_original>
// kernel: implicit_mask_forward.1
$region0: #{implicit_mask_forward.1}
  #allocation0 [shape = 'u32[]', space=smem, size = 0x4, offset = 0x4, fixed_abs, tag = 'smem constant byte address 0x4 - core index']
  #allocation1 [shape = 'u32[144,128]{1,0:T(1,128)}', space=vmem, size = 0x12000, scoped, tag = 'internal scratch']
  #allocation2 [shape = 'f32[1,1]{1,0:T(1,128)S(1)}', space=vmem, size = 0x200, scoped, tag = 'scoped memory for implicit_mask_forward.1']
  %s0 = inlined_call_operand.vmem [shape: f32[2048,170], index: 0, kind: input, shape index: {}]
  %s1 = inlined_call_operand.vmem [shape: bf16[170,256], index: 1, kind: input, shape index: {}]
  %s2 = inlined_call_operand.vmem [shape: f32[1,256], index: 2, kind: input, shape index: {}]
  %s3 = inlined_call_operand.vmem [shape: bf16[256,256], index: 3, kind: input, shape index: {}]
  %s4 = inlined_call_operand.vmem [shape: f32[1,256], index: 4, kind: input, shape index: {}]
  %s5 = inlined_call_operand.vmem [shape: bf16[256,256], index: 5, kind: input, shape index: {}]
  %s6 = inlined_call_operand.vmem [shape: f32[1,256], index: 6, kind: input, shape index: {}]
  %s7 = inlined_call_operand.vmem [shape: bf16[256,256], index: 7, kind: input, shape index: {}]
  %s8 = inlined_call_operand.vmem [shape: f32[1,256], index: 8, kind: input, shape index: {}]
  %s9 = inlined_call_operand.vmem [shape: f32[1,256], index: 9, kind: input, shape index: {}]
  %s10 = inlined_call_operand.<no memory space> [shape: f32[1,1], index: 10, kind: input, shape index: {}]
  %s11 = inlined_call_operand.vmem [shape: f32[1,2048], index: 11, kind: output, shape index: {}]
  %s12 = sld [smem:[#allocation0]]
  $region77: #{implicit_mask_forward.1} parent=0
    _
  %s14 = ssub.s32 1, %s12
  %s15 = scalar_select 0, %s14, %s12
  %v16 = vstv %s10
  %17 = vst [vmem:[#allocation2] sm:$0x1] %v16
  loop: start=0, step=1, limit=4
  $region2: #{implicit_mask_forward.1} parent=0 // loop_pre_header
    _
  $region3: #{implicit_mask_forward.1} parent=0 // loop_header
    %s19 = sphi 0, %s23
    %p20 = scmp.ge.s32.totalorder %s19, 4
    %s29 = sphi 0, %s31
    %s32 = sphi 0, %s29
    %s33 = sphi 0, %s32
    %s49 = sphi 0, %s33
    %s53 = sphi 0, %s53
    %s55 = sphi 0, %s53
    %s56 = sphi 0, %s55
    %s70 = sphi 0, %s56
    %s74 = sphi 0, %s74
    %s76 = sphi 0, %s74
    %s77 = sphi 0, %s76
    %s91 = sphi 0, %s77
    %s95 = sphi 0, %s95
    %s97 = sphi 0, %s95
    %s98 = sphi 0, %s97
    %s112 = sphi 0, %s98
    %s116 = sphi 0, %s116
    %s118 = sphi 0, %s116
    %s119 = sphi 0, %s118
    %s133 = sphi 0, %s119
    %s137 = sphi 0, %s137
    %s139 = sphi 0, %s137
    %s140 = sphi 0, %s139
    %s154 = sphi 0, %s140
    %s158 = sphi 0, %s158
    %s160 = sphi 0, %s158
    %s161 = sphi 0, %s160
    %s175 = sphi 0, %s161
    %s179 = sphi 0, %s179
    %s181 = sphi 0, %s179
    %s182 = sphi 0, %s181
    %s196 = sphi 0, %s182
    %s200 = sphi 0, %s200
    %s202 = sphi 0, %s200
    %s203 = sphi 0, %s202
    %s217 = sphi 0, %s203
    %s221 = sphi 0, %s221
    %s223 = sphi 0, %s221
    %s224 = sphi 0, %s223
    %s238 = sphi 0, %s224
    %s242 = sphi 0, %s242
    %s244 = sphi 0, %s242
    %s245 = sphi 0, %s244
    %s259 = sphi 0, %s245
    %s265 = sphi 0, %s267
    %s268 = sphi 0, %s265
    %s269 = sphi 0, %s268
    %s285 = sphi 0, %s269
  $region4: #{implicit_mask_forward.1} parent=0 // loop_header_branch
    %22 = sbr.rel (%p20) target = $region8
  $region5: #{implicit_mask_forward.1} parent=0 // loop_body
    %s24 = ssub.s32 %s19, 1
    %s25 = ssub.s32 %s19, 2
    %s26 = sadd.s32 %s19, 1
    %s27 = ssub.s32 %s19, %s26
    %p28 = scmp.eq.s32.totalorder %s27, 0
    %s30 = sadd.s32 %s29, 1
    %s31 = scalar_select %p28, %s29, %s30
    %p34 = pneg %p28
    %p35 = scmp.eq.s32.totalorder %s19, 1
    %p36 = por %p34, %p35
    %p37 = scmp.ne.s32.totalorder %s29, %s32
    %p38 = scmp.eq.s32.totalorder %s19, 0
    %p39 = por %p37, %p38
    %p40 = scmp.ne.s32.totalorder %s29, %s32
    %p41 = scmp.eq.s32.totalorder %s24, 1
    %p42 = por %p40, %p41
    %p43 = scmp.ne.s32.totalorder %s32, %s33
    %p44 = scmp.eq.s32.totalorder %s24, 0
    %p45 = por %p43, %p44
    %p46 = scmp.ne.s32.totalorder %s32, %s33
    %p47 = scmp.eq.s32.totalorder %s25, 1
    %p48 = por %p46, %p47
    %p50 = scmp.ne.s32.totalorder %s33, %s49
    %p51 = scmp.eq.s32.totalorder %s25, 0
    %p52 = por %p50, %p51
    %s54 = sadd.s32 %s53, 1
    %p57 = scmp.eq.s32.totalorder %s19, 1
    %p58 = scmp.ne.s32.totalorder %s53, %s55
    %p59 = scmp.eq.s32.totalorder %s19, 0
    %p60 = por %p58, %p59
    %p61 = scmp.ne.s32.totalorder %s53, %s55
    %p62 = scmp.eq.s32.totalorder %s24, 1
    %p63 = por %p61, %p62
    %p64 = scmp.ne.s32.totalorder %s55, %s56
    %p65 = scmp.eq.s32.totalorder %s24, 0
    %p66 = por %p64, %p65
    %p67 = scmp.ne.s32.totalorder %s55, %s56
    %p68 = scmp.eq.s32.totalorder %s25, 1
    %p69 = por %p67, %p68
    %p71 = scmp.ne.s32.totalorder %s56, %s70
    %p72 = scmp.eq.s32.totalorder %s25, 0
    %p73 = por %p71, %p72
    %s75 = sadd.s32 %s74, 1
    %p78 = scmp.eq.s32.totalorder %s19, 1
    %p79 = scmp.ne.s32.totalorder %s74, %s76
    %p80 = scmp.eq.s32.totalorder %s19, 0
    %p81 = por %p79, %p80
    %p82 = scmp.ne.s32.totalorder %s74, %s76
    %p83 = scmp.eq.s32.totalorder %s24, 1
    %p84 = por %p82, %p83
    %p85 = scmp.ne.s32.totalorder %s76, %s77
    %p86 = scmp.eq.s32.totalorder %s24, 0
    %p87 = por %p85, %p86
    %p88 = scmp.ne.s32.totalorder %s76, %s77
    %p89 = scmp.eq.s32.totalorder %s25, 1
    %p90 = por %p88, %p89
    %p92 = scmp.ne.s32.totalorder %s77, %s91
    %p93 = scmp.eq.s32.totalorder %s25, 0
    %p94 = por %p92, %p93
    %s96 = sadd.s32 %s95, 1
    %p99 = scmp.eq.s32.totalorder %s19, 1
    %p100 = scmp.ne.s32.totalorder %s95, %s97
    %p101 = scmp.eq.s32.totalorder %s19, 0
    %p102 = por %p100, %p101
    %p103 = scmp.ne.s32.totalorder %s95, %s97
    %p104 = scmp.eq.s32.totalorder %s24, 1
    %p105 = por %p103, %p104
    %p106 = scmp.ne.s32.totalorder %s97, %s98
    %p107 = scmp.eq.s32.totalorder %s24, 0
    %p108 = por %p106, %p107
    %p109 = scmp.ne.s32.totalorder %s97, %s98
    %p110 = scmp.eq.s32.totalorder %s25, 1
    %p111 = por %p109, %p110
    %p113 = scmp.ne.s32.totalorder %s98, %s112
    %p114 = scmp.eq.s32.totalorder %s25, 0
    %p115 = por %p113, %p114
    %s117 = sadd.s32 %s116, 1
    %p120 = scmp.eq.s32.totalorder %s19, 1
    %p121 = scmp.ne.s32.totalorder %s116, %s118
    %p122 = scmp.eq.s32.totalorder %s19, 0
    %p123 = por %p121, %p122
    %p124 = scmp.ne.s32.totalorder %s116, %s118
    %p125 = scmp.eq.s32.totalorder %s24, 1
    %p126 = por %p124, %p125
    %p127 = scmp.ne.s32.totalorder %s118, %s119
    %p128 = scmp.eq.s32.totalorder %s24, 0
    %p129 = por %p127, %p128
    %p130 = scmp.ne.s32.totalorder %s118, %s119
    %p131 = scmp.eq.s32.totalorder %s25, 1
    %p132 = por %p130, %p131
    %p134 = scmp.ne.s32.totalorder %s119, %s133
    %p135 = scmp.eq.s32.totalorder %s25, 0
    %p136 = por %p134, %p135
    %s138 = sadd.s32 %s137, 1
    %p141 = scmp.eq.s32.totalorder %s19, 1
    %p142 = scmp.ne.s32.totalorder %s137, %s139
    %p143 = scmp.eq.s32.totalorder %s19, 0
    %p144 = por %p142, %p143
    %p145 = scmp.ne.s32.totalorder %s137, %s139
    %p146 = scmp.eq.s32.totalorder %s24, 1
    %p147 = por %p145, %p146
    %p148 = scmp.ne.s32.totalorder %s139, %s140
    %p149 = scmp.eq.s32.totalorder %s24, 0
    %p150 = por %p148, %p149
    %p151 = scmp.ne.s32.totalorder %s139, %s140
    %p152 = scmp.eq.s32.totalorder %s25, 1
    %p153 = por %p151, %p152
    %p155 = scmp.ne.s32.totalorder %s140, %s154
    %p156 = scmp.eq.s32.totalorder %s25, 0
    %p157 = por %p155, %p156
    %s159 = sadd.s32 %s158, 1
    %p162 = scmp.eq.s32.totalorder %s19, 1
    %p163 = scmp.ne.s32.totalorder %s158, %s160
    %p164 = scmp.eq.s32.totalorder %s19, 0
    %p165 = por %p163, %p164
    %p166 = scmp.ne.s32.totalorder %s158, %s160
    %p167 = scmp.eq.s32.totalorder %s24, 1
    %p168 = por %p166, %p167
    %p169 = scmp.ne.s32.totalorder %s160, %s161
    %p170 = scmp.eq.s32.totalorder %s24, 0
    %p171 = por %p169, %p170
    %p172 = scmp.ne.s32.totalorder %s160, %s161
    %p173 = scmp.eq.s32.totalorder %s25, 1
    %p174 = por %p172, %p173
    %p176 = scmp.ne.s32.totalorder %s161, %s175
    %p177 = scmp.eq.s32.totalorder %s25, 0
    %p178 = por %p176, %p177
    %s180 = sadd.s32 %s179, 1
    %p183 = scmp.eq.s32.totalorder %s19, 1
    %p184 = scmp.ne.s32.totalorder %s179, %s181
    %p185 = scmp.eq.s32.totalorder %s19, 0
    %p186 = por %p184, %p185
    %p187 = scmp.ne.s32.totalorder %s179, %s181
    %p188 = scmp.eq.s32.totalorder %s24, 1
    %p189 = por %p187, %p188
    %p190 = scmp.ne.s32.totalorder %s181, %s182
    %p191 = scmp.eq.s32.totalorder %s24, 0
    %p192 = por %p190, %p191
    %p193 = scmp.ne.s32.totalorder %s181, %s182
    %p194 = scmp.eq.s32.totalorder %s25, 1
    %p195 = por %p193, %p194
    %p197 = scmp.ne.s32.totalorder %s182, %s196
    %p198 = scmp.eq.s32.totalorder %s25, 0
    %p199 = por %p197, %p198
    %s201 = sadd.s32 %s200, 1
    %p204 = scmp.eq.s32.totalorder %s19, 1
    %p205 = scmp.ne.s32.totalorder %s200, %s202
    %p206 = scmp.eq.s32.totalorder %s19, 0
    %p207 = por %p205, %p206
    %p208 = scmp.ne.s32.totalorder %s200, %s202
    %p209 = scmp.eq.s32.totalorder %s24, 1
    %p210 = por %p208, %p209
    %p211 = scmp.ne.s32.totalorder %s202, %s203
    %p212 = scmp.eq.s32.totalorder %s24, 0
    %p213 = por %p211, %p212
    %p214 = scmp.ne.s32.totalorder %s202, %s203
    %p215 = scmp.eq.s32.totalorder %s25, 1
    %p216 = por %p214, %p215
    %p218 = scmp.ne.s32.totalorder %s203, %s217
    %p219 = scmp.eq.s32.totalorder %s25, 0
    %p220 = por %p218, %p219
    %s222 = sadd.s32 %s221, 1
    %p225 = scmp.eq.s32.totalorder %s19, 1
    %p226 = scmp.ne.s32.totalorder %s221, %s223
    %p227 = scmp.eq.s32.totalorder %s19, 0
    %p228 = por %p226, %p227
    %p229 = scmp.ne.s32.totalorder %s221, %s223
    %p230 = scmp.eq.s32.totalorder %s24, 1
    %p231 = por %p229, %p230
    %p232 = scmp.ne.s32.totalorder %s223, %s224
    %p233 = scmp.eq.s32.totalorder %s24, 0
    %p234 = por %p232, %p233
    %p235 = scmp.ne.s32.totalorder %s223, %s224
    %p236 = scmp.eq.s32.totalorder %s25, 1
    %p237 = por %p235, %p236
    %p239 = scmp.ne.s32.totalorder %s224, %s238
    %p240 = scmp.eq.s32.totalorder %s25, 0
    %p241 = por %p239, %p240
    %s243 = sadd.s32 %s242, 1
    %p246 = scmp.eq.s32.totalorder %s19, 1
    %p247 = scmp.ne.s32.totalorder %s242, %s244
    %p248 = scmp.eq.s32.totalorder %s19, 0
    %p249 = por %p247, %p248
    %p250 = scmp.ne.s32.totalorder %s242, %s244
    %p251 = scmp.eq.s32.totalorder %s24, 1
    %p252 = por %p250, %p251
    %p253 = scmp.ne.s32.totalorder %s244, %s245
    %p254 = scmp.eq.s32.totalorder %s24, 0
    %p255 = por %p253, %p254
    %p256 = scmp.ne.s32.totalorder %s244, %s245
    %p257 = scmp.eq.s32.totalorder %s25, 1
    %p258 = por %p256, %p257
    %p260 = scmp.ne.s32.totalorder %s245, %s259
    %p261 = scmp.eq.s32.totalorder %s25, 0
    %p262 = por %p260, %p261
    %s263 = ssub.s32 %s19, %s26
    %p264 = scmp.eq.s32.totalorder %s263, 0
    %s266 = sadd.s32 %s265, 1
    %s267 = scalar_select %p264, %s265, %s266
    %p270 = pneg %p264
    %p271 = scmp.eq.s32.totalorder %s19, 1
    %p272 = por %p270, %p271
    %p273 = scmp.ne.s32.totalorder %s265, %s268
    %p274 = scmp.eq.s32.totalorder %s19, 0
    %p275 = por %p273, %p274
    %p276 = scmp.ne.s32.totalorder %s265, %s268
    %p277 = scmp.eq.s32.totalorder %s24, 1
    %p278 = por %p276, %p277
    %p279 = scmp.ne.s32.totalorder %s268, %s269
    %p280 = scmp.eq.s32.totalorder %s24, 0
    %p281 = por %p279, %p280
    %p282 = scmp.ne.s32.totalorder %s268, %s269
    %p283 = scmp.eq.s32.totalorder %s25, 1
    %p284 = por %p282, %p283
    %p286 = scmp.ne.s32.totalorder %s269, %s285
    %p287 = scmp.eq.s32.totalorder %s25, 0
    %p288 = por %p286, %p287
    %p289 = scmp.le.s32.totalorder 1, %s19
    %p290 = scmp.lt.s32.totalorder %s19, 3
    %p291 = pnand %p289, %p290
    %p292 = pneg %p291
    // Predicated region
    $region9: #{implicit_mask_forward.1} parent=5 // pred_check
      _
    $region10: #{implicit_mask_forward.1} parent=5 // pred_check_branch
      %294 = sbr.rel (%p291) target = $region12
    $region11: #{implicit_mask_forward.1} parent=5 // pred_region
      %s295 = ssub.s32 %s19, 1
      // Predicated region
      $region13: #{implicit_mask_forward.1} parent=11 // pred_check
        %p296 = pneg %p66
      $region14: #{implicit_mask_forward.1} parent=11 // pred_check_branch
        %298 = sbr.rel (%p296) target = $region16
      $region15: #{implicit_mask_forward.1} parent=11 // pred_region
        _
      $region16: #{implicit_mask_forward.1} parent=11 // pred_fallthru
        _
      // Predicated region
      $region17: #{implicit_mask_forward.1} parent=11 // pred_check
        %p299 = pneg %p87
      $region18: #{implicit_mask_forward.1} parent=11 // pred_check_branch
        %301 = sbr.rel (%p299) target = $region20
      $region19: #{implicit_mask_forward.1} parent=11 // pred_region
        _
      $region20: #{implicit_mask_forward.1} parent=11 // pred_fallthru
        _
      // Predicated region
      $region21: #{implicit_mask_forward.1} parent=11 // pred_check
        %p302 = pneg %p108
      $region22: #{implicit_mask_forward.1} parent=11 // pred_check_branch
        %304 = sbr.rel (%p302) target = $region24
      $region23: #{implicit_mask_forward.1} parent=11 // pred_region
        _
      $region24: #{implicit_mask_forward.1} parent=11 // pred_fallthru
        _
      // Predicated region
      $region25: #{implicit_mask_forward.1} parent=11 // pred_check
        %p305 = pneg %p129
      $region26: #{implicit_mask_forward.1} parent=11 // pred_check_branch
        %307 = sbr.rel (%p305) target = $region28
      $region27: #{implicit_mask_forward.1} parent=11 // pred_region
        _
      $region28: #{implicit_mask_forward.1} parent=11 // pred_fallthru
        _
      // Predicated region
      $region29: #{implicit_mask_forward.1} parent=11 // pred_check
        %p308 = pneg %p150
      $region30: #{implicit_mask_forward.1} parent=11 // pred_check_branch
        %310 = sbr.rel (%p308) target = $region32
      $region31: #{implicit_mask_forward.1} parent=11 // pred_region
        _
      $region32: #{implicit_mask_forward.1} parent=11 // pred_fallthru
        _
      // Predicated region
      $region33: #{implicit_mask_forward.1} parent=11 // pred_check
        %p311 = pneg %p171
      $region34: #{implicit_mask_forward.1} parent=11 // pred_check_branch
        %313 = sbr.rel (%p311) target = $region36
      $region35: #{implicit_mask_forward.1} parent=11 // pred_region
        _
      $region36: #{implicit_mask_forward.1} parent=11 // pred_fallthru
        _
      // Predicated region
      $region37: #{implicit_mask_forward.1} parent=11 // pred_check
        %p314 = pneg %p192
      $region38: #{implicit_mask_forward.1} parent=11 // pred_check_branch
        %316 = sbr.rel (%p314) target = $region40
      $region39: #{implicit_mask_forward.1} parent=11 // pred_region
        _
      $region40: #{implicit_mask_forward.1} parent=11 // pred_fallthru
        _
      // Predicated region
      $region41: #{implicit_mask_forward.1} parent=11 // pred_check
        %p317 = pneg %p213
      $region42: #{implicit_mask_forward.1} parent=11 // pred_check_branch
        %319 = sbr.rel (%p317) target = $region44
      $region43: #{implicit_mask_forward.1} parent=11 // pred_region
        _
      $region44: #{implicit_mask_forward.1} parent=11 // pred_fallthru
        _
      // Predicated region
      $region45: #{implicit_mask_forward.1} parent=11 // pred_check
        %p320 = pneg %p234
      $region46: #{implicit_mask_forward.1} parent=11 // pred_check_branch
        %322 = sbr.rel (%p320) target = $region48
      $region47: #{implicit_mask_forward.1} parent=11 // pred_region
        _
      $region48: #{implicit_mask_forward.1} parent=11 // pred_fallthru
        _
      // Predicated region
      $region49: #{implicit_mask_forward.1} parent=11 // pred_check
        %p323 = pneg %p255
      $region50: #{implicit_mask_forward.1} parent=11 // pred_check_branch
        %325 = sbr.rel (%p323) target = $region52
      $region51: #{implicit_mask_forward.1} parent=11 // pred_region
        _
      $region52: #{implicit_mask_forward.1} parent=11 // pred_fallthru
        _
    $region12: #{implicit_mask_forward.1} parent=5 // pred_fallthru
      _
    %p326 = scmp.lt.s32.totalorder %s19, 2
    // Predicated region
    $region53: #{implicit_mask_forward.1} parent=5 // pred_check
      %p327 = pneg %p326
    $region54: #{implicit_mask_forward.1} parent=5 // pred_check_branch
      %329 = sbr.rel (%p327) target = $region56
    $region55: #{implicit_mask_forward.1} parent=5 // pred_region
      // Predicated region
      $region57: #{implicit_mask_forward.1} parent=55 // pred_check
        %p330 = pneg %p39
      $region58: #{implicit_mask_forward.1} parent=55 // pred_check_branch
        %332 = sbr.rel (%p330) target = $region60
      $region59: #{implicit_mask_forward.1} parent=55 // pred_region
        %s333 = smul.u32 128, %s19
        %p334 = scmp.lt.s32.totalorder %s333, 255
        %s335 = scalar_select %p334, %s333, 255
        %s336 = smul.addr %s335, 2
        %s337 = smul.addr %s336, 8
        %s338 = scalar_lea.vmem %s0, %s337
        %s339 = smul.u32 128, %s19
      $region60: #{implicit_mask_forward.1} parent=55 // pred_fallthru
        _
    $region56: #{implicit_mask_forward.1} parent=5 // pred_fallthru
      _
    %p340 = scmp.le.s32.totalorder 1, %s19
    %p341 = scmp.lt.s32.totalorder %s19, 3
    %p342 = pnand %p340, %p341
    %p343 = pneg %p342
    // Predicated region
    $region61: #{implicit_mask_forward.1} parent=5 // pred_check
      _
    $region62: #{implicit_mask_forward.1} parent=5 // pred_check_branch
      %345 = sbr.rel (%p342) target = $region64
    $region63: #{implicit_mask_forward.1} parent=5 // pred_region
      %s346 = ssub.s32 %s19, 1
      %s347 = smul.u32 128, %s24
      %p348 = scmp.lt.s32.totalorder %s347, 255
      %s349 = scalar_select %p348, %s347, 255
      %s350 = smul.addr %s349, 2
      %s351 = smul.addr %s350, 8
      %s352 = scalar_lea.vmem %s0, %s351
      %p353 = pneg %p45
      %p354 = pneg %p42
      %p355 = pneg %p66
      %p356 = pneg %p63
      %p357 = pneg %p87
      %p358 = pneg %p84
      %p359 = pneg %p108
      %p360 = pneg %p105
      %p361 = pneg %p129
      %p362 = pneg %p126
      %p363 = pneg %p150
      %p364 = pneg %p147
      %p365 = pneg %p171
      %p366 = pneg %p168
      %p367 = pneg %p192
      %p368 = pneg %p189
      %p369 = pneg %p213
      %p370 = pneg %p210
      %p371 = pneg %p234
      %p372 = pneg %p231
      %p373 = pneg %p255
      %p374 = pneg %p252
      %p375 = pneg %p281
      %p376 = pneg %p278
      %s377 = smul.u32 8, %s24
      %p378 = scmp.lt.s32.totalorder %s377, 15
      %s379 = scalar_select %p378, %s377, 15
      %s380 = scalar_lea.vmem %s11, %s379
      %s381 = smul.u32 128, %s24
      %p382 = scmp.lt.s32.totalorder %s381, 255
      %s383 = scalar_select %p382, %s381, 255
      %s384 = smul.addr %s383, 2
      %s385 = smul.addr %s384, 8
      %s386 = scalar_lea.vmem %s0, %s385
      %s387 = smul.u32 128, %s24
      %s388 = smul.u32 8, %s24
      %p389 = scmp.lt.s32.totalorder %s388, 15
      %s390 = scalar_select %p389, %s388, 15
      %s391 = scalar_lea.vmem %s11, %s390
      %s392 = smul.u32 8, %s24
      %v394 = vld [vmem:[%s386] sm:$0xff]
      %v395 = vld [vmem:[%s386 + $0x8] sm:$0xff]
      %v396 = vld [vmem:[%s386 + $0x10] sm:$0xff]
      %v397 = vld [vmem:[%s386 + $0x18] sm:$0xff]
      %v398 = vld [vmem:[%s386 + $0x20] sm:$0xff]
      %v399 = vld [vmem:[%s386 + $0x28] sm:$0xff]
      %v400 = vld [vmem:[%s386 + $0x30] sm:$0xff]
      %v401 = vld [vmem:[%s386 + $0x38] sm:$0xff]
      %v402 = vld [vmem:[%s386 + $0x40] sm:$0xff]
      %v403 = vld [vmem:[%s386 + $0x48] sm:$0xff]
      %v404 = vld [vmem:[%s386 + $0x50] sm:$0xff]
      %v405 = vld [vmem:[%s386 + $0x58] sm:$0xff]
      %v406 = vld [vmem:[%s386 + $0x60] sm:$0xff]
      %v407 = vld [vmem:[%s386 + $0x68] sm:$0xff]
      %v408 = vld [vmem:[%s386 + $0x70] sm:$0xff]
      %v409 = vld [vmem:[%s386 + $0x78] sm:$0xff]
      %v410 = vld [vmem:[%s386 + $0x80] sm:$0xff]
      %v411 = vld [vmem:[%s386 + $0x88] sm:$0xff]
      %v412 = vld [vmem:[%s386 + $0x90] sm:$0xff]
      %v413 = vld [vmem:[%s386 + $0x98] sm:$0xff]
      %v414 = vld [vmem:[%s386 + $0xa0] sm:$0xff]
      %v415 = vld [vmem:[%s386 + $0xa8] sm:$0xff]
      %v416 = vld [vmem:[%s386 + $0xb0] sm:$0xff]
      %v417 = vld [vmem:[%s386 + $0xb8] sm:$0xff]
      %v418 = vld [vmem:[%s386 + $0xc0] sm:$0xff]
      %v419 = vld [vmem:[%s386 + $0xc8] sm:$0xff]
      %v420 = vld [vmem:[%s386 + $0xd0] sm:$0xff]
      %v421 = vld [vmem:[%s386 + $0xd8] sm:$0xff]
      %v422 = vld [vmem:[%s386 + $0xe0] sm:$0xff]
      %v423 = vld [vmem:[%s386 + $0xe8] sm:$0xff]
      %v424 = vld [vmem:[%s386 + $0xf0] sm:$0xff]
      %v425 = vld [vmem:[%s386 + $0xf8] sm:$0xff]
      %v426 = vld [vmem:[%s386 + $0x100] sm:$0xff]
      %v427 = vld [vmem:[%s386 + $0x108] sm:$0xff]
      %v428 = vld [vmem:[%s386 + $0x110] sm:$0xff]
      %v429 = vld [vmem:[%s386 + $0x118] sm:$0xff]
      %v430 = vld [vmem:[%s386 + $0x120] sm:$0xff]
      %v431 = vld [vmem:[%s386 + $0x128] sm:$0xff]
      %v432 = vld [vmem:[%s386 + $0x130] sm:$0xff]
      %v433 = vld [vmem:[%s386 + $0x138] sm:$0xff]
      %v434 = vld [vmem:[%s386 + $0x140] sm:$0xff]
      %v435 = vld [vmem:[%s386 + $0x148] sm:$0xff]
      %v436 = vld [vmem:[%s386 + $0x150] sm:$0xff]
      %v437 = vld [vmem:[%s386 + $0x158] sm:$0xff]
      %v438 = vld [vmem:[%s386 + $0x160] sm:$0xff]
      %v439 = vld [vmem:[%s386 + $0x168] sm:$0xff]
      %v440 = vld [vmem:[%s386 + $0x170] sm:$0xff]
      %v441 = vld [vmem:[%s386 + $0x178] sm:$0xff]
      %v442 = vld [vmem:[%s386 + $0x180] sm:$0xff]
      %v443 = vld [vmem:[%s386 + $0x188] sm:$0xff]
      %v444 = vld [vmem:[%s386 + $0x190] sm:$0xff]
      %v445 = vld [vmem:[%s386 + $0x198] sm:$0xff]
      %v446 = vld [vmem:[%s386 + $0x1a0] sm:$0xff]
      %v447 = vld [vmem:[%s386 + $0x1a8] sm:$0xff]
      %v448 = vld [vmem:[%s386 + $0x1b0] sm:$0xff]
      %v449 = vld [vmem:[%s386 + $0x1b8] sm:$0xff]
      %v450 = vld [vmem:[%s386 + $0x1c0] sm:$0xff]
      %v451 = vld [vmem:[%s386 + $0x1c8] sm:$0xff]
      %v452 = vld [vmem:[%s386 + $0x1d0] sm:$0xff]
      %v453 = vld [vmem:[%s386 + $0x1d8] sm:$0xff]
      %v454 = vld [vmem:[%s386 + $0x1e0] sm:$0xff]
      %v455 = vld [vmem:[%s386 + $0x1e8] sm:$0xff]
      %v456 = vld [vmem:[%s386 + $0x1f0] sm:$0xff]
      %v457 = vld [vmem:[%s386 + $0x1f8] sm:$0xff]
      %v458 = vld [vmem:[%s386 + $0x200] sm:$0xff]
      %v459 = vld [vmem:[%s386 + $0x208] sm:$0xff]
      %v460 = vld [vmem:[%s386 + $0x210] sm:$0xff]
      %v461 = vld [vmem:[%s386 + $0x218] sm:$0xff]
      %v462 = vld [vmem:[%s386 + $0x220] sm:$0xff]
      %v463 = vld [vmem:[%s386 + $0x228] sm:$0xff]
      %v464 = vld [vmem:[%s386 + $0x230] sm:$0xff]
      %v465 = vld [vmem:[%s386 + $0x238] sm:$0xff]
      %v466 = vld [vmem:[%s386 + $0x240] sm:$0xff]
      %v467 = vld [vmem:[%s386 + $0x248] sm:$0xff]
      %v468 = vld [vmem:[%s386 + $0x250] sm:$0xff]
      %v469 = vld [vmem:[%s386 + $0x258] sm:$0xff]
      %v470 = vld [vmem:[%s386 + $0x260] sm:$0xff]
      %v471 = vld [vmem:[%s386 + $0x268] sm:$0xff]
      %v472 = vld [vmem:[%s386 + $0x270] sm:$0xff]
      %v473 = vld [vmem:[%s386 + $0x278] sm:$0xff]
      %v474 = vld [vmem:[%s386 + $0x280] sm:$0xff]
      %v475 = vld [vmem:[%s386 + $0x288] sm:$0xff]
      %v476 = vld [vmem:[%s386 + $0x290] sm:$0xff]
      %v477 = vld [vmem:[%s386 + $0x298] sm:$0xff]
      %v478 = vld [vmem:[%s386 + $0x2a0] sm:$0xff]
      %v479 = vld [vmem:[%s386 + $0x2a8] sm:$0xff]
      %v480 = vld [vmem:[%s386 + $0x2b0] sm:$0xff]
      %v481 = vld [vmem:[%s386 + $0x2b8] sm:$0xff]
      %v482 = vld [vmem:[%s386 + $0x2c0] sm:$0xff]
      %v483 = vld [vmem:[%s386 + $0x2c8] sm:$0xff]
      %v484 = vld [vmem:[%s386 + $0x2d0] sm:$0xff]
      %v485 = vld [vmem:[%s386 + $0x2d8] sm:$0xff]
      %v486 = vld [vmem:[%s386 + $0x2e0] sm:$0xff]
      %v487 = vld [vmem:[%s386 + $0x2e8] sm:$0xff]
      %v488 = vld [vmem:[%s386 + $0x2f0] sm:$0xff]
      %v489 = vld [vmem:[%s386 + $0x2f8] sm:$0xff]
      %v490 = vld [vmem:[%s386 + $0x300] sm:$0xff]
      %v491 = vld [vmem:[%s386 + $0x308] sm:$0xff]
      %v492 = vld [vmem:[%s386 + $0x310] sm:$0xff]
      %v493 = vld [vmem:[%s386 + $0x318] sm:$0xff]
      %v494 = vld [vmem:[%s386 + $0x320] sm:$0xff]
      %v495 = vld [vmem:[%s386 + $0x328] sm:$0xff]
      %v496 = vld [vmem:[%s386 + $0x330] sm:$0xff]
      %v497 = vld [vmem:[%s386 + $0x338] sm:$0xff]
      %v498 = vld [vmem:[%s386 + $0x340] sm:$0xff]
      %v499 = vld [vmem:[%s386 + $0x348] sm:$0xff]
      %v500 = vld [vmem:[%s386 + $0x350] sm:$0xff]
      %v501 = vld [vmem:[%s386 + $0x358] sm:$0xff]
      %v502 = vld [vmem:[%s386 + $0x360] sm:$0xff]
      %v503 = vld [vmem:[%s386 + $0x368] sm:$0xff]
      %v504 = vld [vmem:[%s386 + $0x370] sm:$0xff]
      %v505 = vld [vmem:[%s386 + $0x378] sm:$0xff]
      %v506 = vld [vmem:[%s386 + $0x380] sm:$0xff]
      %v507 = vld [vmem:[%s386 + $0x388] sm:$0xff]
      %v508 = vld [vmem:[%s386 + $0x390] sm:$0xff]
      %v509 = vld [vmem:[%s386 + $0x398] sm:$0xff]
      %v510 = vld [vmem:[%s386 + $0x3a0] sm:$0xff]
      %v511 = vld [vmem:[%s386 + $0x3a8] sm:$0xff]
      %v512 = vld [vmem:[%s386 + $0x3b0] sm:$0xff]
      %v513 = vld [vmem:[%s386 + $0x3b8] sm:$0xff]
      %v514 = vld [vmem:[%s386 + $0x3c0] sm:$0xff]
      %v515 = vld [vmem:[%s386 + $0x3c8] sm:$0xff]
      %v516 = vld [vmem:[%s386 + $0x3d0] sm:$0xff]
      %v517 = vld [vmem:[%s386 + $0x3d8] sm:$0xff]
      %v518 = vld [vmem:[%s386 + $0x3e0] sm:$0xff]
      %v519 = vld [vmem:[%s386 + $0x3e8] sm:$0xff]
      %v520 = vld [vmem:[%s386 + $0x3f0] sm:$0xff]
      %v521 = vld [vmem:[%s386 + $0x3f8] sm:$0xff]
      %v522 = vld [vmem:[%s386 + $0x400] sm:$0xff]
      %v523 = vld [vmem:[%s386 + $0x408] sm:$0xff]
      %v524 = vld [vmem:[%s386 + $0x410] sm:$0xff]
      %v525 = vld [vmem:[%s386 + $0x418] sm:$0xff]
      %v526 = vld [vmem:[%s386 + $0x420] sm:$0xff]
      %v527 = vld [vmem:[%s386 + $0x428] sm:$0xff]
      %v528 = vld [vmem:[%s386 + $0x430] sm:$0xff]
      %v529 = vld [vmem:[%s386 + $0x438] sm:$0xff]
      %v530 = vld [vmem:[%s386 + $0x440] sm:$0xff]
      %v531 = vld [vmem:[%s386 + $0x448] sm:$0xff]
      %v532 = vld [vmem:[%s386 + $0x450] sm:$0xff]
      %v533 = vld [vmem:[%s386 + $0x458] sm:$0xff]
      %v534 = vld [vmem:[%s386 + $0x460] sm:$0xff]
      %v535 = vld [vmem:[%s386 + $0x468] sm:$0xff]
      %v536 = vld [vmem:[%s386 + $0x470] sm:$0xff]
      %v537 = vld [vmem:[%s386 + $0x478] sm:$0xff]
      %v538 = vld [vmem:[%s386 + $0x480] sm:$0xff]
      %v539 = vld [vmem:[%s386 + $0x488] sm:$0xff]
      %v540 = vld [vmem:[%s386 + $0x490] sm:$0xff]
      %v541 = vld [vmem:[%s386 + $0x498] sm:$0xff]
      %v542 = vld [vmem:[%s386 + $0x4a0] sm:$0xff]
      %v543 = vld [vmem:[%s386 + $0x4a8] sm:$0xff]
      %v544 = vld [vmem:[%s386 + $0x4b0] sm:$0xff]
      %v545 = vld [vmem:[%s386 + $0x4b8] sm:$0xff]
      %v546 = vld [vmem:[%s386 + $0x4c0] sm:$0xff]
      %v547 = vld [vmem:[%s386 + $0x4c8] sm:$0xff]
      %v548 = vld [vmem:[%s386 + $0x4d0] sm:$0xff]
      %v549 = vld [vmem:[%s386 + $0x4d8] sm:$0xff]
      %v550 = vld [vmem:[%s386 + $0x4e0] sm:$0xff]
      %v551 = vld [vmem:[%s386 + $0x4e8] sm:$0xff]
      %v552 = vld [vmem:[%s386 + $0x4f0] sm:$0xff]
      %v553 = vld [vmem:[%s386 + $0x4f8] sm:$0xff]
      %v554 = vld [vmem:[%s386 + $0x500] sm:$0xff]
      %v555 = vld [vmem:[%s386 + $0x508] sm:$0xff]
      %v556 = vld [vmem:[%s386 + $0x510] sm:$0xff]
      %v557 = vld [vmem:[%s386 + $0x518] sm:$0xff]
      %v558 = vld [vmem:[%s386 + $0x520] sm:$0xff]
      %v559 = vld [vmem:[%s386 + $0x528] sm:$0xff]
      %v560 = vld [vmem:[%s386 + $0x530] sm:$0xff]
      %v561 = vld [vmem:[%s386 + $0x538] sm:$0xff]
      %v562 = vld [vmem:[%s386 + $0x540] sm:$0xff]
      %v563 = vld [vmem:[%s386 + $0x548] sm:$0xff]
      %v564 = vld [vmem:[%s386 + $0x550] sm:$0xff]
      %v565 = vld [vmem:[%s386 + $0x558] sm:$0xff]
      %v566 = vld [vmem:[%s386 + $0x560] sm:$0xff]
      %v567 = vld [vmem:[%s386 + $0x568] sm:$0xff]
      %v568 = vld [vmem:[%s386 + $0x570] sm:$0xff]
      %v569 = vld [vmem:[%s386 + $0x578] sm:$0xff]
      %v570 = vld [vmem:[%s386 + $0x580] sm:$0xff]
      %v571 = vld [vmem:[%s386 + $0x588] sm:$0xff]
      %v572 = vld [vmem:[%s386 + $0x590] sm:$0xff]
      %v573 = vld [vmem:[%s386 + $0x598] sm:$0xff]
      %v574 = vld [vmem:[%s386 + $0x5a0] sm:$0xff]
      %v575 = vld [vmem:[%s386 + $0x5a8] sm:$0xff]
      %v576 = vld [vmem:[%s386 + $0x5b0] sm:$0xff]
      %v577 = vld [vmem:[%s386 + $0x5b8] sm:$0xff]
      %v578 = vld [vmem:[%s386 + $0x5c0] sm:$0xff]
      %v579 = vld [vmem:[%s386 + $0x5c8] sm:$0xff]
      %v580 = vld [vmem:[%s386 + $0x5d0] sm:$0xff]
      %v581 = vld [vmem:[%s386 + $0x5d8] sm:$0xff]
      %v582 = vld [vmem:[%s386 + $0x5e0] sm:$0xff]
      %v583 = vld [vmem:[%s386 + $0x5e8] sm:$0xff]
      %v584 = vld [vmem:[%s386 + $0x5f0] sm:$0xff]
      %v585 = vld [vmem:[%s386 + $0x5f8] sm:$0xff]
      %v586 = vld [vmem:[%s386 + $0x600] sm:$0xff]
      %v587 = vld [vmem:[%s386 + $0x608] sm:$0xff]
      %v588 = vld [vmem:[%s386 + $0x610] sm:$0xff]
      %v589 = vld [vmem:[%s386 + $0x618] sm:$0xff]
      %v590 = vld [vmem:[%s386 + $0x620] sm:$0xff]
      %v591 = vld [vmem:[%s386 + $0x628] sm:$0xff]
      %v592 = vld [vmem:[%s386 + $0x630] sm:$0xff]
      %v593 = vld [vmem:[%s386 + $0x638] sm:$0xff]
      %v594 = vld [vmem:[%s386 + $0x640] sm:$0xff]
      %v595 = vld [vmem:[%s386 + $0x648] sm:$0xff]
      %v596 = vld [vmem:[%s386 + $0x650] sm:$0xff]
      %v597 = vld [vmem:[%s386 + $0x658] sm:$0xff]
      %v598 = vld [vmem:[%s386 + $0x660] sm:$0xff]
      %v599 = vld [vmem:[%s386 + $0x668] sm:$0xff]
      %v600 = vld [vmem:[%s386 + $0x670] sm:$0xff]
      %v601 = vld [vmem:[%s386 + $0x678] sm:$0xff]
      %v602 = vld [vmem:[%s386 + $0x680] sm:$0xff]
      %v603 = vld [vmem:[%s386 + $0x688] sm:$0xff]
      %v604 = vld [vmem:[%s386 + $0x690] sm:$0xff]
      %v605 = vld [vmem:[%s386 + $0x698] sm:$0xff]
      %v606 = vld [vmem:[%s386 + $0x6a0] sm:$0xff]
      %v607 = vld [vmem:[%s386 + $0x6a8] sm:$0xff]
      %v608 = vld [vmem:[%s386 + $0x6b0] sm:$0xff]
      %v609 = vld [vmem:[%s386 + $0x6b8] sm:$0xff]
      %v610 = vld [vmem:[%s386 + $0x6c0] sm:$0xff]
      %v611 = vld [vmem:[%s386 + $0x6c8] sm:$0xff]
      %v612 = vld [vmem:[%s386 + $0x6d0] sm:$0xff]
      %v613 = vld [vmem:[%s386 + $0x6d8] sm:$0xff]
      %v614 = vld [vmem:[%s386 + $0x6e0] sm:$0xff]
      %v615 = vld [vmem:[%s386 + $0x6e8] sm:$0xff]
      %v616 = vld [vmem:[%s386 + $0x6f0] sm:$0xff]
      %v617 = vld [vmem:[%s386 + $0x6f8] sm:$0xff]
      %v618 = vld [vmem:[%s386 + $0x700] sm:$0xff]
      %v619 = vld [vmem:[%s386 + $0x708] sm:$0xff]
      %v620 = vld [vmem:[%s386 + $0x710] sm:$0xff]
      %v621 = vld [vmem:[%s386 + $0x718] sm:$0xff]
      %v622 = vld [vmem:[%s386 + $0x720] sm:$0xff]
      %v623 = vld [vmem:[%s386 + $0x728] sm:$0xff]
      %v624 = vld [vmem:[%s386 + $0x730] sm:$0xff]
      %v625 = vld [vmem:[%s386 + $0x738] sm:$0xff]
      %v626 = vld [vmem:[%s386 + $0x740] sm:$0xff]
      %v627 = vld [vmem:[%s386 + $0x748] sm:$0xff]
      %v628 = vld [vmem:[%s386 + $0x750] sm:$0xff]
      %v629 = vld [vmem:[%s386 + $0x758] sm:$0xff]
      %v630 = vld [vmem:[%s386 + $0x760] sm:$0xff]
      %v631 = vld [vmem:[%s386 + $0x768] sm:$0xff]
      %v632 = vld [vmem:[%s386 + $0x770] sm:$0xff]
      %v633 = vld [vmem:[%s386 + $0x778] sm:$0xff]
      %v634 = vld [vmem:[%s386 + $0x780] sm:$0xff]
      %v635 = vld [vmem:[%s386 + $0x788] sm:$0xff]
      %v636 = vld [vmem:[%s386 + $0x790] sm:$0xff]
      %v637 = vld [vmem:[%s386 + $0x798] sm:$0xff]
      %v638 = vld [vmem:[%s386 + $0x7a0] sm:$0xff]
      %v639 = vld [vmem:[%s386 + $0x7a8] sm:$0xff]
      %v640 = vld [vmem:[%s386 + $0x7b0] sm:$0xff]
      %v641 = vld [vmem:[%s386 + $0x7b8] sm:$0xff]
      %v642 = vld [vmem:[%s386 + $0x7c0] sm:$0xff]
      %v643 = vld [vmem:[%s386 + $0x7c8] sm:$0xff]
      %v644 = vld [vmem:[%s386 + $0x7d0] sm:$0xff]
      %v645 = vld [vmem:[%s386 + $0x7d8] sm:$0xff]
      %v646 = vld [vmem:[%s386 + $0x7e0] sm:$0xff]
      %v647 = vld [vmem:[%s386 + $0x7e8] sm:$0xff]
      %v648 = vld [vmem:[%s386 + $0x7f0] sm:$0xff]
      %v649 = vld [vmem:[%s386 + $0x7f8] sm:$0xff]
      %v650 = vpack.c.bf16 %v396, %v394
      %v651 = vpack.c.bf16 %v397, %v395
      %v652 = vpack.c.bf16 %v400, %v398
      %v653 = vpack.c.bf16 %v401, %v399
      %v654 = vpack.c.bf16 %v404, %v402
      %v655 = vpack.c.bf16 %v405, %v403
      %v656 = vpack.c.bf16 %v408, %v406
      %v657 = vpack.c.bf16 %v409, %v407
      %v658 = vpack.c.bf16 %v412, %v410
      %v659 = vpack.c.bf16 %v413, %v411
      %v660 = vpack.c.bf16 %v416, %v414
      %v661 = vpack.c.bf16 %v417, %v415
      %v662 = vpack.c.bf16 %v420, %v418
      %v663 = vpack.c.bf16 %v421, %v419
      %v664 = vpack.c.bf16 %v424, %v422
      %v665 = vpack.c.bf16 %v425, %v423
      %v666 = vpack.c.bf16 %v428, %v426
      %v667 = vpack.c.bf16 %v429, %v427
      %v668 = vpack.c.bf16 %v432, %v430
      %v669 = vpack.c.bf16 %v433, %v431
      %v670 = vpack.c.bf16 %v436, %v434
      %v671 = vpack.c.bf16 %v437, %v435
      %v672 = vpack.c.bf16 %v440, %v438
      %v673 = vpack.c.bf16 %v441, %v439
      %v674 = vpack.c.bf16 %v444, %v442
      %v675 = vpack.c.bf16 %v445, %v443
      %v676 = vpack.c.bf16 %v448, %v446
      %v677 = vpack.c.bf16 %v449, %v447
      %v678 = vpack.c.bf16 %v452, %v450
      %v679 = vpack.c.bf16 %v453, %v451
      %v680 = vpack.c.bf16 %v456, %v454
      %v681 = vpack.c.bf16 %v457, %v455
      %v682 = vpack.c.bf16 %v460, %v458
      %v683 = vpack.c.bf16 %v461, %v459
      %v684 = vpack.c.bf16 %v464, %v462
      %v685 = vpack.c.bf16 %v465, %v463
      %v686 = vpack.c.bf16 %v468, %v466
      %v687 = vpack.c.bf16 %v469, %v467
      %v688 = vpack.c.bf16 %v472, %v470
      %v689 = vpack.c.bf16 %v473, %v471
      %v690 = vpack.c.bf16 %v476, %v474
      %v691 = vpack.c.bf16 %v477, %v475
      %v692 = vpack.c.bf16 %v480, %v478
      %v693 = vpack.c.bf16 %v481, %v479
      %v694 = vpack.c.bf16 %v484, %v482
      %v695 = vpack.c.bf16 %v485, %v483
      %v696 = vpack.c.bf16 %v488, %v486
      %v697 = vpack.c.bf16 %v489, %v487
      %v698 = vpack.c.bf16 %v492, %v490
      %v699 = vpack.c.bf16 %v493, %v491
      %v700 = vpack.c.bf16 %v496, %v494
      %v701 = vpack.c.bf16 %v497, %v495
      %v702 = vpack.c.bf16 %v500, %v498
      %v703 = vpack.c.bf16 %v501, %v499
      %v704 = vpack.c.bf16 %v504, %v502
      %v705 = vpack.c.bf16 %v505, %v503
      %v706 = vpack.c.bf16 %v508, %v506
      %v707 = vpack.c.bf16 %v509, %v507
      %v708 = vpack.c.bf16 %v512, %v510
      %v709 = vpack.c.bf16 %v513, %v511
      %v710 = vpack.c.bf16 %v516, %v514
      %v711 = vpack.c.bf16 %v517, %v515
      %v712 = vpack.c.bf16 %v520, %v518
      %v713 = vpack.c.bf16 %v521, %v519
      %v714 = vpack.c.bf16 %v524, %v522
      %v715 = vpack.c.bf16 %v525, %v523
      %v716 = vpack.c.bf16 %v528, %v526
      %v717 = vpack.c.bf16 %v529, %v527
      %v718 = vpack.c.bf16 %v532, %v530
      %v719 = vpack.c.bf16 %v533, %v531
      %v720 = vpack.c.bf16 %v536, %v534
      %v721 = vpack.c.bf16 %v537, %v535
      %v722 = vpack.c.bf16 %v540, %v538
      %v723 = vpack.c.bf16 %v541, %v539
      %v724 = vpack.c.bf16 %v544, %v542
      %v725 = vpack.c.bf16 %v545, %v543
      %v726 = vpack.c.bf16 %v548, %v546
      %v727 = vpack.c.bf16 %v549, %v547
      %v728 = vpack.c.bf16 %v552, %v550
      %v729 = vpack.c.bf16 %v553, %v551
      %v730 = vpack.c.bf16 %v556, %v554
      %v731 = vpack.c.bf16 %v557, %v555
      %v732 = vpack.c.bf16 %v560, %v558
      %v733 = vpack.c.bf16 %v561, %v559
      %v734 = vpack.c.bf16 %v564, %v562
      %v735 = vpack.c.bf16 %v565, %v563
      %v736 = vpack.c.bf16 %v568, %v566
      %v737 = vpack.c.bf16 %v569, %v567
      %v738 = vpack.c.bf16 %v572, %v570
      %v739 = vpack.c.bf16 %v573, %v571
      %v740 = vpack.c.bf16 %v576, %v574
      %v741 = vpack.c.bf16 %v577, %v575
      %v742 = vpack.c.bf16 %v580, %v578
      %v743 = vpack.c.bf16 %v581, %v579
      %v744 = vpack.c.bf16 %v584, %v582
      %v745 = vpack.c.bf16 %v585, %v583
      %v746 = vpack.c.bf16 %v588, %v586
      %v747 = vpack.c.bf16 %v589, %v587
      %v748 = vpack.c.bf16 %v592, %v590
      %v749 = vpack.c.bf16 %v593, %v591
      %v750 = vpack.c.bf16 %v596, %v594
      %v751 = vpack.c.bf16 %v597, %v595
      %v752 = vpack.c.bf16 %v600, %v598
      %v753 = vpack.c.bf16 %v601, %v599
      %v754 = vpack.c.bf16 %v604, %v602
      %v755 = vpack.c.bf16 %v605, %v603
      %v756 = vpack.c.bf16 %v608, %v606
      %v757 = vpack.c.bf16 %v609, %v607
      %v758 = vpack.c.bf16 %v612, %v610
      %v759 = vpack.c.bf16 %v613, %v611
      %v760 = vpack.c.bf16 %v616, %v614
      %v761 = vpack.c.bf16 %v617, %v615
      %v762 = vpack.c.bf16 %v620, %v618
      %v763 = vpack.c.bf16 %v621, %v619
      %v764 = vpack.c.bf16 %v624, %v622
      %v765 = vpack.c.bf16 %v625, %v623
      %v766 = vpack.c.bf16 %v628, %v626
      %v767 = vpack.c.bf16 %v629, %v627
      %v768 = vpack.c.bf16 %v632, %v630
      %v769 = vpack.c.bf16 %v633, %v631
      %v770 = vpack.c.bf16 %v636, %v634
      %v771 = vpack.c.bf16 %v637, %v635
      %v772 = vpack.c.bf16 %v640, %v638
      %v773 = vpack.c.bf16 %v641, %v639
      %v774 = vpack.c.bf16 %v644, %v642
      %v775 = vpack.c.bf16 %v645, %v643
      %v776 = vpack.c.bf16 %v648, %v646
      %v777 = vpack.c.bf16 %v649, %v647
      %v778 = vld [vmem:[%s1] sm:$0xff]
      %v779 = vld [vmem:[%s1 + $0x8] sm:$0xff]
      %v780 = vld [vmem:[%s1 + $0x10] sm:$0xff]
      %v781 = vld [vmem:[%s1 + $0x18] sm:$0xff]
      %v782 = vld [vmem:[%s1 + $0x20] sm:$0xff]
      %v783 = vld [vmem:[%s1 + $0x28] sm:$0xff]
      %v784 = vld [vmem:[%s1 + $0x30] sm:$0xff]
      %v785 = vld [vmem:[%s1 + $0x38] sm:$0xff]
      %v786 = vld [vmem:[%s1 + $0x40] sm:$0xff]
      %v787 = vld [vmem:[%s1 + $0x48] sm:$0xff]
      %v788 = vld [vmem:[%s1 + $0x50] sm:$0xff]
      %v789 = vld [vmem:[%s1 + $0x58] sm:$0xff]
      %v790 = vld [vmem:[%s1 + $0x60] sm:$0xff]
      %v791 = vld [vmem:[%s1 + $0x68] sm:$0xff]
      %v792 = vld [vmem:[%s1 + $0x70] sm:$0xff]
      %v793 = vld [vmem:[%s1 + $0x78] sm:$0xff]
      %v794 = vld [vmem:[%s1 + $0x80] sm:$0xff]
      %v795 = vld [vmem:[%s1 + $0x88] sm:$0xff]
      %v796 = vld [vmem:[%s1 + $0x90] sm:$0xff]
      %v797 = vld [vmem:[%s1 + $0x98] sm:$0xff]
      %v798 = vld [vmem:[%s1 + $0xa0] sm:$0xff]
      %v799 = vld [vmem:[%s1 + $0xa8] sm:$0x11]
      %v800 = vld [vmem:[%s2] sm:$0x3]
      %v802 = vlaneseq
      %v803 = vshrl.u32 %v802, 7
      %v804 = vsub.s32 0, %v803
      %v805 = vrot.slane %v800, %v804
      %v806 = vlaneseq
      %v807 = vshrl.u32 %v806, 7
      %v808 = vsub.s32 1, %v807
      %v809 = vrot.slane %v800, %v808
      %v834 = vunpack.c.l.b16 %v778
      %v835 = vunpack.c.h.b16 %v778
      %v836 = vunpack.c.l.b16 %v779
      %v837 = vunpack.c.h.b16 %v779
      %v838 = vunpack.c.l.b16 %v780
      %v839 = vunpack.c.h.b16 %v780
      %v840 = vunpack.c.l.b16 %v781
      %v841 = vunpack.c.h.b16 %v781
      %v842 = vunpack.c.l.b16 %v782
      %v843 = vunpack.c.h.b16 %v782
      %v844 = vunpack.c.l.b16 %v783
      %v845 = vunpack.c.h.b16 %v783
      %v846 = vunpack.c.l.b16 %v784
      %v847 = vunpack.c.h.b16 %v784
      %v848 = vunpack.c.l.b16 %v785
      %v849 = vunpack.c.h.b16 %v785
      %v850 = vunpack.c.l.b16 %v786
      %v851 = vunpack.c.h.b16 %v786
      %v852 = vunpack.c.l.b16 %v787
      %v853 = vunpack.c.h.b16 %v787
      %v854 = vunpack.c.l.b16 %v788
      %v855 = vunpack.c.h.b16 %v788
      %v856 = vunpack.c.l.b16 %v789
      %v857 = vunpack.c.h.b16 %v789
      %v858 = vunpack.c.l.b16 %v790
      %v859 = vunpack.c.h.b16 %v790
      %v860 = vunpack.c.l.b16 %v791
      %v861 = vunpack.c.h.b16 %v791
      %v862 = vunpack.c.l.b16 %v792
      %v863 = vunpack.c.h.b16 %v792
      %v864 = vunpack.c.l.b16 %v793
      %v865 = vunpack.c.h.b16 %v793
      %v866 = vunpack.c.l.b16 %v794
      %v867 = vunpack.c.h.b16 %v794
      %v868 = vunpack.c.l.b16 %v795
      %v869 = vunpack.c.h.b16 %v795
      %v870 = vunpack.c.l.b16 %v796
      %v871 = vunpack.c.h.b16 %v796
      %v872 = vunpack.c.l.b16 %v797
      %v873 = vunpack.c.h.b16 %v797
      %v874 = vunpack.c.l.b16 %v798
      %v875 = vunpack.c.h.b16 %v798
      %v876 = vunpack.c.l.b16 %v799
      %v877 = vunpack.c.h.b16 %v799
      %v878 = vpack.c.b16 %v836, %v834
      %v879 = vpack.c.b16 %v837, %v835
      %v880 = vpack.c.b16 %v840, %v838
      %v881 = vpack.c.b16 %v841, %v839
      %v882 = vpack.c.b16 %v844, %v842
      %v883 = vpack.c.b16 %v845, %v843
      %v884 = vpack.c.b16 %v848, %v846
      %v885 = vpack.c.b16 %v849, %v847
      %v886 = vpack.c.b16 %v852, %v850
      %v887 = vpack.c.b16 %v853, %v851
      %v888 = vpack.c.b16 %v856, %v854
      %v889 = vpack.c.b16 %v857, %v855
      %v890 = vpack.c.b16 %v860, %v858
      %v891 = vpack.c.b16 %v861, %v859
      %v892 = vpack.c.b16 %v864, %v862
      %v893 = vpack.c.b16 %v865, %v863
      %v894 = vpack.c.b16 %v868, %v866
      %v895 = vpack.c.b16 %v869, %v867
      %v896 = vpack.c.b16 %v872, %v870
      %v897 = vpack.c.b16 %v873, %v871
      %v898 = vpack.c.b16 %v876, %v874
      %v899 = vpack.c.b16 %v877, %v875
      %vm920 = vcmask 343040
      %v922 = vsel %vm920, %v651, 0
      %v925 = vsel %vm920, %v653, 0
      %v928 = vsel %vm920, %v655, 0
      %v931 = vsel %vm920, %v657, 0
      %v934 = vsel %vm920, %v659, 0
      %v937 = vsel %vm920, %v661, 0
      %v940 = vsel %vm920, %v663, 0
      %v943 = vsel %vm920, %v665, 0
      %v946 = vsel %vm920, %v667, 0
      %v949 = vsel %vm920, %v669, 0
      %v952 = vsel %vm920, %v671, 0
      %v955 = vsel %vm920, %v673, 0
      %v958 = vsel %vm920, %v675, 0
      %v961 = vsel %vm920, %v677, 0
      %v964 = vsel %vm920, %v679, 0
      %v967 = vsel %vm920, %v681, 0
      %v970 = vsel %vm920, %v683, 0
      %v973 = vsel %vm920, %v685, 0
      %v976 = vsel %vm920, %v687, 0
      %v979 = vsel %vm920, %v689, 0
      %v982 = vsel %vm920, %v691, 0
      %v985 = vsel %vm920, %v693, 0
      %v988 = vsel %vm920, %v695, 0
      %v991 = vsel %vm920, %v697, 0
      %v994 = vsel %vm920, %v699, 0
      %v997 = vsel %vm920, %v701, 0
      %v1000 = vsel %vm920, %v703, 0
      %v1003 = vsel %vm920, %v705, 0
      %v1006 = vsel %vm920, %v707, 0
      %v1009 = vsel %vm920, %v709, 0
      %v1012 = vsel %vm920, %v711, 0
      %v1015 = vsel %vm920, %v713, 0
      %v1018 = vsel %vm920, %v715, 0
      %v1021 = vsel %vm920, %v717, 0
      %v1024 = vsel %vm920, %v719, 0
      %v1027 = vsel %vm920, %v721, 0
      %v1030 = vsel %vm920, %v723, 0
      %v1033 = vsel %vm920, %v725, 0
      %v1036 = vsel %vm920, %v727, 0
      %v1039 = vsel %vm920, %v729, 0
      %v1042 = vsel %vm920, %v731, 0
      %v1045 = vsel %vm920, %v733, 0
      %v1048 = vsel %vm920, %v735, 0
      %v1051 = vsel %vm920, %v737, 0
      %v1054 = vsel %vm920, %v739, 0
      %v1057 = vsel %vm920, %v741, 0
      %v1060 = vsel %vm920, %v743, 0
      %v1063 = vsel %vm920, %v745, 0
      %v1066 = vsel %vm920, %v747, 0
      %v1069 = vsel %vm920, %v749, 0
      %v1072 = vsel %vm920, %v751, 0
      %v1075 = vsel %vm920, %v753, 0
      %v1078 = vsel %vm920, %v755, 0
      %v1081 = vsel %vm920, %v757, 0
      %v1084 = vsel %vm920, %v759, 0
      %v1087 = vsel %vm920, %v761, 0
      %v1090 = vsel %vm920, %v763, 0
      %v1093 = vsel %vm920, %v765, 0
      %v1096 = vsel %vm920, %v767, 0
      %v1099 = vsel %vm920, %v769, 0
      %v1102 = vsel %vm920, %v771, 0
      %v1105 = vsel %vm920, %v773, 0
      %v1108 = vsel %vm920, %v775, 0
      %v1111 = vsel %vm920, %v777, 0
      %vm1113 = vcmask 1044480
      %v1115 = vsel %vm1113, %v898, 0
      %v1118 = vsel %vm1113, %v899, 0
      %1120 = vmatprep.subr.bf16.mxu0 %v879
      %1121 = vmatpush1.bf16.msra.mxu0 %v878
      %1122 = vmatprep.subr.bf16.mxu0 %v881
      %1123 = vmatpush1.bf16.msra.mxu0 %v880
      %1124 = vmatprep.subr.bf16.mxu0 %v883
      %1125 = vmatpush1.bf16.msra.mxu0 %v882
      %1126 = vmatprep.subr.bf16.mxu0 %v885
      %1127 = vmatpush1.bf16.msra.mxu0 %v884
      %1128 = vmatprep.subr.bf16.mxu0 %v887
      %1129 = vmatpush1.bf16.msra.mxu0 %v886
      %1130 = vmatprep.subr.bf16.mxu0 %v889
      %1131 = vmatpush1.bf16.msra.mxu0 %v888
      %1132 = vmatprep.subr.bf16.mxu0 %v891
      %1133 = vmatpush1.bf16.msra.mxu0 %v890
      %1134 = vmatprep.subr.bf16.mxu0 %v893
      %1135 = vmatpush1.bf16.msra.mxu0 %v892
      %1136 = vmatprep.subr.bf16.mxu0 %v895
      %1137 = vmatpush1.bf16.msra.mxu0 %v894
      %1138 = vmatprep.subr.bf16.mxu0 %v897
      %1139 = vmatpush1.bf16.msra.mxu0 %v896
      %1140 = vmatprep.subr.bf16.mxu0 %v1118
      %1141 = vmatpush1.bf16.msra.mxu0 %v1115
      %1142 = vmatprep.subr.bf16.mxu0 0
      %1143 = vmatpush1.bf16.msra.mxu0 0
      %1144 = vmatprep.subr.bf16.mxu0 0
      %1145 = vmatpush1.bf16.msra.mxu0 0
      %1146 = vmatprep.subr.bf16.mxu0 0
      %1147 = vmatpush1.bf16.msra.mxu0 0
      %1148 = vmatprep.subr.bf16.mxu0 0
      %1149 = vmatpush1.bf16.msra.mxu0 0
      %1150 = vmatprep.subr.bf16.mxu0 0
      %1151 = vmatpush1.bf16.msra.mxu0 0
      %1152 = vmatprep.mubr.bf16.mxu0 %v922
      %1153 = vmatmul.mubr.bf16.gmra.mrb[0].mxu0 %v650
      %v1154 = vpop.f32.mrb[0].mxu0
      %v1155 = vadd.f32 %v805, %v1154
      %v1156 = vpop.f32.mrb[0].mxu0
      %v1157 = vadd.f32 %v809, %v1156
      %v1158 = vpop.f32.mrb[0].mxu0
      %v1159 = vadd.f32 %v805, %v1158
      %v1160 = vpop.f32.mrb[0].mxu0
      %v1161 = vadd.f32 %v809, %v1160
      %1162 = vmatprep.mubr.bf16.mxu0 %v925
      %1163 = vmatmul.mubr.bf16.gmra.mrb[0].mxu0 %v652
      %v1164 = vpop.f32.mrb[0].mxu0
      %v1165 = vadd.f32 %v805, %v1164
      %v1166 = vpop.f32.mrb[0].mxu0
      %v1167 = vadd.f32 %v809, %v1166
      %v1168 = vpop.f32.mrb[0].mxu0
      %v1169 = vadd.f32 %v805, %v1168
      %v1170 = vpop.f32.mrb[0].mxu0
      %v1171 = vadd.f32 %v809, %v1170
      %1172 = vmatprep.mubr.bf16.mxu0 %v928
      %1173 = vmatmul.mubr.bf16.gmra.mrb[0].mxu0 %v654
      %v1174 = vpop.f32.mrb[0].mxu0
      %v1175 = vadd.f32 %v805, %v1174
      %v1176 = vpop.f32.mrb[0].mxu0
      %v1177 = vadd.f32 %v809, %v1176
      %v1178 = vpop.f32.mrb[0].mxu0
      %v1179 = vadd.f32 %v805, %v1178
      %v1180 = vpop.f32.mrb[0].mxu0
      %v1181 = vadd.f32 %v809, %v1180
      %1182 = vmatprep.mubr.bf16.mxu0 %v931
      %1183 = vmatmul.mubr.bf16.gmra.mrb[0].mxu0 %v656
      %v1184 = vpop.f32.mrb[0].mxu0
      %v1185 = vadd.f32 %v805, %v1184
      %v1186 = vpop.f32.mrb[0].mxu0
      %v1187 = vadd.f32 %v809, %v1186
      %v1188 = vpop.f32.mrb[0].mxu0
      %v1189 = vadd.f32 %v805, %v1188
      %v1190 = vpop.f32.mrb[0].mxu0
      %v1191 = vadd.f32 %v809, %v1190
      %1192 = vmatprep.mubr.bf16.mxu0 %v934
      %1193 = vmatmul.mubr.bf16.gmra.mrb[0].mxu0 %v658
      %v1194 = vpop.f32.mrb[0].mxu0
      %v1195 = vadd.f32 %v805, %v1194
      %v1196 = vpop.f32.mrb[0].mxu0
      %v1197 = vadd.f32 %v809, %v1196
      %v1198 = vpop.f32.mrb[0].mxu0
      %v1199 = vadd.f32 %v805, %v1198
      %v1200 = vpop.f32.mrb[0].mxu0
      %v1201 = vadd.f32 %v809, %v1200
      %1202 = vmatprep.mubr.bf16.mxu0 %v937
      %1203 = vmatmul.mubr.bf16.gmra.mrb[0].mxu0 %v660
      %v1204 = vpop.f32.mrb[0].mxu0
      %v1205 = vadd.f32 %v805, %v1204
      %v1206 = vpop.f32.mrb[0].mxu0
      %v1207 = vadd.f32 %v809, %v1206
      %v1208 = vpop.f32.mrb[0].mxu0
      %v1209 = vadd.f32 %v805, %v1208
      %v1210 = vpop.f32.mrb[0].mxu0
      %v1211 = vadd.f32 %v809, %v1210
      %1212 = vmatprep.mubr.bf16.mxu0 %v940
      %1213 = vmatmul.mubr.bf16.gmra.mrb[0].mxu0 %v662
      %v1214 = vpop.f32.mrb[0].mxu0
      %v1215 = vadd.f32 %v805, %v1214
      %v1216 = vpop.f32.mrb[0].mxu0
      %v1217 = vadd.f32 %v809, %v1216
      %v1218 = vpop.f32.mrb[0].mxu0
      %v1219 = vadd.f32 %v805, %v1218
      %v1220 = vpop.f32.mrb[0].mxu0
      %v1221 = vadd.f32 %v809, %v1220
      %1222 = vmatprep.mubr.bf16.mxu0 %v943
      %1223 = vmatmul.mubr.bf16.gmra.mrb[0].mxu0 %v664
      %v1224 = vpop.f32.mrb[0].mxu0
      %v1225 = vadd.f32 %v805, %v1224
      %v1226 = vpop.f32.mrb[0].mxu0
      %v1227 = vadd.f32 %v809, %v1226
      %v1228 = vpop.f32.mrb[0].mxu0
      %v1229 = vadd.f32 %v805, %v1228
      %v1230 = vpop.f32.mrb[0].mxu0
      %v1231 = vadd.f32 %v809, %v1230
      %1232 = vmatprep.mubr.bf16.mxu0 %v946
      %1233 = vmatmul.mubr.bf16.gmra.mrb[0].mxu0 %v666
      %v1234 = vpop.f32.mrb[0].mxu0
      %v1235 = vadd.f32 %v805, %v1234
      %v1236 = vpop.f32.mrb[0].mxu0
      %v1237 = vadd.f32 %v809, %v1236
      %v1238 = vpop.f32.mrb[0].mxu0
      %v1239 = vadd.f32 %v805, %v1238
      %v1240 = vpop.f32.mrb[0].mxu0
      %v1241 = vadd.f32 %v809, %v1240
      %1242 = vmatprep.mubr.bf16.mxu0 %v949
      %1243 = vmatmul.mubr.bf16.gmra.mrb[0].mxu0 %v668
      %v1244 = vpop.f32.mrb[0].mxu0
      %v1245 = vadd.f32 %v805, %v1244
      %v1246 = vpop.f32.mrb[0].mxu0
      %v1247 = vadd.f32 %v809, %v1246
      %v1248 = vpop.f32.mrb[0].mxu0
      %v1249 = vadd.f32 %v805, %v1248
      %v1250 = vpop.f32.mrb[0].mxu0
      %v1251 = vadd.f32 %v809, %v1250
      %1252 = vmatprep.mubr.bf16.mxu0 %v952
      %1253 = vmatmul.mubr.bf16.gmra.mrb[0].mxu0 %v670
      %v1254 = vpop.f32.mrb[0].mxu0
      %v1255 = vadd.f32 %v805, %v1254
      %v1256 = vpop.f32.mrb[0].mxu0
      %v1257 = vadd.f32 %v809, %v1256
      %v1258 = vpop.f32.mrb[0].mxu0
      %v1259 = vadd.f32 %v805, %v1258
      %v1260 = vpop.f32.mrb[0].mxu0
      %v1261 = vadd.f32 %v809, %v1260
      %1262 = vmatprep.mubr.bf16.mxu0 %v955
      %1263 = vmatmul.mubr.bf16.gmra.mrb[0].mxu0 %v672
      %v1264 = vpop.f32.mrb[0].mxu0
      %v1265 = vadd.f32 %v805, %v1264
      %v1266 = vpop.f32.mrb[0].mxu0
      %v1267 = vadd.f32 %v809, %v1266
      %v1268 = vpop.f32.mrb[0].mxu0
      %v1269 = vadd.f32 %v805, %v1268
      %v1270 = vpop.f32.mrb[0].mxu0
      %v1271 = vadd.f32 %v809, %v1270
      %1272 = vmatprep.mubr.bf16.mxu0 %v958
      %1273 = vmatmul.mubr.bf16.gmra.mrb[0].mxu0 %v674
      %v1274 = vpop.f32.mrb[0].mxu0
      %v1275 = vadd.f32 %v805, %v1274
      %v1276 = vpop.f32.mrb[0].mxu0
      %v1277 = vadd.f32 %v809, %v1276
      %v1278 = vpop.f32.mrb[0].mxu0
      %v1279 = vadd.f32 %v805, %v1278
      %v1280 = vpop.f32.mrb[0].mxu0
      %v1281 = vadd.f32 %v809, %v1280
      %1282 = vmatprep.mubr.bf16.mxu0 %v961
      %1283 = vmatmul.mubr.bf16.gmra.mrb[0].mxu0 %v676
      %v1284 = vpop.f32.mrb[0].mxu0
      %v1285 = vadd.f32 %v805, %v1284
      %v1286 = vpop.f32.mrb[0].mxu0
      %v1287 = vadd.f32 %v809, %v1286
      %v1288 = vpop.f32.mrb[0].mxu0
      %v1289 = vadd.f32 %v805, %v1288
      %v1290 = vpop.f32.mrb[0].mxu0
      %v1291 = vadd.f32 %v809, %v1290
      %1292 = vmatprep.mubr.bf16.mxu0 %v964
      %1293 = vmatmul.mubr.bf16.gmra.mrb[0].mxu0 %v678
      %v1294 = vpop.f32.mrb[0].mxu0
      %v1295 = vadd.f32 %v805, %v1294
      %v1296 = vpop.f32.mrb[0].mxu0
      %v1297 = vadd.f32 %v809, %v1296
      %v1298 = vpop.f32.mrb[0].mxu0
      %v1299 = vadd.f32 %v805, %v1298
      %v1300 = vpop.f32.mrb[0].mxu0
      %v1301 = vadd.f32 %v809, %v1300
      %1302 = vmatprep.mubr.bf16.mxu0 %v967
      %1303 = vmatmul.mubr.bf16.gmra.mrb[0].mxu0 %v680
      %v1304 = vpop.f32.mrb[0].mxu0
      %v1305 = vadd.f32 %v805, %v1304
      %v1306 = vpop.f32.mrb[0].mxu0
      %v1307 = vadd.f32 %v809, %v1306
      %v1308 = vpop.f32.mrb[0].mxu0
      %v1309 = vadd.f32 %v805, %v1308
      %v1310 = vpop.f32.mrb[0].mxu0
      %v1311 = vadd.f32 %v809, %v1310
      %1312 = vmatprep.mubr.bf16.mxu0 %v970
      %1313 = vmatmul.mubr.bf16.gmra.mrb[0].mxu0 %v682
      %v1314 = vpop.f32.mrb[0].mxu0
      %v1315 = vadd.f32 %v805, %v1314
      %v1316 = vpop.f32.mrb[0].mxu0
      %v1317 = vadd.f32 %v809, %v1316
      %v1318 = vpop.f32.mrb[0].mxu0
      %v1319 = vadd.f32 %v805, %v1318
      %v1320 = vpop.f32.mrb[0].mxu0
      %v1321 = vadd.f32 %v809, %v1320
      %1322 = vmatprep.mubr.bf16.mxu0 %v973
      %1323 = vmatmul.mubr.bf16.gmra.mrb[0].mxu0 %v684
      %v1324 = vpop.f32.mrb[0].mxu0
      %v1325 = vadd.f32 %v805, %v1324
      %v1326 = vpop.f32.mrb[0].mxu0
      %v1327 = vadd.f32 %v809, %v1326
      %v1328 = vpop.f32.mrb[0].mxu0
      %v1329 = vadd.f32 %v805, %v1328
      %v1330 = vpop.f32.mrb[0].mxu0
      %v1331 = vadd.f32 %v809, %v1330
      %1332 = vmatprep.mubr.bf16.mxu0 %v976
      %1333 = vmatmul.mubr.bf16.gmra.mrb[0].mxu0 %v686
      %v1334 = vpop.f32.mrb[0].mxu0
      %v1335 = vadd.f32 %v805, %v1334
      %v1336 = vpop.f32.mrb[0].mxu0
      %v1337 = vadd.f32 %v809, %v1336
      %v1338 = vpop.f32.mrb[0].mxu0
      %v1339 = vadd.f32 %v805, %v1338
      %v1340 = vpop.f32.mrb[0].mxu0
      %v1341 = vadd.f32 %v809, %v1340
      %1342 = vmatprep.mubr.bf16.mxu0 %v979
      %1343 = vmatmul.mubr.bf16.gmra.mrb[0].mxu0 %v688
      %v1344 = vpop.f32.mrb[0].mxu0
      %v1345 = vadd.f32 %v805, %v1344
      %v1346 = vpop.f32.mrb[0].mxu0
      %v1347 = vadd.f32 %v809, %v1346
      %v1348 = vpop.f32.mrb[0].mxu0
      %v1349 = vadd.f32 %v805, %v1348
      %v1350 = vpop.f32.mrb[0].mxu0
      %v1351 = vadd.f32 %v809, %v1350
      %1352 = vmatprep.mubr.bf16.mxu0 %v982
      %1353 = vmatmul.mubr.bf16.gmra.mrb[0].mxu0 %v690
      %v1354 = vpop.f32.mrb[0].mxu0
      %v1355 = vadd.f32 %v805, %v1354
      %v1356 = vpop.f32.mrb[0].mxu0
      %v1357 = vadd.f32 %v809, %v1356
      %v1358 = vpop.f32.mrb[0].mxu0
      %v1359 = vadd.f32 %v805, %v1358
      %v1360 = vpop.f32.mrb[0].mxu0
      %v1361 = vadd.f32 %v809, %v1360
      %1362 = vmatprep.mubr.bf16.mxu0 %v985
      %1363 = vmatmul.mubr.bf16.gmra.mrb[0].mxu0 %v692
      %v1364 = vpop.f32.mrb[0].mxu0
      %v1365 = vadd.f32 %v805, %v1364
      %v1366 = vpop.f32.mrb[0].mxu0
      %v1367 = vadd.f32 %v809, %v1366
      %v1368 = vpop.f32.mrb[0].mxu0
      %v1369 = vadd.f32 %v805, %v1368
      %v1370 = vpop.f32.mrb[0].mxu0
      %v1371 = vadd.f32 %v809, %v1370
      %1372 = vmatprep.mubr.bf16.mxu0 %v988
      %1373 = vmatmul.mubr.bf16.gmra.mrb[0].mxu0 %v694
      %v1374 = vpop.f32.mrb[0].mxu0
      %v1375 = vadd.f32 %v805, %v1374
      %v1376 = vpop.f32.mrb[0].mxu0
      %v1377 = vadd.f32 %v809, %v1376
      %v1378 = vpop.f32.mrb[0].mxu0
      %v1379 = vadd.f32 %v805, %v1378
      %v1380 = vpop.f32.mrb[0].mxu0
      %v1381 = vadd.f32 %v809, %v1380
      %1382 = vmatprep.mubr.bf16.mxu0 %v991
      %1383 = vmatmul.mubr.bf16.gmra.mrb[0].mxu0 %v696
      %v1384 = vpop.f32.mrb[0].mxu0
      %v1385 = vadd.f32 %v805, %v1384
      %v1386 = vpop.f32.mrb[0].mxu0
      %v1387 = vadd.f32 %v809, %v1386
      %v1388 = vpop.f32.mrb[0].mxu0
      %v1389 = vadd.f32 %v805, %v1388
      %v1390 = vpop.f32.mrb[0].mxu0
      %v1391 = vadd.f32 %v809, %v1390
      %1392 = vmatprep.mubr.bf16.mxu0 %v994
      %1393 = vmatmul.mubr.bf16.gmra.mrb[0].mxu0 %v698
      %v1394 = vpop.f32.mrb[0].mxu0
      %v1395 = vadd.f32 %v805, %v1394
      %v1396 = vpop.f32.mrb[0].mxu0
      %v1397 = vadd.f32 %v809, %v1396
      %v1398 = vpop.f32.mrb[0].mxu0
      %v1399 = vadd.f32 %v805, %v1398
      %v1400 = vpop.f32.mrb[0].mxu0
      %v1401 = vadd.f32 %v809, %v1400
      %1402 = vmatprep.mubr.bf16.mxu0 %v997
      %1403 = vmatmul.mubr.bf16.gmra.mrb[0].mxu0 %v700
      %v1404 = vpop.f32.mrb[0].mxu0
      %v1405 = vadd.f32 %v805, %v1404
      %v1406 = vpop.f32.mrb[0].mxu0
      %v1407 = vadd.f32 %v809, %v1406
      %v1408 = vpop.f32.mrb[0].mxu0
      %v1409 = vadd.f32 %v805, %v1408
      %v1410 = vpop.f32.mrb[0].mxu0
      %v1411 = vadd.f32 %v809, %v1410
      %1412 = vmatprep.mubr.bf16.mxu0 %v1000
      %1413 = vmatmul.mubr.bf16.gmra.mrb[0].mxu0 %v702
      %v1414 = vpop.f32.mrb[0].mxu0
      %v1415 = vadd.f32 %v805, %v1414
      %v1416 = vpop.f32.mrb[0].mxu0
      %v1417 = vadd.f32 %v809, %v1416
      %v1418 = vpop.f32.mrb[0].mxu0
      %v1419 = vadd.f32 %v805, %v1418
      %v1420 = vpop.f32.mrb[0].mxu0
      %v1421 = vadd.f32 %v809, %v1420
      %1422 = vmatprep.mubr.bf16.mxu0 %v1003
      %1423 = vmatmul.mubr.bf16.gmra.mrb[0].mxu0 %v704
      %v1424 = vpop.f32.mrb[0].mxu0
      %v1425 = vadd.f32 %v805, %v1424
      %v1426 = vpop.f32.mrb[0].mxu0
      %v1427 = vadd.f32 %v809, %v1426
      %v1428 = vpop.f32.mrb[0].mxu0
      %v1429 = vadd.f32 %v805, %v1428
      %v1430 = vpop.f32.mrb[0].mxu0
      %v1431 = vadd.f32 %v809, %v1430
      %1432 = vmatprep.mubr.bf16.mxu0 %v1006
      %1433 = vmatmul.mubr.bf16.gmra.mrb[0].mxu0 %v706
      %v1434 = vpop.f32.mrb[0].mxu0
      %v1435 = vadd.f32 %v805, %v1434
      %v1436 = vpop.f32.mrb[0].mxu0
      %v1437 = vadd.f32 %v809, %v1436
      %v1438 = vpop.f32.mrb[0].mxu0
      %v1439 = vadd.f32 %v805, %v1438
      %v1440 = vpop.f32.mrb[0].mxu0
      %v1441 = vadd.f32 %v809, %v1440
      %1442 = vmatprep.mubr.bf16.mxu0 %v1009
      %1443 = vmatmul.mubr.bf16.gmra.mrb[0].mxu0 %v708
      %v1444 = vpop.f32.mrb[0].mxu0
      %v1445 = vadd.f32 %v805, %v1444
      %v1446 = vpop.f32.mrb[0].mxu0
      %v1447 = vadd.f32 %v809, %v1446
      %v1448 = vpop.f32.mrb[0].mxu0
      %v1449 = vadd.f32 %v805, %v1448
      %v1450 = vpop.f32.mrb[0].mxu0
      %v1451 = vadd.f32 %v809, %v1450
      %1452 = vmatprep.mubr.bf16.mxu0 %v1012
      %1453 = vmatmul.mubr.bf16.gmra.mrb[0].mxu0 %v710
      %v1454 = vpop.f32.mrb[0].mxu0
      %v1455 = vadd.f32 %v805, %v1454
      %v1456 = vpop.f32.mrb[0].mxu0
      %v1457 = vadd.f32 %v809, %v1456
      %v1458 = vpop.f32.mrb[0].mxu0
      %v1459 = vadd.f32 %v805, %v1458
      %v1460 = vpop.f32.mrb[0].mxu0
      %v1461 = vadd.f32 %v809, %v1460
      %1462 = vmatprep.mubr.bf16.mxu0 %v1015
      %1463 = vmatmul.mubr.bf16.gmra.mrb[0].mxu0 %v712
      %v1464 = vpop.f32.mrb[0].mxu0
      %v1465 = vadd.f32 %v805, %v1464
      %v1466 = vpop.f32.mrb[0].mxu0
      %v1467 = vadd.f32 %v809, %v1466
      %v1468 = vpop.f32.mrb[0].mxu0
      %v1469 = vadd.f32 %v805, %v1468
      %v1470 = vpop.f32.mrb[0].mxu0
      %v1471 = vadd.f32 %v809, %v1470
      %1472 = vmatprep.mubr.bf16.mxu0 %v1018
      %1473 = vmatmul.mubr.bf16.gmra.mrb[0].mxu0 %v714
      %v1474 = vpop.f32.mrb[0].mxu0
      %v1475 = vadd.f32 %v805, %v1474
      %v1476 = vpop.f32.mrb[0].mxu0
      %v1477 = vadd.f32 %v809, %v1476
      %v1478 = vpop.f32.mrb[0].mxu0
      %v1479 = vadd.f32 %v805, %v1478
      %v1480 = vpop.f32.mrb[0].mxu0
      %v1481 = vadd.f32 %v809, %v1480
      %1482 = vmatprep.mubr.bf16.mxu0 %v1021
      %1483 = vmatmul.mubr.bf16.gmra.mrb[0].mxu0 %v716
      %v1484 = vpop.f32.mrb[0].mxu0
      %v1485 = vadd.f32 %v805, %v1484
      %v1486 = vpop.f32.mrb[0].mxu0
      %v1487 = vadd.f32 %v809, %v1486
      %v1488 = vpop.f32.mrb[0].mxu0
      %v1489 = vadd.f32 %v805, %v1488
      %v1490 = vpop.f32.mrb[0].mxu0
      %v1491 = vadd.f32 %v809, %v1490
      %1492 = vmatprep.mubr.bf16.mxu0 %v1024
      %1493 = vmatmul.mubr.bf16.gmra.mrb[0].mxu0 %v718
      %v1494 = vpop.f32.mrb[0].mxu0
      %v1495 = vadd.f32 %v805, %v1494
      %v1496 = vpop.f32.mrb[0].mxu0
      %v1497 = vadd.f32 %v809, %v1496
      %v1498 = vpop.f32.mrb[0].mxu0
      %v1499 = vadd.f32 %v805, %v1498
      %v1500 = vpop.f32.mrb[0].mxu0
      %v1501 = vadd.f32 %v809, %v1500
      %1502 = vmatprep.mubr.bf16.mxu0 %v1027
      %1503 = vmatmul.mubr.bf16.gmra.mrb[0].mxu0 %v720
      %v1504 = vpop.f32.mrb[0].mxu0
      %v1505 = vadd.f32 %v805, %v1504
      %v1506 = vpop.f32.mrb[0].mxu0
      %v1507 = vadd.f32 %v809, %v1506
      %v1508 = vpop.f32.mrb[0].mxu0
      %v1509 = vadd.f32 %v805, %v1508
      %v1510 = vpop.f32.mrb[0].mxu0
      %v1511 = vadd.f32 %v809, %v1510
      %1512 = vmatprep.mubr.bf16.mxu0 %v1030
      %1513 = vmatmul.mubr.bf16.gmra.mrb[0].mxu0 %v722
      %v1514 = vpop.f32.mrb[0].mxu0
      %v1515 = vadd.f32 %v805, %v1514
      %v1516 = vpop.f32.mrb[0].mxu0
      %v1517 = vadd.f32 %v809, %v1516
      %v1518 = vpop.f32.mrb[0].mxu0
      %v1519 = vadd.f32 %v805, %v1518
      %v1520 = vpop.f32.mrb[0].mxu0
      %v1521 = vadd.f32 %v809, %v1520
      %1522 = vmatprep.mubr.bf16.mxu0 %v1033
      %1523 = vmatmul.mubr.bf16.gmra.mrb[0].mxu0 %v724
      %v1524 = vpop.f32.mrb[0].mxu0
      %v1525 = vadd.f32 %v805, %v1524
      %v1526 = vpop.f32.mrb[0].mxu0
      %v1527 = vadd.f32 %v809, %v1526
      %v1528 = vpop.f32.mrb[0].mxu0
      %v1529 = vadd.f32 %v805, %v1528
      %v1530 = vpop.f32.mrb[0].mxu0
      %v1531 = vadd.f32 %v809, %v1530
      %1532 = vmatprep.mubr.bf16.mxu0 %v1036
      %1533 = vmatmul.mubr.bf16.gmra.mrb[0].mxu0 %v726
      %v1534 = vpop.f32.mrb[0].mxu0
      %v1535 = vadd.f32 %v805, %v1534
      %v1536 = vpop.f32.mrb[0].mxu0
      %v1537 = vadd.f32 %v809, %v1536
      %v1538 = vpop.f32.mrb[0].mxu0
      %v1539 = vadd.f32 %v805, %v1538
      %v1540 = vpop.f32.mrb[0].mxu0
      %v1541 = vadd.f32 %v809, %v1540
      %1542 = vmatprep.mubr.bf16.mxu0 %v1039
      %1543 = vmatmul.mubr.bf16.gmra.mrb[0].mxu0 %v728
      %v1544 = vpop.f32.mrb[0].mxu0
      %v1545 = vadd.f32 %v805, %v1544
      %v1546 = vpop.f32.mrb[0].mxu0
      %v1547 = vadd.f32 %v809, %v1546
      %v1548 = vpop.f32.mrb[0].mxu0
      %v1549 = vadd.f32 %v805, %v1548
      %v1550 = vpop.f32.mrb[0].mxu0
      %v1551 = vadd.f32 %v809, %v1550
      %1552 = vmatprep.mubr.bf16.mxu0 %v1042
      %1553 = vmatmul.mubr.bf16.gmra.mrb[0].mxu0 %v730
      %v1554 = vpop.f32.mrb[0].mxu0
      %v1555 = vadd.f32 %v805, %v1554
      %v1556 = vpop.f32.mrb[0].mxu0
      %v1557 = vadd.f32 %v809, %v1556
      %v1558 = vpop.f32.mrb[0].mxu0
      %v1559 = vadd.f32 %v805, %v1558
      %v1560 = vpop.f32.mrb[0].mxu0
      %v1561 = vadd.f32 %v809, %v1560
      %1562 = vmatprep.mubr.bf16.mxu0 %v1045
      %1563 = vmatmul.mubr.bf16.gmra.mrb[0].mxu0 %v732
      %v1564 = vpop.f32.mrb[0].mxu0
      %v1565 = vadd.f32 %v805, %v1564
      %v1566 = vpop.f32.mrb[0].mxu0
      %v1567 = vadd.f32 %v809, %v1566
      %v1568 = vpop.f32.mrb[0].mxu0
      %v1569 = vadd.f32 %v805, %v1568
      %v1570 = vpop.f32.mrb[0].mxu0
      %v1571 = vadd.f32 %v809, %v1570
      %1572 = vmatprep.mubr.bf16.mxu0 %v1048
      %1573 = vmatmul.mubr.bf16.gmra.mrb[0].mxu0 %v734
      %v1574 = vpop.f32.mrb[0].mxu0
      %v1575 = vadd.f32 %v805, %v1574
      %v1576 = vpop.f32.mrb[0].mxu0
      %v1577 = vadd.f32 %v809, %v1576
      %v1578 = vpop.f32.mrb[0].mxu0
      %v1579 = vadd.f32 %v805, %v1578
      %v1580 = vpop.f32.mrb[0].mxu0
      %v1581 = vadd.f32 %v809, %v1580
      %1582 = vmatprep.mubr.bf16.mxu0 %v1051
      %1583 = vmatmul.mubr.bf16.gmra.mrb[0].mxu0 %v736
      %v1584 = vpop.f32.mrb[0].mxu0
      %v1585 = vadd.f32 %v805, %v1584
      %v1586 = vpop.f32.mrb[0].mxu0
      %v1587 = vadd.f32 %v809, %v1586
      %v1588 = vpop.f32.mrb[0].mxu0
      %v1589 = vadd.f32 %v805, %v1588
      %v1590 = vpop.f32.mrb[0].mxu0
      %v1591 = vadd.f32 %v809, %v1590
      %1592 = vmatprep.mubr.bf16.mxu0 %v1054
      %1593 = vmatmul.mubr.bf16.gmra.mrb[0].mxu0 %v738
      %v1594 = vpop.f32.mrb[0].mxu0
      %v1595 = vadd.f32 %v805, %v1594
      %v1596 = vpop.f32.mrb[0].mxu0
      %v1597 = vadd.f32 %v809, %v1596
      %v1598 = vpop.f32.mrb[0].mxu0
      %v1599 = vadd.f32 %v805, %v1598
      %v1600 = vpop.f32.mrb[0].mxu0
      %v1601 = vadd.f32 %v809, %v1600
      %1602 = vmatprep.mubr.bf16.mxu0 %v1057
      %1603 = vmatmul.mubr.bf16.gmra.mrb[0].mxu0 %v740
      %v1604 = vpop.f32.mrb[0].mxu0
      %v1605 = vadd.f32 %v805, %v1604
      %v1606 = vpop.f32.mrb[0].mxu0
      %v1607 = vadd.f32 %v809, %v1606
      %v1608 = vpop.f32.mrb[0].mxu0
      %v1609 = vadd.f32 %v805, %v1608
      %v1610 = vpop.f32.mrb[0].mxu0
      %v1611 = vadd.f32 %v809, %v1610
      %1612 = vmatprep.mubr.bf16.mxu0 %v1060
      %1613 = vmatmul.mubr.bf16.gmra.mrb[0].mxu0 %v742
      %v1614 = vpop.f32.mrb[0].mxu0
      %v1615 = vadd.f32 %v805, %v1614
      %v1616 = vpop.f32.mrb[0].mxu0
      %v1617 = vadd.f32 %v809, %v1616
      %v1618 = vpop.f32.mrb[0].mxu0
      %v1619 = vadd.f32 %v805, %v1618
      %v1620 = vpop.f32.mrb[0].mxu0
      %v1621 = vadd.f32 %v809, %v1620
      %1622 = vmatprep.mubr.bf16.mxu0 %v1063
      %1623 = vmatmul.mubr.bf16.gmra.mrb[0].mxu0 %v744
      %v1624 = vpop.f32.mrb[0].mxu0
      %v1625 = vadd.f32 %v805, %v1624
      %v1626 = vpop.f32.mrb[0].mxu0
      %v1627 = vadd.f32 %v809, %v1626
      %v1628 = vpop.f32.mrb[0].mxu0
      %v1629 = vadd.f32 %v805, %v1628
      %v1630 = vpop.f32.mrb[0].mxu0
      %v1631 = vadd.f32 %v809, %v1630
      %1632 = vmatprep.mubr.bf16.mxu0 %v1066
      %1633 = vmatmul.mubr.bf16.gmra.mrb[0].mxu0 %v746
      %v1634 = vpop.f32.mrb[0].mxu0
      %v1635 = vadd.f32 %v805, %v1634
      %v1636 = vpop.f32.mrb[0].mxu0
      %v1637 = vadd.f32 %v809, %v1636
      %v1638 = vpop.f32.mrb[0].mxu0
      %v1639 = vadd.f32 %v805, %v1638
      %v1640 = vpop.f32.mrb[0].mxu0
      %v1641 = vadd.f32 %v809, %v1640
      %1642 = vmatprep.mubr.bf16.mxu0 %v1069
      %1643 = vmatmul.mubr.bf16.gmra.mrb[0].mxu0 %v748
      %v1644 = vpop.f32.mrb[0].mxu0
      %v1645 = vadd.f32 %v805, %v1644
      %v1646 = vpop.f32.mrb[0].mxu0
      %v1647 = vadd.f32 %v809, %v1646
      %v1648 = vpop.f32.mrb[0].mxu0
      %v1649 = vadd.f32 %v805, %v1648
      %v1650 = vpop.f32.mrb[0].mxu0
      %v1651 = vadd.f32 %v809, %v1650
      %1652 = vmatprep.mubr.bf16.mxu0 %v1072
      %1653 = vmatmul.mubr.bf16.gmra.mrb[0].mxu0 %v750
      %v1654 = vpop.f32.mrb[0].mxu0
      %v1655 = vadd.f32 %v805, %v1654
      %v1656 = vpop.f32.mrb[0].mxu0
      %v1657 = vadd.f32 %v809, %v1656
      %v1658 = vpop.f32.mrb[0].mxu0
      %v1659 = vadd.f32 %v805, %v1658
      %v1660 = vpop.f32.mrb[0].mxu0
      %v1661 = vadd.f32 %v809, %v1660
      %1662 = vmatprep.mubr.bf16.mxu0 %v1075
      %1663 = vmatmul.mubr.bf16.gmra.mrb[0].mxu0 %v752
      %v1664 = vpop.f32.mrb[0].mxu0
      %v1665 = vadd.f32 %v805, %v1664
      %v1666 = vpop.f32.mrb[0].mxu0
      %v1667 = vadd.f32 %v809, %v1666
      %v1668 = vpop.f32.mrb[0].mxu0
      %v1669 = vadd.f32 %v805, %v1668
      %v1670 = vpop.f32.mrb[0].mxu0
      %v1671 = vadd.f32 %v809, %v1670
      %1672 = vmatprep.mubr.bf16.mxu0 %v1078
      %1673 = vmatmul.mubr.bf16.gmra.mrb[0].mxu0 %v754
      %v1674 = vpop.f32.mrb[0].mxu0
      %v1675 = vadd.f32 %v805, %v1674
      %v1676 = vpop.f32.mrb[0].mxu0
      %v1677 = vadd.f32 %v809, %v1676
      %v1678 = vpop.f32.mrb[0].mxu0
      %v1679 = vadd.f32 %v805, %v1678
      %v1680 = vpop.f32.mrb[0].mxu0
      %v1681 = vadd.f32 %v809, %v1680
      %1682 = vmatprep.mubr.bf16.mxu0 %v1081
      %1683 = vmatmul.mubr.bf16.gmra.mrb[0].mxu0 %v756
      %v1684 = vpop.f32.mrb[0].mxu0
      %v1685 = vadd.f32 %v805, %v1684
      %v1686 = vpop.f32.mrb[0].mxu0
      %v1687 = vadd.f32 %v809, %v1686
      %v1688 = vpop.f32.mrb[0].mxu0
      %v1689 = vadd.f32 %v805, %v1688
      %v1690 = vpop.f32.mrb[0].mxu0
      %v1691 = vadd.f32 %v809, %v1690
      %1692 = vmatprep.mubr.bf16.mxu0 %v1084
      %1693 = vmatmul.mubr.bf16.gmra.mrb[0].mxu0 %v758
      %v1694 = vpop.f32.mrb[0].mxu0
      %v1695 = vadd.f32 %v805, %v1694
      %v1696 = vpop.f32.mrb[0].mxu0
      %v1697 = vadd.f32 %v809, %v1696
      %v1698 = vpop.f32.mrb[0].mxu0
      %v1699 = vadd.f32 %v805, %v1698
      %v1700 = vpop.f32.mrb[0].mxu0
      %v1701 = vadd.f32 %v809, %v1700
      %1702 = vmatprep.mubr.bf16.mxu0 %v1087
      %1703 = vmatmul.mubr.bf16.gmra.mrb[0].mxu0 %v760
      %v1704 = vpop.f32.mrb[0].mxu0
      %v1705 = vadd.f32 %v805, %v1704
      %v1706 = vpop.f32.mrb[0].mxu0
      %v1707 = vadd.f32 %v809, %v1706
      %v1708 = vpop.f32.mrb[0].mxu0
      %v1709 = vadd.f32 %v805, %v1708
      %v1710 = vpop.f32.mrb[0].mxu0
      %v1711 = vadd.f32 %v809, %v1710
      %1712 = vmatprep.mubr.bf16.mxu0 %v1090
      %1713 = vmatmul.mubr.bf16.gmra.mrb[0].mxu0 %v762
      %v1714 = vpop.f32.mrb[0].mxu0
      %v1715 = vadd.f32 %v805, %v1714
      %v1716 = vpop.f32.mrb[0].mxu0
      %v1717 = vadd.f32 %v809, %v1716
      %v1718 = vpop.f32.mrb[0].mxu0
      %v1719 = vadd.f32 %v805, %v1718
      %v1720 = vpop.f32.mrb[0].mxu0
      %v1721 = vadd.f32 %v809, %v1720
      %1722 = vmatprep.mubr.bf16.mxu0 %v1093
      %1723 = vmatmul.mubr.bf16.gmra.mrb[0].mxu0 %v764
      %v1724 = vpop.f32.mrb[0].mxu0
      %v1725 = vadd.f32 %v805, %v1724
      %v1726 = vpop.f32.mrb[0].mxu0
      %v1727 = vadd.f32 %v809, %v1726
      %v1728 = vpop.f32.mrb[0].mxu0
      %v1729 = vadd.f32 %v805, %v1728
      %v1730 = vpop.f32.mrb[0].mxu0
      %v1731 = vadd.f32 %v809, %v1730
      %1732 = vmatprep.mubr.bf16.mxu0 %v1096
      %1733 = vmatmul.mubr.bf16.gmra.mrb[0].mxu0 %v766
      %v1734 = vpop.f32.mrb[0].mxu0
      %v1735 = vadd.f32 %v805, %v1734
      %v1736 = vpop.f32.mrb[0].mxu0
      %v1737 = vadd.f32 %v809, %v1736
      %v1738 = vpop.f32.mrb[0].mxu0
      %v1739 = vadd.f32 %v805, %v1738
      %v1740 = vpop.f32.mrb[0].mxu0
      %v1741 = vadd.f32 %v809, %v1740
      %1742 = vmatprep.mubr.bf16.mxu0 %v1099
      %1743 = vmatmul.mubr.bf16.gmra.mrb[0].mxu0 %v768
      %v1744 = vpop.f32.mrb[0].mxu0
      %v1745 = vadd.f32 %v805, %v1744
      %v1746 = vpop.f32.mrb[0].mxu0
      %v1747 = vadd.f32 %v809, %v1746
      %v1748 = vpop.f32.mrb[0].mxu0
      %v1749 = vadd.f32 %v805, %v1748
      %v1750 = vpop.f32.mrb[0].mxu0
      %v1751 = vadd.f32 %v809, %v1750
      %1752 = vmatprep.mubr.bf16.mxu0 %v1102
      %1753 = vmatmul.mubr.bf16.gmra.mrb[0].mxu0 %v770
      %v1754 = vpop.f32.mrb[0].mxu0
      %v1755 = vadd.f32 %v805, %v1754
      %v1756 = vpop.f32.mrb[0].mxu0
      %v1757 = vadd.f32 %v809, %v1756
      %v1758 = vpop.f32.mrb[0].mxu0
      %v1759 = vadd.f32 %v805, %v1758
      %v1760 = vpop.f32.mrb[0].mxu0
      %v1761 = vadd.f32 %v809, %v1760
      %1762 = vmatprep.mubr.bf16.mxu0 %v1105
      %1763 = vmatmul.mubr.bf16.gmra.mrb[0].mxu0 %v772
      %v1764 = vpop.f32.mrb[0].mxu0
      %v1765 = vadd.f32 %v805, %v1764
      %v1766 = vpop.f32.mrb[0].mxu0
      %v1767 = vadd.f32 %v809, %v1766
      %v1768 = vpop.f32.mrb[0].mxu0
      %v1769 = vadd.f32 %v805, %v1768
      %v1770 = vpop.f32.mrb[0].mxu0
      %v1771 = vadd.f32 %v809, %v1770
      %1772 = vmatprep.mubr.bf16.mxu0 %v1108
      %1773 = vmatmul.mubr.bf16.gmra.mrb[0].mxu0 %v774
      %v1774 = vpop.f32.mrb[0].mxu0
      %v1775 = vadd.f32 %v805, %v1774
      %v1776 = vpop.f32.mrb[0].mxu0
      %v1777 = vadd.f32 %v809, %v1776
      %v1778 = vpop.f32.mrb[0].mxu0
      %v1779 = vadd.f32 %v805, %v1778
      %v1780 = vpop.f32.mrb[0].mxu0
      %v1781 = vadd.f32 %v809, %v1780
      %1782 = vmatprep.mubr.bf16.mxu0 %v1111
      %1783 = vmatmul.mubr.bf16.gmra.mrb[0].mxu0 %v776
      %v1784 = vpop.f32.mrb[0].mxu0
      %v1785 = vadd.f32 %v805, %v1784
      %v1786 = vpop.f32.mrb[0].mxu0
      %v1787 = vadd.f32 %v809, %v1786
      %v1788 = vpop.f32.mrb[0].mxu0
      %v1789 = vadd.f32 %v805, %v1788
      %v1790 = vpop.f32.mrb[0].mxu0
      %v1791 = vadd.f32 %v809, %v1790
      %1792 = vdwg.mxu0
      %v1793 = vmax.f32 %v1155, 0.0
      %v1794 = vmax.f32 %v1157, 0.0
      %v1795 = vmax.f32 %v1159, 0.0
      %v1796 = vmax.f32 %v1161, 0.0
      %v1797 = vmax.f32 %v1165, 0.0
      %v1798 = vmax.f32 %v1167, 0.0
      %v1799 = vmax.f32 %v1169, 0.0
      %v1800 = vmax.f32 %v1171, 0.0
      %v1801 = vmax.f32 %v1175, 0.0
      %v1802 = vmax.f32 %v1177, 0.0
      %v1803 = vmax.f32 %v1179, 0.0
      %v1804 = vmax.f32 %v1181, 0.0
      %v1805 = vmax.f32 %v1185, 0.0
      %v1806 = vmax.f32 %v1187, 0.0
      %v1807 = vmax.f32 %v1189, 0.0
      %v1808 = vmax.f32 %v1191, 0.0
      %v1809 = vmax.f32 %v1195, 0.0
      %v1810 = vmax.f32 %v1197, 0.0
      %v1811 = vmax.f32 %v1199, 0.0
      %v1812 = vmax.f32 %v1201, 0.0
      %v1813 = vmax.f32 %v1205, 0.0
      %v1814 = vmax.f32 %v1207, 0.0
      %v1815 = vmax.f32 %v1209, 0.0
      %v1816 = vmax.f32 %v1211, 0.0
      %v1817 = vmax.f32 %v1215, 0.0
      %v1818 = vmax.f32 %v1217, 0.0
      %v1819 = vmax.f32 %v1219, 0.0
      %v1820 = vmax.f32 %v1221, 0.0
      %v1821 = vmax.f32 %v1225, 0.0
      %v1822 = vmax.f32 %v1227, 0.0
      %v1823 = vmax.f32 %v1229, 0.0
      %v1824 = vmax.f32 %v1231, 0.0
      %v1825 = vmax.f32 %v1235, 0.0
      %v1826 = vmax.f32 %v1237, 0.0
      %v1827 = vmax.f32 %v1239, 0.0
      %v1828 = vmax.f32 %v1241, 0.0
      %v1829 = vmax.f32 %v1245, 0.0
      %v1830 = vmax.f32 %v1247, 0.0
      %v1831 = vmax.f32 %v1249, 0.0
      %v1832 = vmax.f32 %v1251, 0.0
      %v1833 = vmax.f32 %v1255, 0.0
      %v1834 = vmax.f32 %v1257, 0.0
      %v1835 = vmax.f32 %v1259, 0.0
      %v1836 = vmax.f32 %v1261, 0.0
      %v1837 = vmax.f32 %v1265, 0.0
      %v1838 = vmax.f32 %v1267, 0.0
      %v1839 = vmax.f32 %v1269, 0.0
      %v1840 = vmax.f32 %v1271, 0.0
      %v1841 = vmax.f32 %v1275, 0.0
      %v1842 = vmax.f32 %v1277, 0.0
      %v1843 = vmax.f32 %v1279, 0.0
      %v1844 = vmax.f32 %v1281, 0.0
      %v1845 = vmax.f32 %v1285, 0.0
      %v1846 = vmax.f32 %v1287, 0.0
      %v1847 = vmax.f32 %v1289, 0.0
      %v1848 = vmax.f32 %v1291, 0.0
      %v1849 = vmax.f32 %v1295, 0.0
      %v1850 = vmax.f32 %v1297, 0.0
      %v1851 = vmax.f32 %v1299, 0.0
      %v1852 = vmax.f32 %v1301, 0.0
      %v1853 = vmax.f32 %v1305, 0.0
      %v1854 = vmax.f32 %v1307, 0.0
      %v1855 = vmax.f32 %v1309, 0.0
      %v1856 = vmax.f32 %v1311, 0.0
      %v1857 = vmax.f32 %v1315, 0.0
      %v1858 = vmax.f32 %v1317, 0.0
      %v1859 = vmax.f32 %v1319, 0.0
      %v1860 = vmax.f32 %v1321, 0.0
      %v1861 = vmax.f32 %v1325, 0.0
      %v1862 = vmax.f32 %v1327, 0.0
      %v1863 = vmax.f32 %v1329, 0.0
      %v1864 = vmax.f32 %v1331, 0.0
      %v1865 = vmax.f32 %v1335, 0.0
      %v1866 = vmax.f32 %v1337, 0.0
      %v1867 = vmax.f32 %v1339, 0.0
      %v1868 = vmax.f32 %v1341, 0.0
      %v1869 = vmax.f32 %v1345, 0.0
      %v1870 = vmax.f32 %v1347, 0.0
      %v1871 = vmax.f32 %v1349, 0.0
      %v1872 = vmax.f32 %v1351, 0.0
      %v1873 = vmax.f32 %v1355, 0.0
      %v1874 = vmax.f32 %v1357, 0.0
      %v1875 = vmax.f32 %v1359, 0.0
      %v1876 = vmax.f32 %v1361, 0.0
      %v1877 = vmax.f32 %v1365, 0.0
      %v1878 = vmax.f32 %v1367, 0.0
      %v1879 = vmax.f32 %v1369, 0.0
      %v1880 = vmax.f32 %v1371, 0.0
      %v1881 = vmax.f32 %v1375, 0.0
      %v1882 = vmax.f32 %v1377, 0.0
      %v1883 = vmax.f32 %v1379, 0.0
      %v1884 = vmax.f32 %v1381, 0.0
      %v1885 = vmax.f32 %v1385, 0.0
      %v1886 = vmax.f32 %v1387, 0.0
      %v1887 = vmax.f32 %v1389, 0.0
      %v1888 = vmax.f32 %v1391, 0.0
      %v1889 = vmax.f32 %v1395, 0.0
      %v1890 = vmax.f32 %v1397, 0.0
      %v1891 = vmax.f32 %v1399, 0.0
      %v1892 = vmax.f32 %v1401, 0.0
      %v1893 = vmax.f32 %v1405, 0.0
      %v1894 = vmax.f32 %v1407, 0.0
      %v1895 = vmax.f32 %v1409, 0.0
      %v1896 = vmax.f32 %v1411, 0.0
      %v1897 = vmax.f32 %v1415, 0.0
      %v1898 = vmax.f32 %v1417, 0.0
      %v1899 = vmax.f32 %v1419, 0.0
      %v1900 = vmax.f32 %v1421, 0.0
      %v1901 = vmax.f32 %v1425, 0.0
      %v1902 = vmax.f32 %v1427, 0.0
      %v1903 = vmax.f32 %v1429, 0.0
      %v1904 = vmax.f32 %v1431, 0.0
      %v1905 = vmax.f32 %v1435, 0.0
      %v1906 = vmax.f32 %v1437, 0.0
      %v1907 = vmax.f32 %v1439, 0.0
      %v1908 = vmax.f32 %v1441, 0.0
      %v1909 = vmax.f32 %v1445, 0.0
      %v1910 = vmax.f32 %v1447, 0.0
      %v1911 = vmax.f32 %v1449, 0.0
      %v1912 = vmax.f32 %v1451, 0.0
      %v1913 = vmax.f32 %v1455, 0.0
      %v1914 = vmax.f32 %v1457, 0.0
      %v1915 = vmax.f32 %v1459, 0.0
      %v1916 = vmax.f32 %v1461, 0.0
      %v1917 = vmax.f32 %v1465, 0.0
      %v1918 = vmax.f32 %v1467, 0.0
      %v1919 = vmax.f32 %v1469, 0.0
      %v1920 = vmax.f32 %v1471, 0.0
      %v1921 = vmax.f32 %v1475, 0.0
      %v1922 = vmax.f32 %v1477, 0.0
      %v1923 = vmax.f32 %v1479, 0.0
      %v1924 = vmax.f32 %v1481, 0.0
      %v1925 = vmax.f32 %v1485, 0.0
      %v1926 = vmax.f32 %v1487, 0.0
      %v1927 = vmax.f32 %v1489, 0.0
      %v1928 = vmax.f32 %v1491, 0.0
      %v1929 = vmax.f32 %v1495, 0.0
      %v1930 = vmax.f32 %v1497, 0.0
      %v1931 = vmax.f32 %v1499, 0.0
      %v1932 = vmax.f32 %v1501, 0.0
      %v1933 = vmax.f32 %v1505, 0.0
      %v1934 = vmax.f32 %v1507, 0.0
      %v1935 = vmax.f32 %v1509, 0.0
      %v1936 = vmax.f32 %v1511, 0.0
      %v1937 = vmax.f32 %v1515, 0.0
      %v1938 = vmax.f32 %v1517, 0.0
      %v1939 = vmax.f32 %v1519, 0.0
      %v1940 = vmax.f32 %v1521, 0.0
      %v1941 = vmax.f32 %v1525, 0.0
      %v1942 = vmax.f32 %v1527, 0.0
      %v1943 = vmax.f32 %v1529, 0.0
      %v1944 = vmax.f32 %v1531, 0.0
      %v1945 = vmax.f32 %v1535, 0.0
      %v1946 = vmax.f32 %v1537, 0.0
      %v1947 = vmax.f32 %v1539, 0.0
      %v1948 = vmax.f32 %v1541, 0.0
      %v1949 = vmax.f32 %v1545, 0.0
      %v1950 = vmax.f32 %v1547, 0.0
      %v1951 = vmax.f32 %v1549, 0.0
      %v1952 = vmax.f32 %v1551, 0.0
      %v1953 = vmax.f32 %v1555, 0.0
      %v1954 = vmax.f32 %v1557, 0.0
      %v1955 = vmax.f32 %v1559, 0.0
      %v1956 = vmax.f32 %v1561, 0.0
      %v1957 = vmax.f32 %v1565, 0.0
      %v1958 = vmax.f32 %v1567, 0.0
      %v1959 = vmax.f32 %v1569, 0.0
      %v1960 = vmax.f32 %v1571, 0.0
      %v1961 = vmax.f32 %v1575, 0.0
      %v1962 = vmax.f32 %v1577, 0.0
      %v1963 = vmax.f32 %v1579, 0.0
      %v1964 = vmax.f32 %v1581, 0.0
      %v1965 = vmax.f32 %v1585, 0.0
      %v1966 = vmax.f32 %v1587, 0.0
      %v1967 = vmax.f32 %v1589, 0.0
      %v1968 = vmax.f32 %v1591, 0.0
      %v1969 = vmax.f32 %v1595, 0.0
      %v1970 = vmax.f32 %v1597, 0.0
      %v1971 = vmax.f32 %v1599, 0.0
      %v1972 = vmax.f32 %v1601, 0.0
      %v1973 = vmax.f32 %v1605, 0.0
      %v1974 = vmax.f32 %v1607, 0.0
      %v1975 = vmax.f32 %v1609, 0.0
      %v1976 = vmax.f32 %v1611, 0.0
      %v1977 = vmax.f32 %v1615, 0.0
      %v1978 = vmax.f32 %v1617, 0.0
      %v1979 = vmax.f32 %v1619, 0.0
      %v1980 = vmax.f32 %v1621, 0.0
      %v1981 = vmax.f32 %v1625, 0.0
      %v1982 = vmax.f32 %v1627, 0.0
      %v1983 = vmax.f32 %v1629, 0.0
      %v1984 = vmax.f32 %v1631, 0.0
      %v1985 = vmax.f32 %v1635, 0.0
      %v1986 = vmax.f32 %v1637, 0.0
      %v1987 = vmax.f32 %v1639, 0.0
      %v1988 = vmax.f32 %v1641, 0.0
      %v1989 = vmax.f32 %v1645, 0.0
      %v1990 = vmax.f32 %v1647, 0.0
      %v1991 = vmax.f32 %v1649, 0.0
      %v1992 = vmax.f32 %v1651, 0.0
      %v1993 = vmax.f32 %v1655, 0.0
      %v1994 = vmax.f32 %v1657, 0.0
      %v1995 = vmax.f32 %v1659, 0.0
      %v1996 = vmax.f32 %v1661, 0.0
      %v1997 = vmax.f32 %v1665, 0.0
      %v1998 = vmax.f32 %v1667, 0.0
      %v1999 = vmax.f32 %v1669, 0.0
      %v2000 = vmax.f32 %v1671, 0.0
      %v2001 = vmax.f32 %v1675, 0.0
      %v2002 = vmax.f32 %v1677, 0.0
      %v2003 = vmax.f32 %v1679, 0.0
      %v2004 = vmax.f32 %v1681, 0.0
      %v2005 = vmax.f32 %v1685, 0.0
      %v2006 = vmax.f32 %v1687, 0.0
      %v2007 = vmax.f32 %v1689, 0.0
      %v2008 = vmax.f32 %v1691, 0.0
      %v2009 = vmax.f32 %v1695, 0.0
      %v2010 = vmax.f32 %v1697, 0.0
      %v2011 = vmax.f32 %v1699, 0.0
      %v2012 = vmax.f32 %v1701, 0.0
      %v2013 = vmax.f32 %v1705, 0.0
      %v2014 = vmax.f32 %v1707, 0.0
      %v2015 = vmax.f32 %v1709, 0.0
      %v2016 = vmax.f32 %v1711, 0.0
      %v2017 = vmax.f32 %v1715, 0.0
      %v2018 = vmax.f32 %v1717, 0.0
      %v2019 = vmax.f32 %v1719, 0.0
      %v2020 = vmax.f32 %v1721, 0.0
      %v2021 = vmax.f32 %v1725, 0.0
      %v2022 = vmax.f32 %v1727, 0.0
      %v2023 = vmax.f32 %v1729, 0.0
      %v2024 = vmax.f32 %v1731, 0.0
      %v2025 = vmax.f32 %v1735, 0.0
      %v2026 = vmax.f32 %v1737, 0.0
      %v2027 = vmax.f32 %v1739, 0.0
      %v2028 = vmax.f32 %v1741, 0.0
      %v2029 = vmax.f32 %v1745, 0.0
      %v2030 = vmax.f32 %v1747, 0.0
      %v2031 = vmax.f32 %v1749, 0.0
      %v2032 = vmax.f32 %v1751, 0.0
      %v2033 = vmax.f32 %v1755, 0.0
      %v2034 = vmax.f32 %v1757, 0.0
      %v2035 = vmax.f32 %v1759, 0.0
      %v2036 = vmax.f32 %v1761, 0.0
      %v2037 = vmax.f32 %v1765, 0.0
      %v2038 = vmax.f32 %v1767, 0.0
      %v2039 = vmax.f32 %v1769, 0.0
      %v2040 = vmax.f32 %v1771, 0.0
      %v2041 = vmax.f32 %v1775, 0.0
      %v2042 = vmax.f32 %v1777, 0.0
      %v2043 = vmax.f32 %v1779, 0.0
      %v2044 = vmax.f32 %v1781, 0.0
      %v2045 = vmax.f32 %v1785, 0.0
      %v2046 = vmax.f32 %v1787, 0.0
      %v2047 = vmax.f32 %v1789, 0.0
      %v2048 = vmax.f32 %v1791, 0.0
      %v2049 = vpack.c.bf16 %v1795, %v1793
      %v2050 = vpack.c.bf16 %v1796, %v1794
      %v2051 = vpack.c.bf16 %v1799, %v1797
      %v2052 = vpack.c.bf16 %v1800, %v1798
      %v2053 = vpack.c.bf16 %v1803, %v1801
      %v2054 = vpack.c.bf16 %v1804, %v1802
      %v2055 = vpack.c.bf16 %v1807, %v1805
      %v2056 = vpack.c.bf16 %v1808, %v1806
      %v2057 = vpack.c.bf16 %v1811, %v1809
      %v2058 = vpack.c.bf16 %v1812, %v1810
      %v2059 = vpack.c.bf16 %v1815, %v1813
      %v2060 = vpack.c.bf16 %v1816, %v1814
      %v2061 = vpack.c.bf16 %v1819, %v1817
      %v2062 = vpack.c.bf16 %v1820, %v1818
      %v2063 = vpack.c.bf16 %v1823, %v1821
      %v2064 = vpack.c.bf16 %v1824, %v1822
      %v2065 = vpack.c.bf16 %v1827, %v1825
      %v2066 = vpack.c.bf16 %v1828, %v1826
      %v2067 = vpack.c.bf16 %v1831, %v1829
      %v2068 = vpack.c.bf16 %v1832, %v1830
      %v2069 = vpack.c.bf16 %v1835, %v1833
      %v2070 = vpack.c.bf16 %v1836, %v1834
      %v2071 = vpack.c.bf16 %v1839, %v1837
      %v2072 = vpack.c.bf16 %v1840, %v1838
      %v2073 = vpack.c.bf16 %v1843, %v1841
      %v2074 = vpack.c.bf16 %v1844, %v1842
      %v2075 = vpack.c.bf16 %v1847, %v1845
      %v2076 = vpack.c.bf16 %v1848, %v1846
      %v2077 = vpack.c.bf16 %v1851, %v1849
      %v2078 = vpack.c.bf16 %v1852, %v1850
      %v2079 = vpack.c.bf16 %v1855, %v1853
      %v2080 = vpack.c.bf16 %v1856, %v1854
      %v2081 = vpack.c.bf16 %v1859, %v1857
      %v2082 = vpack.c.bf16 %v1860, %v1858
      %v2083 = vpack.c.bf16 %v1863, %v1861
      %v2084 = vpack.c.bf16 %v1864, %v1862
      %v2085 = vpack.c.bf16 %v1867, %v1865
      %v2086 = vpack.c.bf16 %v1868, %v1866
      %v2087 = vpack.c.bf16 %v1871, %v1869
      %v2088 = vpack.c.bf16 %v1872, %v1870
      %v2089 = vpack.c.bf16 %v1875, %v1873
      %v2090 = vpack.c.bf16 %v1876, %v1874
      %v2091 = vpack.c.bf16 %v1879, %v1877
      %v2092 = vpack.c.bf16 %v1880, %v1878
      %v2093 = vpack.c.bf16 %v1883, %v1881
      %v2094 = vpack.c.bf16 %v1884, %v1882
      %v2095 = vpack.c.bf16 %v1887, %v1885
      %v2096 = vpack.c.bf16 %v1888, %v1886
      %v2097 = vpack.c.bf16 %v1891, %v1889
      %v2098 = vpack.c.bf16 %v1892, %v1890
      %v2099 = vpack.c.bf16 %v1895, %v1893
      %v2100 = vpack.c.bf16 %v1896, %v1894
      %v2101 = vpack.c.bf16 %v1899, %v1897
      %v2102 = vpack.c.bf16 %v1900, %v1898
      %v2103 = vpack.c.bf16 %v1903, %v1901
      %v2104 = vpack.c.bf16 %v1904, %v1902
      %v2105 = vpack.c.bf16 %v1907, %v1905
      %v2106 = vpack.c.bf16 %v1908, %v1906
      %v2107 = vpack.c.bf16 %v1911, %v1909
      %v2108 = vpack.c.bf16 %v1912, %v1910
      %v2109 = vpack.c.bf16 %v1915, %v1913
      %v2110 = vpack.c.bf16 %v1916, %v1914
      %v2111 = vpack.c.bf16 %v1919, %v1917
      %v2112 = vpack.c.bf16 %v1920, %v1918
      %v2113 = vpack.c.bf16 %v1923, %v1921
      %v2114 = vpack.c.bf16 %v1924, %v1922
      %v2115 = vpack.c.bf16 %v1927, %v1925
      %v2116 = vpack.c.bf16 %v1928, %v1926
      %v2117 = vpack.c.bf16 %v1931, %v1929
      %v2118 = vpack.c.bf16 %v1932, %v1930
      %v2119 = vpack.c.bf16 %v1935, %v1933
      %v2120 = vpack.c.bf16 %v1936, %v1934
      %v2121 = vpack.c.bf16 %v1939, %v1937
      %v2122 = vpack.c.bf16 %v1940, %v1938
      %v2123 = vpack.c.bf16 %v1943, %v1941
      %v2124 = vpack.c.bf16 %v1944, %v1942
      %v2125 = vpack.c.bf16 %v1947, %v1945
      %v2126 = vpack.c.bf16 %v1948, %v1946
      %v2127 = vpack.c.bf16 %v1951, %v1949
      %v2128 = vpack.c.bf16 %v1952, %v1950
      %v2129 = vpack.c.bf16 %v1955, %v1953
      %v2130 = vpack.c.bf16 %v1956, %v1954
      %v2131 = vpack.c.bf16 %v1959, %v1957
      %v2132 = vpack.c.bf16 %v1960, %v1958
      %v2133 = vpack.c.bf16 %v1963, %v1961
      %v2134 = vpack.c.bf16 %v1964, %v1962
      %v2135 = vpack.c.bf16 %v1967, %v1965
      %v2136 = vpack.c.bf16 %v1968, %v1966
      %v2137 = vpack.c.bf16 %v1971, %v1969
      %v2138 = vpack.c.bf16 %v1972, %v1970
      %v2139 = vpack.c.bf16 %v1975, %v1973
      %v2140 = vpack.c.bf16 %v1976, %v1974
      %v2141 = vpack.c.bf16 %v1979, %v1977
      %v2142 = vpack.c.bf16 %v1980, %v1978
      %v2143 = vpack.c.bf16 %v1983, %v1981
      %v2144 = vpack.c.bf16 %v1984, %v1982
      %v2145 = vpack.c.bf16 %v1987, %v1985
      %v2146 = vpack.c.bf16 %v1988, %v1986
      %v2147 = vpack.c.bf16 %v1991, %v1989
      %v2148 = vpack.c.bf16 %v1992, %v1990
      %v2149 = vpack.c.bf16 %v1995, %v1993
      %v2150 = vpack.c.bf16 %v1996, %v1994
      %v2151 = vpack.c.bf16 %v1999, %v1997
      %v2152 = vpack.c.bf16 %v2000, %v1998
      %v2153 = vpack.c.bf16 %v2003, %v2001
      %v2154 = vpack.c.bf16 %v2004, %v2002
      %v2155 = vpack.c.bf16 %v2007, %v2005
      %v2156 = vpack.c.bf16 %v2008, %v2006
      %v2157 = vpack.c.bf16 %v2011, %v2009
      %v2158 = vpack.c.bf16 %v2012, %v2010
      %v2159 = vpack.c.bf16 %v2015, %v2013
      %v2160 = vpack.c.bf16 %v2016, %v2014
      %v2161 = vpack.c.bf16 %v2019, %v2017
      %v2162 = vpack.c.bf16 %v2020, %v2018
      %v2163 = vpack.c.bf16 %v2023, %v2021
      %v2164 = vpack.c.bf16 %v2024, %v2022
      %v2165 = vpack.c.bf16 %v2027, %v2025
      %v2166 = vpack.c.bf16 %v2028, %v2026
      %v2167 = vpack.c.bf16 %v2031, %v2029
      %v2168 = vpack.c.bf16 %v2032, %v2030
      %v2169 = vpack.c.bf16 %v2035, %v2033
      %v2170 = vpack.c.bf16 %v2036, %v2034
      %v2171 = vpack.c.bf16 %v2039, %v2037
      %v2172 = vpack.c.bf16 %v2040, %v2038
      %v2173 = vpack.c.bf16 %v2043, %v2041
      %v2174 = vpack.c.bf16 %v2044, %v2042
      %v2175 = vpack.c.bf16 %v2047, %v2045
      %v2176 = vpack.c.bf16 %v2048, %v2046
      %v2177 = vld [vmem:[%s3] sm:$0xff]
      %v2178 = vld [vmem:[%s3 + $0x8] sm:$0xff]
      %v2179 = vld [vmem:[%s3 + $0x10] sm:$0xff]
      %v2180 = vld [vmem:[%s3 + $0x18] sm:$0xff]
      %v2181 = vld [vmem:[%s3 + $0x20] sm:$0xff]
      %v2182 = vld [vmem:[%s3 + $0x28] sm:$0xff]
      %v2183 = vld [vmem:[%s3 + $0x30] sm:$0xff]
      %v2184 = vld [vmem:[%s3 + $0x38] sm:$0xff]
      %v2185 = vld [vmem:[%s3 + $0x40] sm:$0xff]
      %v2186 = vld [vmem:[%s3 + $0x48] sm:$0xff]
      %v2187 = vld [vmem:[%s3 + $0x50] sm:$0xff]
      %v2188 = vld [vmem:[%s3 + $0x58] sm:$0xff]
      %v2189 = vld [vmem:[%s3 + $0x60] sm:$0xff]
      %v2190 = vld [vmem:[%s3 + $0x68] sm:$0xff]
      %v2191 = vld [vmem:[%s3 + $0x70] sm:$0xff]
      %v2192 = vld [vmem:[%s3 + $0x78] sm:$0xff]
      %v2193 = vld [vmem:[%s3 + $0x80] sm:$0xff]
      %v2194 = vld [vmem:[%s3 + $0x88] sm:$0xff]
      %v2195 = vld [vmem:[%s3 + $0x90] sm:$0xff]
      %v2196 = vld [vmem:[%s3 + $0x98] sm:$0xff]
      %v2197 = vld [vmem:[%s3 + $0xa0] sm:$0xff]
      %v2198 = vld [vmem:[%s3 + $0xa8] sm:$0xff]
      %v2199 = vld [vmem:[%s3 + $0xb0] sm:$0xff]
      %v2200 = vld [vmem:[%s3 + $0xb8] sm:$0xff]
      %v2201 = vld [vmem:[%s3 + $0xc0] sm:$0xff]
      %v2202 = vld [vmem:[%s3 + $0xc8] sm:$0xff]
      %v2203 = vld [vmem:[%s3 + $0xd0] sm:$0xff]
      %v2204 = vld [vmem:[%s3 + $0xd8] sm:$0xff]
      %v2205 = vld [vmem:[%s3 + $0xe0] sm:$0xff]
      %v2206 = vld [vmem:[%s3 + $0xe8] sm:$0xff]
      %v2207 = vld [vmem:[%s3 + $0xf0] sm:$0xff]
      %v2208 = vld [vmem:[%s3 + $0xf8] sm:$0xff]
      %v2209 = vld [vmem:[%s4] sm:$0x3]
      %v2211 = vlaneseq
      %v2212 = vshrl.u32 %v2211, 7
      %v2213 = vsub.s32 0, %v2212
      %v2214 = vrot.slane %v2209, %v2213
      %v2215 = vlaneseq
      %v2216 = vshrl.u32 %v2215, 7
      %v2217 = vsub.s32 1, %v2216
      %v2218 = vrot.slane %v2209, %v2217
      %v2253 = vunpack.c.l.b16 %v2177
      %v2254 = vunpack.c.h.b16 %v2177
      %v2255 = vunpack.c.l.b16 %v2178
      %v2256 = vunpack.c.h.b16 %v2178
      %v2257 = vunpack.c.l.b16 %v2179
      %v2258 = vunpack.c.h.b16 %v2179
      %v2259 = vunpack.c.l.b16 %v2180
      %v2260 = vunpack.c.h.b16 %v2180
      %v2261 = vunpack.c.l.b16 %v2181
      %v2262 = vunpack.c.h.b16 %v2181
      %v2263 = vunpack.c.l.b16 %v2182
      %v2264 = vunpack.c.h.b16 %v2182
      %v2265 = vunpack.c.l.b16 %v2183
      %v2266 = vunpack.c.h.b16 %v2183
      %v2267 = vunpack.c.l.b16 %v2184
      %v2268 = vunpack.c.h.b16 %v2184
      %v2269 = vunpack.c.l.b16 %v2185
      %v2270 = vunpack.c.h.b16 %v2185
      %v2271 = vunpack.c.l.b16 %v2186
      %v2272 = vunpack.c.h.b16 %v2186
      %v2273 = vunpack.c.l.b16 %v2187
      %v2274 = vunpack.c.h.b16 %v2187
      %v2275 = vunpack.c.l.b16 %v2188
      %v2276 = vunpack.c.h.b16 %v2188
      %v2277 = vunpack.c.l.b16 %v2189
      %v2278 = vunpack.c.h.b16 %v2189
      %v2279 = vunpack.c.l.b16 %v2190
      %v2280 = vunpack.c.h.b16 %v2190
      %v2281 = vunpack.c.l.b16 %v2191
      %v2282 = vunpack.c.h.b16 %v2191
      %v2283 = vunpack.c.l.b16 %v2192
      %v2284 = vunpack.c.h.b16 %v2192
      %v2285 = vunpack.c.l.b16 %v2193
      %v2286 = vunpack.c.h.b16 %v2193
      %v2287 = vunpack.c.l.b16 %v2194
      %v2288 = vunpack.c.h.b16 %v2194
      %v2289 = vunpack.c.l.b16 %v2195
      %v2290 = vunpack.c.h.b16 %v2195
      %v2291 = vunpack.c.l.b16 %v2196
      %v2292 = vunpack.c.h.b16 %v2196
      %v2293 = vunpack.c.l.b16 %v2197
      %v2294 = vunpack.c.h.b16 %v2197
      %v2295 = vunpack.c.l.b16 %v2198
      %v2296 = vunpack.c.h.b16 %v2198
      %v2297 = vunpack.c.l.b16 %v2199
      %v2298 = vunpack.c.h.b16 %v2199
      %v2299 = vunpack.c.l.b16 %v2200
      %v2300 = vunpack.c.h.b16 %v2200
      %v2301 = vunpack.c.l.b16 %v2201
      %v2302 = vunpack.c.h.b16 %v2201
      %v2303 = vunpack.c.l.b16 %v2202
      %v2304 = vunpack.c.h.b16 %v2202
      %v2305 = vunpack.c.l.b16 %v2203
      %v2306 = vunpack.c.h.b16 %v2203
      %v2307 = vunpack.c.l.b16 %v2204
      %v2308 = vunpack.c.h.b16 %v2204
      %v2309 = vunpack.c.l.b16 %v2205
      %v2310 = vunpack.c.h.b16 %v2205
      %v2311 = vunpack.c.l.b16 %v2206
      %v2312 = vunpack.c.h.b16 %v2206
      %v2313 = vunpack.c.l.b16 %v2207
      %v2314 = vunpack.c.h.b16 %v2207
      %v2315 = vunpack.c.l.b16 %v2208
      %v2316 = vunpack.c.h.b16 %v2208
      %v2317 = vpack.c.b16 %v2255, %v2253
      %v2318 = vpack.c.b16 %v2256, %v2254
      %v2319 = vpack.c.b16 %v2259, %v2257
      %v2320 = vpack.c.b16 %v2260, %v2258
      %v2321 = vpack.c.b16 %v2263, %v2261
      %v2322 = vpack.c.b16 %v2264, %v2262
      %v2323 = vpack.c.b16 %v2267, %v2265
      %v2324 = vpack.c.b16 %v2268, %v2266
      %v2325 = vpack.c.b16 %v2271, %v2269
      %v2326 = vpack.c.b16 %v2272, %v2270
      %v2327 = vpack.c.b16 %v2275, %v2273
      %v2328 = vpack.c.b16 %v2276, %v2274
      %v2329 = vpack.c.b16 %v2279, %v2277
      %v2330 = vpack.c.b16 %v2280, %v2278
      %v2331 = vpack.c.b16 %v2283, %v2281
      %v2332 = vpack.c.b16 %v2284, %v2282
      %v2333 = vpack.c.b16 %v2287, %v2285
      %v2334 = vpack.c.b16 %v2288, %v2286
      %v2335 = vpack.c.b16 %v2291, %v2289
      %v2336 = vpack.c.b16 %v2292, %v2290
      %v2337 = vpack.c.b16 %v2295, %v2293
      %v2338 = vpack.c.b16 %v2296, %v2294
      %v2339 = vpack.c.b16 %v2299, %v2297
      %v2340 = vpack.c.b16 %v2300, %v2298
      %v2341 = vpack.c.b16 %v2303, %v2301
      %v2342 = vpack.c.b16 %v2304, %v2302
      %v2343 = vpack.c.b16 %v2307, %v2305
      %v2344 = vpack.c.b16 %v2308, %v2306
      %v2345 = vpack.c.b16 %v2311, %v2309
      %v2346 = vpack.c.b16 %v2312, %v2310
      %v2347 = vpack.c.b16 %v2315, %v2313
      %v2348 = vpack.c.b16 %v2316, %v2314
      %2381 = vmatprep.subr.bf16.mxu0 %v2318
      %2382 = vmatpush1.bf16.msra.mxu0 %v2317
      %2383 = vmatprep.subr.bf16.mxu0 %v2320
      %2384 = vmatpush1.bf16.msra.mxu0 %v2319
      %2385 = vmatprep.subr.bf16.mxu0 %v2322
      %2386 = vmatpush1.bf16.msra.mxu0 %v2321
      %2387 = vmatprep.subr.bf16.mxu0 %v2324
      %2388 = vmatpush1.bf16.msra.mxu0 %v2323
      %2389 = vmatprep.subr.bf16.mxu0 %v2326
      %2390 = vmatpush1.bf16.msra.mxu0 %v2325
      %2391 = vmatprep.subr.bf16.mxu0 %v2328
      %2392 = vmatpush1.bf16.msra.mxu0 %v2327
      %2393 = vmatprep.subr.bf16.mxu0 %v2330
      %2394 = vmatpush1.bf16.msra.mxu0 %v2329
      %2395 = vmatprep.subr.bf16.mxu0 %v2332
      %2396 = vmatpush1.bf16.msra.mxu0 %v2331
      %2397 = vmatprep.subr.bf16.mxu0 %v2334
      %2398 = vmatpush1.bf16.msra.mxu0 %v2333
      %2399 = vmatprep.subr.bf16.mxu0 %v2336
      %2400 = vmatpush1.bf16.msra.mxu0 %v2335
      %2401 = vmatprep.subr.bf16.mxu0 %v2338
      %2402 = vmatpush1.bf16.msra.mxu0 %v2337
      %2403 = vmatprep.subr.bf16.mxu0 %v2340
      %2404 = vmatpush1.bf16.msra.mxu0 %v2339
      %2405 = vmatprep.subr.bf16.mxu0 %v2342
      %2406 = vmatpush1.bf16.msra.mxu0 %v2341
      %2407 = vmatprep.subr.bf16.mxu0 %v2344
      %2408 = vmatpush1.bf16.msra.mxu0 %v2343
      %2409 = vmatprep.subr.bf16.mxu0 %v2346
      %2410 = vmatpush1.bf16.msra.mxu0 %v2345
      %2411 = vmatprep.subr.bf16.mxu0 %v2348
      %2412 = vmatpush1.bf16.msra.mxu0 %v2347
      %2413 = vmatprep.mubr.bf16.mxu0 %v2050
      %2414 = vmatmul.mubr.bf16.gmra.mrb[0].mxu0 %v2049
      %v2415 = vpop.f32.mrb[0].mxu0
      %v2416 = vadd.f32 %v2214, %v2415
      %v2417 = vpop.f32.mrb[0].mxu0
      %v2418 = vadd.f32 %v2218, %v2417
      %v2419 = vpop.f32.mrb[0].mxu0
      %v2420 = vadd.f32 %v2214, %v2419
      %v2421 = vpop.f32.mrb[0].mxu0
      %v2422 = vadd.f32 %v2218, %v2421
      %2423 = vmatprep.mubr.bf16.mxu0 %v2052
      %2424 = vmatmul.mubr.bf16.gmra.mrb[0].mxu0 %v2051
      %v2425 = vpop.f32.mrb[0].mxu0
      %v2426 = vadd.f32 %v2214, %v2425
      %v2427 = vpop.f32.mrb[0].mxu0
      %v2428 = vadd.f32 %v2218, %v2427
      %v2429 = vpop.f32.mrb[0].mxu0
      %v2430 = vadd.f32 %v2214, %v2429
      %v2431 = vpop.f32.mrb[0].mxu0
      %v2432 = vadd.f32 %v2218, %v2431
      %2433 = vmatprep.mubr.bf16.mxu0 %v2054
      %2434 = vmatmul.mubr.bf16.gmra.mrb[0].mxu0 %v2053
      %v2435 = vpop.f32.mrb[0].mxu0
      %v2436 = vadd.f32 %v2214, %v2435
      %v2437 = vpop.f32.mrb[0].mxu0
      %v2438 = vadd.f32 %v2218, %v2437
      %v2439 = vpop.f32.mrb[0].mxu0
      %v2440 = vadd.f32 %v2214, %v2439
      %v2441 = vpop.f32.mrb[0].mxu0
      %v2442 = vadd.f32 %v2218, %v2441
      %2443 = vmatprep.mubr.bf16.mxu0 %v2056
      %2444 = vmatmul.mubr.bf16.gmra.mrb[0].mxu0 %v2055
      %v2445 = vpop.f32.mrb[0].mxu0
      %v2446 = vadd.f32 %v2214, %v2445
      %v2447 = vpop.f32.mrb[0].mxu0
      %v2448 = vadd.f32 %v2218, %v2447
      %v2449 = vpop.f32.mrb[0].mxu0
      %v2450 = vadd.f32 %v2214, %v2449
      %v2451 = vpop.f32.mrb[0].mxu0
      %v2452 = vadd.f32 %v2218, %v2451
      %2453 = vmatprep.mubr.bf16.mxu0 %v2058
      %2454 = vmatmul.mubr.bf16.gmra.mrb[0].mxu0 %v2057
      %v2455 = vpop.f32.mrb[0].mxu0
      %v2456 = vadd.f32 %v2214, %v2455
      %v2457 = vpop.f32.mrb[0].mxu0
      %v2458 = vadd.f32 %v2218, %v2457
      %v2459 = vpop.f32.mrb[0].mxu0
      %v2460 = vadd.f32 %v2214, %v2459
      %v2461 = vpop.f32.mrb[0].mxu0
      %v2462 = vadd.f32 %v2218, %v2461
      %2463 = vmatprep.mubr.bf16.mxu0 %v2060
      %2464 = vmatmul.mubr.bf16.gmra.mrb[0].mxu0 %v2059
      %v2465 = vpop.f32.mrb[0].mxu0
      %v2466 = vadd.f32 %v2214, %v2465
      %v2467 = vpop.f32.mrb[0].mxu0
      %v2468 = vadd.f32 %v2218, %v2467
      %v2469 = vpop.f32.mrb[0].mxu0
      %v2470 = vadd.f32 %v2214, %v2469
      %v2471 = vpop.f32.mrb[0].mxu0
      %v2472 = vadd.f32 %v2218, %v2471
      %2473 = vmatprep.mubr.bf16.mxu0 %v2062
      %2474 = vmatmul.mubr.bf16.gmra.mrb[0].mxu0 %v2061
      %v2475 = vpop.f32.mrb[0].mxu0
      %v2476 = vadd.f32 %v2214, %v2475
      %v2477 = vpop.f32.mrb[0].mxu0
      %v2478 = vadd.f32 %v2218, %v2477
      %v2479 = vpop.f32.mrb[0].mxu0
      %v2480 = vadd.f32 %v2214, %v2479
      %v2481 = vpop.f32.mrb[0].mxu0
      %v2482 = vadd.f32 %v2218, %v2481
      %2483 = vmatprep.mubr.bf16.mxu0 %v2064
      %2484 = vmatmul.mubr.bf16.gmra.mrb[0].mxu0 %v2063
      %v2485 = vpop.f32.mrb[0].mxu0
      %v2486 = vadd.f32 %v2214, %v2485
      %v2487 = vpop.f32.mrb[0].mxu0
      %v2488 = vadd.f32 %v2218, %v2487
      %v2489 = vpop.f32.mrb[0].mxu0
      %v2490 = vadd.f32 %v2214, %v2489
      %v2491 = vpop.f32.mrb[0].mxu0
      %v2492 = vadd.f32 %v2218, %v2491
      %2493 = vmatprep.mubr.bf16.mxu0 %v2066
      %2494 = vmatmul.mubr.bf16.gmra.mrb[0].mxu0 %v2065
      %v2495 = vpop.f32.mrb[0].mxu0
      %v2496 = vadd.f32 %v2214, %v2495
      %v2497 = vpop.f32.mrb[0].mxu0
      %v2498 = vadd.f32 %v2218, %v2497
      %v2499 = vpop.f32.mrb[0].mxu0
      %v2500 = vadd.f32 %v2214, %v2499
      %v2501 = vpop.f32.mrb[0].mxu0
      %v2502 = vadd.f32 %v2218, %v2501
      %2503 = vmatprep.mubr.bf16.mxu0 %v2068
      %2504 = vmatmul.mubr.bf16.gmra.mrb[0].mxu0 %v2067
      %v2505 = vpop.f32.mrb[0].mxu0
      %v2506 = vadd.f32 %v2214, %v2505
      %v2507 = vpop.f32.mrb[0].mxu0
      %v2508 = vadd.f32 %v2218, %v2507
      %v2509 = vpop.f32.mrb[0].mxu0
      %v2510 = vadd.f32 %v2214, %v2509
      %v2511 = vpop.f32.mrb[0].mxu0
      %v2512 = vadd.f32 %v2218, %v2511
      %2513 = vmatprep.mubr.bf16.mxu0 %v2070
      %2514 = vmatmul.mubr.bf16.gmra.mrb[0].mxu0 %v2069
      %v2515 = vpop.f32.mrb[0].mxu0
      %v2516 = vadd.f32 %v2214, %v2515
      %v2517 = vpop.f32.mrb[0].mxu0
      %v2518 = vadd.f32 %v2218, %v2517
      %v2519 = vpop.f32.mrb[0].mxu0
      %v2520 = vadd.f32 %v2214, %v2519
      %v2521 = vpop.f32.mrb[0].mxu0
      %v2522 = vadd.f32 %v2218, %v2521
      %2523 = vmatprep.mubr.bf16.mxu0 %v2072
      %2524 = vmatmul.mubr.bf16.gmra.mrb[0].mxu0 %v2071
      %v2525 = vpop.f32.mrb[0].mxu0
      %v2526 = vadd.f32 %v2214, %v2525
      %v2527 = vpop.f32.mrb[0].mxu0
      %v2528 = vadd.f32 %v2218, %v2527
      %v2529 = vpop.f32.mrb[0].mxu0
      %v2530 = vadd.f32 %v2214, %v2529
      %v2531 = vpop.f32.mrb[0].mxu0
      %v2532 = vadd.f32 %v2218, %v2531
      %2533 = vmatprep.mubr.bf16.mxu0 %v2074
      %2534 = vmatmul.mubr.bf16.gmra.mrb[0].mxu0 %v2073
      %v2535 = vpop.f32.mrb[0].mxu0
      %v2536 = vadd.f32 %v2214, %v2535
      %v2537 = vpop.f32.mrb[0].mxu0
      %v2538 = vadd.f32 %v2218, %v2537
      %v2539 = vpop.f32.mrb[0].mxu0
      %v2540 = vadd.f32 %v2214, %v2539
      %v2541 = vpop.f32.mrb[0].mxu0
      %v2542 = vadd.f32 %v2218, %v2541
      %2543 = vmatprep.mubr.bf16.mxu0 %v2076
      %2544 = vmatmul.mubr.bf16.gmra.mrb[0].mxu0 %v2075
      %v2545 = vpop.f32.mrb[0].mxu0
      %v2546 = vadd.f32 %v2214, %v2545
      %v2547 = vpop.f32.mrb[0].mxu0
      %v2548 = vadd.f32 %v2218, %v2547
      %v2549 = vpop.f32.mrb[0].mxu0
      %v2550 = vadd.f32 %v2214, %v2549
      %v2551 = vpop.f32.mrb[0].mxu0
      %v2552 = vadd.f32 %v2218, %v2551
      %2553 = vmatprep.mubr.bf16.mxu0 %v2078
      %2554 = vmatmul.mubr.bf16.gmra.mrb[0].mxu0 %v2077
      %v2555 = vpop.f32.mrb[0].mxu0
      %v2556 = vadd.f32 %v2214, %v2555
      %v2557 = vpop.f32.mrb[0].mxu0
      %v2558 = vadd.f32 %v2218, %v2557
      %v2559 = vpop.f32.mrb[0].mxu0
      %v2560 = vadd.f32 %v2214, %v2559
      %v2561 = vpop.f32.mrb[0].mxu0
      %v2562 = vadd.f32 %v2218, %v2561
      %2563 = vmatprep.mubr.bf16.mxu0 %v2080
      %2564 = vmatmul.mubr.bf16.gmra.mrb[0].mxu0 %v2079
      %v2565 = vpop.f32.mrb[0].mxu0
      %v2566 = vadd.f32 %v2214, %v2565
      %v2567 = vpop.f32.mrb[0].mxu0
      %v2568 = vadd.f32 %v2218, %v2567
      %v2569 = vpop.f32.mrb[0].mxu0
      %v2570 = vadd.f32 %v2214, %v2569
      %v2571 = vpop.f32.mrb[0].mxu0
      %v2572 = vadd.f32 %v2218, %v2571
      %2573 = vmatprep.mubr.bf16.mxu0 %v2082
      %2574 = vmatmul.mubr.bf16.gmra.mrb[0].mxu0 %v2081
      %v2575 = vpop.f32.mrb[0].mxu0
      %v2576 = vadd.f32 %v2214, %v2575
      %v2577 = vpop.f32.mrb[0].mxu0
      %v2578 = vadd.f32 %v2218, %v2577
      %v2579 = vpop.f32.mrb[0].mxu0
      %v2580 = vadd.f32 %v2214, %v2579
      %v2581 = vpop.f32.mrb[0].mxu0
      %v2582 = vadd.f32 %v2218, %v2581
      %2583 = vmatprep.mubr.bf16.mxu0 %v2084
      %2584 = vmatmul.mubr.bf16.gmra.mrb[0].mxu0 %v2083
      %v2585 = vpop.f32.mrb[0].mxu0
      %v2586 = vadd.f32 %v2214, %v2585
      %v2587 = vpop.f32.mrb[0].mxu0
      %v2588 = vadd.f32 %v2218, %v2587
      %v2589 = vpop.f32.mrb[0].mxu0
      %v2590 = vadd.f32 %v2214, %v2589
      %v2591 = vpop.f32.mrb[0].mxu0
      %v2592 = vadd.f32 %v2218, %v2591
      %2593 = vmatprep.mubr.bf16.mxu0 %v2086
      %2594 = vmatmul.mubr.bf16.gmra.mrb[0].mxu0 %v2085
      %v2595 = vpop.f32.mrb[0].mxu0
      %v2596 = vadd.f32 %v2214, %v2595
      %v2597 = vpop.f32.mrb[0].mxu0
      %v2598 = vadd.f32 %v2218, %v2597
      %v2599 = vpop.f32.mrb[0].mxu0
      %v2600 = vadd.f32 %v2214, %v2599
      %v2601 = vpop.f32.mrb[0].mxu0
      %v2602 = vadd.f32 %v2218, %v2601
      %2603 = vmatprep.mubr.bf16.mxu0 %v2088
      %2604 = vmatmul.mubr.bf16.gmra.mrb[0].mxu0 %v2087
      %v2605 = vpop.f32.mrb[0].mxu0
      %v2606 = vadd.f32 %v2214, %v2605
      %v2607 = vpop.f32.mrb[0].mxu0
      %v2608 = vadd.f32 %v2218, %v2607
      %v2609 = vpop.f32.mrb[0].mxu0
      %v2610 = vadd.f32 %v2214, %v2609
      %v2611 = vpop.f32.mrb[0].mxu0
      %v2612 = vadd.f32 %v2218, %v2611
      %2613 = vmatprep.mubr.bf16.mxu0 %v2090
      %2614 = vmatmul.mubr.bf16.gmra.mrb[0].mxu0 %v2089
      %v2615 = vpop.f32.mrb[0].mxu0
      %v2616 = vadd.f32 %v2214, %v2615
      %v2617 = vpop.f32.mrb[0].mxu0
      %v2618 = vadd.f32 %v2218, %v2617
      %v2619 = vpop.f32.mrb[0].mxu0
      %v2620 = vadd.f32 %v2214, %v2619
      %v2621 = vpop.f32.mrb[0].mxu0
      %v2622 = vadd.f32 %v2218, %v2621
      %2623 = vmatprep.mubr.bf16.mxu0 %v2092
      %2624 = vmatmul.mubr.bf16.gmra.mrb[0].mxu0 %v2091
      %v2625 = vpop.f32.mrb[0].mxu0
      %v2626 = vadd.f32 %v2214, %v2625
      %v2627 = vpop.f32.mrb[0].mxu0
      %v2628 = vadd.f32 %v2218, %v2627
      %v2629 = vpop.f32.mrb[0].mxu0
      %v2630 = vadd.f32 %v2214, %v2629
      %v2631 = vpop.f32.mrb[0].mxu0
      %v2632 = vadd.f32 %v2218, %v2631
      %2633 = vmatprep.mubr.bf16.mxu0 %v2094
      %2634 = vmatmul.mubr.bf16.gmra.mrb[0].mxu0 %v2093
      %v2635 = vpop.f32.mrb[0].mxu0
      %v2636 = vadd.f32 %v2214, %v2635
      %v2637 = vpop.f32.mrb[0].mxu0
      %v2638 = vadd.f32 %v2218, %v2637
      %v2639 = vpop.f32.mrb[0].mxu0
      %v2640 = vadd.f32 %v2214, %v2639
      %v2641 = vpop.f32.mrb[0].mxu0
      %v2642 = vadd.f32 %v2218, %v2641
      %2643 = vmatprep.mubr.bf16.mxu0 %v2096
      %2644 = vmatmul.mubr.bf16.gmra.mrb[0].mxu0 %v2095
      %v2645 = vpop.f32.mrb[0].mxu0
      %v2646 = vadd.f32 %v2214, %v2645
      %v2647 = vpop.f32.mrb[0].mxu0
      %v2648 = vadd.f32 %v2218, %v2647
      %v2649 = vpop.f32.mrb[0].mxu0
      %v2650 = vadd.f32 %v2214, %v2649
      %v2651 = vpop.f32.mrb[0].mxu0
      %v2652 = vadd.f32 %v2218, %v2651
      %2653 = vmatprep.mubr.bf16.mxu0 %v2098
      %2654 = vmatmul.mubr.bf16.gmra.mrb[0].mxu0 %v2097
      %v2655 = vpop.f32.mrb[0].mxu0
      %v2656 = vadd.f32 %v2214, %v2655
      %v2657 = vpop.f32.mrb[0].mxu0
      %v2658 = vadd.f32 %v2218, %v2657
      %v2659 = vpop.f32.mrb[0].mxu0
      %v2660 = vadd.f32 %v2214, %v2659
      %v2661 = vpop.f32.mrb[0].mxu0
      %v2662 = vadd.f32 %v2218, %v2661
      %2663 = vmatprep.mubr.bf16.mxu0 %v2100
      %2664 = vmatmul.mubr.bf16.gmra.mrb[0].mxu0 %v2099
      %v2665 = vpop.f32.mrb[0].mxu0
      %v2666 = vadd.f32 %v2214, %v2665
      %v2667 = vpop.f32.mrb[0].mxu0
      %v2668 = vadd.f32 %v2218, %v2667
      %v2669 = vpop.f32.mrb[0].mxu0
      %v2670 = vadd.f32 %v2214, %v2669
      %v2671 = vpop.f32.mrb[0].mxu0
      %v2672 = vadd.f32 %v2218, %v2671
      %2673 = vmatprep.mubr.bf16.mxu0 %v2102
      %2674 = vmatmul.mubr.bf16.gmra.mrb[0].mxu0 %v2101
      %v2675 = vpop.f32.mrb[0].mxu0
      %v2676 = vadd.f32 %v2214, %v2675
      %v2677 = vpop.f32.mrb[0].mxu0
      %v2678 = vadd.f32 %v2218, %v2677
      %v2679 = vpop.f32.mrb[0].mxu0
      %v2680 = vadd.f32 %v2214, %v2679
      %v2681 = vpop.f32.mrb[0].mxu0
      %v2682 = vadd.f32 %v2218, %v2681
      %2683 = vmatprep.mubr.bf16.mxu0 %v2104
      %2684 = vmatmul.mubr.bf16.gmra.mrb[0].mxu0 %v2103
      %v2685 = vpop.f32.mrb[0].mxu0
      %v2686 = vadd.f32 %v2214, %v2685
      %v2687 = vpop.f32.mrb[0].mxu0
      %v2688 = vadd.f32 %v2218, %v2687
      %v2689 = vpop.f32.mrb[0].mxu0
      %v2690 = vadd.f32 %v2214, %v2689
      %v2691 = vpop.f32.mrb[0].mxu0
      %v2692 = vadd.f32 %v2218, %v2691
      %2693 = vmatprep.mubr.bf16.mxu0 %v2106
      %2694 = vmatmul.mubr.bf16.gmra.mrb[0].mxu0 %v2105
      %v2695 = vpop.f32.mrb[0].mxu0
      %v2696 = vadd.f32 %v2214, %v2695
      %v2697 = vpop.f32.mrb[0].mxu0
      %v2698 = vadd.f32 %v2218, %v2697
      %v2699 = vpop.f32.mrb[0].mxu0
      %v2700 = vadd.f32 %v2214, %v2699
      %v2701 = vpop.f32.mrb[0].mxu0
      %v2702 = vadd.f32 %v2218, %v2701
      %2703 = vmatprep.mubr.bf16.mxu0 %v2108
      %2704 = vmatmul.mubr.bf16.gmra.mrb[0].mxu0 %v2107
      %v2705 = vpop.f32.mrb[0].mxu0
      %v2706 = vadd.f32 %v2214, %v2705
      %v2707 = vpop.f32.mrb[0].mxu0
      %v2708 = vadd.f32 %v2218, %v2707
      %v2709 = vpop.f32.mrb[0].mxu0
      %v2710 = vadd.f32 %v2214, %v2709
      %v2711 = vpop.f32.mrb[0].mxu0
      %v2712 = vadd.f32 %v2218, %v2711
      %2713 = vmatprep.mubr.bf16.mxu0 %v2110
      %2714 = vmatmul.mubr.bf16.gmra.mrb[0].mxu0 %v2109
      %v2715 = vpop.f32.mrb[0].mxu0
      %v2716 = vadd.f32 %v2214, %v2715
      %v2717 = vpop.f32.mrb[0].mxu0
      %v2718 = vadd.f32 %v2218, %v2717
      %v2719 = vpop.f32.mrb[0].mxu0
      %v2720 = vadd.f32 %v2214, %v2719
      %v2721 = vpop.f32.mrb[0].mxu0
      %v2722 = vadd.f32 %v2218, %v2721
      %2723 = vmatprep.mubr.bf16.mxu0 %v2112
      %2724 = vmatmul.mubr.bf16.gmra.mrb[0].mxu0 %v2111
      %v2725 = vpop.f32.mrb[0].mxu0
      %v2726 = vadd.f32 %v2214, %v2725
      %v2727 = vpop.f32.mrb[0].mxu0
      %v2728 = vadd.f32 %v2218, %v2727
      %v2729 = vpop.f32.mrb[0].mxu0
      %v2730 = vadd.f32 %v2214, %v2729
      %v2731 = vpop.f32.mrb[0].mxu0
      %v2732 = vadd.f32 %v2218, %v2731
      %2733 = vmatprep.mubr.bf16.mxu0 %v2114
      %2734 = vmatmul.mubr.bf16.gmra.mrb[0].mxu0 %v2113
      %v2735 = vpop.f32.mrb[0].mxu0
      %v2736 = vadd.f32 %v2214, %v2735
      %v2737 = vpop.f32.mrb[0].mxu0
      %v2738 = vadd.f32 %v2218, %v2737
      %v2739 = vpop.f32.mrb[0].mxu0
      %v2740 = vadd.f32 %v2214, %v2739
      %v2741 = vpop.f32.mrb[0].mxu0
      %v2742 = vadd.f32 %v2218, %v2741
      %2743 = vmatprep.mubr.bf16.mxu0 %v2116
      %2744 = vmatmul.mubr.bf16.gmra.mrb[0].mxu0 %v2115
      %v2745 = vpop.f32.mrb[0].mxu0
      %v2746 = vadd.f32 %v2214, %v2745
      %v2747 = vpop.f32.mrb[0].mxu0
      %v2748 = vadd.f32 %v2218, %v2747
      %v2749 = vpop.f32.mrb[0].mxu0
      %v2750 = vadd.f32 %v2214, %v2749
      %v2751 = vpop.f32.mrb[0].mxu0
      %v2752 = vadd.f32 %v2218, %v2751
      %2753 = vmatprep.mubr.bf16.mxu0 %v2118
      %2754 = vmatmul.mubr.bf16.gmra.mrb[0].mxu0 %v2117
      %v2755 = vpop.f32.mrb[0].mxu0
      %v2756 = vadd.f32 %v2214, %v2755
      %v2757 = vpop.f32.mrb[0].mxu0
      %v2758 = vadd.f32 %v2218, %v2757
      %v2759 = vpop.f32.mrb[0].mxu0
      %v2760 = vadd.f32 %v2214, %v2759
      %v2761 = vpop.f32.mrb[0].mxu0
      %v2762 = vadd.f32 %v2218, %v2761
      %2763 = vmatprep.mubr.bf16.mxu0 %v2120
      %2764 = vmatmul.mubr.bf16.gmra.mrb[0].mxu0 %v2119
      %v2765 = vpop.f32.mrb[0].mxu0
      %v2766 = vadd.f32 %v2214, %v2765
      %v2767 = vpop.f32.mrb[0].mxu0
      %v2768 = vadd.f32 %v2218, %v2767
      %v2769 = vpop.f32.mrb[0].mxu0
      %v2770 = vadd.f32 %v2214, %v2769
      %v2771 = vpop.f32.mrb[0].mxu0
      %v2772 = vadd.f32 %v2218, %v2771
      %2773 = vmatprep.mubr.bf16.mxu0 %v2122
      %2774 = vmatmul.mubr.bf16.gmra.mrb[0].mxu0 %v2121
      %v2775 = vpop.f32.mrb[0].mxu0
      %v2776 = vadd.f32 %v2214, %v2775
      %v2777 = vpop.f32.mrb[0].mxu0
      %v2778 = vadd.f32 %v2218, %v2777
      %v2779 = vpop.f32.mrb[0].mxu0
      %v2780 = vadd.f32 %v2214, %v2779
      %v2781 = vpop.f32.mrb[0].mxu0
      %v2782 = vadd.f32 %v2218, %v2781
      %2783 = vmatprep.mubr.bf16.mxu0 %v2124
      %2784 = vmatmul.mubr.bf16.gmra.mrb[0].mxu0 %v2123
      %v2785 = vpop.f32.mrb[0].mxu0
      %v2786 = vadd.f32 %v2214, %v2785
      %v2787 = vpop.f32.mrb[0].mxu0
      %v2788 = vadd.f32 %v2218, %v2787
      %v2789 = vpop.f32.mrb[0].mxu0
      %v2790 = vadd.f32 %v2214, %v2789
      %v2791 = vpop.f32.mrb[0].mxu0
      %v2792 = vadd.f32 %v2218, %v2791
      %2793 = vmatprep.mubr.bf16.mxu0 %v2126
      %2794 = vmatmul.mubr.bf16.gmra.mrb[0].mxu0 %v2125
      %v2795 = vpop.f32.mrb[0].mxu0
      %v2796 = vadd.f32 %v2214, %v2795
      %v2797 = vpop.f32.mrb[0].mxu0
      %v2798 = vadd.f32 %v2218, %v2797
      %v2799 = vpop.f32.mrb[0].mxu0
      %v2800 = vadd.f32 %v2214, %v2799
      %v2801 = vpop.f32.mrb[0].mxu0
      %v2802 = vadd.f32 %v2218, %v2801
      %2803 = vmatprep.mubr.bf16.mxu0 %v2128
      %2804 = vmatmul.mubr.bf16.gmra.mrb[0].mxu0 %v2127
      %v2805 = vpop.f32.mrb[0].mxu0
      %v2806 = vadd.f32 %v2214, %v2805
      %v2807 = vpop.f32.mrb[0].mxu0
      %v2808 = vadd.f32 %v2218, %v2807
      %v2809 = vpop.f32.mrb[0].mxu0
      %v2810 = vadd.f32 %v2214, %v2809
      %v2811 = vpop.f32.mrb[0].mxu0
      %v2812 = vadd.f32 %v2218, %v2811
      %2813 = vmatprep.mubr.bf16.mxu0 %v2130
      %2814 = vmatmul.mubr.bf16.gmra.mrb[0].mxu0 %v2129
      %v2815 = vpop.f32.mrb[0].mxu0
      %v2816 = vadd.f32 %v2214, %v2815
      %v2817 = vpop.f32.mrb[0].mxu0
      %v2818 = vadd.f32 %v2218, %v2817
      %v2819 = vpop.f32.mrb[0].mxu0
      %v2820 = vadd.f32 %v2214, %v2819
      %v2821 = vpop.f32.mrb[0].mxu0
      %v2822 = vadd.f32 %v2218, %v2821
      %2823 = vmatprep.mubr.bf16.mxu0 %v2132
      %2824 = vmatmul.mubr.bf16.gmra.mrb[0].mxu0 %v2131
      %v2825 = vpop.f32.mrb[0].mxu0
      %v2826 = vadd.f32 %v2214, %v2825
      %v2827 = vpop.f32.mrb[0].mxu0
      %v2828 = vadd.f32 %v2218, %v2827
      %v2829 = vpop.f32.mrb[0].mxu0
      %v2830 = vadd.f32 %v2214, %v2829
      %v2831 = vpop.f32.mrb[0].mxu0
      %v2832 = vadd.f32 %v2218, %v2831
      %2833 = vmatprep.mubr.bf16.mxu0 %v2134
      %2834 = vmatmul.mubr.bf16.gmra.mrb[0].mxu0 %v2133
      %v2835 = vpop.f32.mrb[0].mxu0
      %v2836 = vadd.f32 %v2214, %v2835
      %v2837 = vpop.f32.mrb[0].mxu0
      %v2838 = vadd.f32 %v2218, %v2837
      %v2839 = vpop.f32.mrb[0].mxu0
      %v2840 = vadd.f32 %v2214, %v2839
      %v2841 = vpop.f32.mrb[0].mxu0
      %v2842 = vadd.f32 %v2218, %v2841
      %2843 = vmatprep.mubr.bf16.mxu0 %v2136
      %2844 = vmatmul.mubr.bf16.gmra.mrb[0].mxu0 %v2135
      %v2845 = vpop.f32.mrb[0].mxu0
      %v2846 = vadd.f32 %v2214, %v2845
      %v2847 = vpop.f32.mrb[0].mxu0
      %v2848 = vadd.f32 %v2218, %v2847
      %v2849 = vpop.f32.mrb[0].mxu0
      %v2850 = vadd.f32 %v2214, %v2849
      %v2851 = vpop.f32.mrb[0].mxu0
      %v2852 = vadd.f32 %v2218, %v2851
      %2853 = vmatprep.mubr.bf16.mxu0 %v2138
      %2854 = vmatmul.mubr.bf16.gmra.mrb[0].mxu0 %v2137
      %v2855 = vpop.f32.mrb[0].mxu0
      %v2856 = vadd.f32 %v2214, %v2855
      %v2857 = vpop.f32.mrb[0].mxu0
      %v2858 = vadd.f32 %v2218, %v2857
      %v2859 = vpop.f32.mrb[0].mxu0
      %v2860 = vadd.f32 %v2214, %v2859
      %v2861 = vpop.f32.mrb[0].mxu0
      %v2862 = vadd.f32 %v2218, %v2861
      %2863 = vmatprep.mubr.bf16.mxu0 %v2140
      %2864 = vmatmul.mubr.bf16.gmra.mrb[0].mxu0 %v2139
      %v2865 = vpop.f32.mrb[0].mxu0
      %v2866 = vadd.f32 %v2214, %v2865
      %v2867 = vpop.f32.mrb[0].mxu0
      %v2868 = vadd.f32 %v2218, %v2867
      %v2869 = vpop.f32.mrb[0].mxu0
      %v2870 = vadd.f32 %v2214, %v2869
      %v2871 = vpop.f32.mrb[0].mxu0
      %v2872 = vadd.f32 %v2218, %v2871
      %2873 = vmatprep.mubr.bf16.mxu0 %v2142
      %2874 = vmatmul.mubr.bf16.gmra.mrb[0].mxu0 %v2141
      %v2875 = vpop.f32.mrb[0].mxu0
      %v2876 = vadd.f32 %v2214, %v2875
      %v2877 = vpop.f32.mrb[0].mxu0
      %v2878 = vadd.f32 %v2218, %v2877
      %v2879 = vpop.f32.mrb[0].mxu0
      %v2880 = vadd.f32 %v2214, %v2879
      %v2881 = vpop.f32.mrb[0].mxu0
      %v2882 = vadd.f32 %v2218, %v2881
      %2883 = vmatprep.mubr.bf16.mxu0 %v2144
      %2884 = vmatmul.mubr.bf16.gmra.mrb[0].mxu0 %v2143
      %v2885 = vpop.f32.mrb[0].mxu0
      %v2886 = vadd.f32 %v2214, %v2885
      %v2887 = vpop.f32.mrb[0].mxu0
      %v2888 = vadd.f32 %v2218, %v2887
      %v2889 = vpop.f32.mrb[0].mxu0
      %v2890 = vadd.f32 %v2214, %v2889
      %v2891 = vpop.f32.mrb[0].mxu0
      %v2892 = vadd.f32 %v2218, %v2891
      %2893 = vmatprep.mubr.bf16.mxu0 %v2146
      %2894 = vmatmul.mubr.bf16.gmra.mrb[0].mxu0 %v2145
      %v2895 = vpop.f32.mrb[0].mxu0
      %v2896 = vadd.f32 %v2214, %v2895
      %v2897 = vpop.f32.mrb[0].mxu0
      %v2898 = vadd.f32 %v2218, %v2897
      %v2899 = vpop.f32.mrb[0].mxu0
      %v2900 = vadd.f32 %v2214, %v2899
      %v2901 = vpop.f32.mrb[0].mxu0
      %v2902 = vadd.f32 %v2218, %v2901
      %2903 = vmatprep.mubr.bf16.mxu0 %v2148
      %2904 = vmatmul.mubr.bf16.gmra.mrb[0].mxu0 %v2147
      %v2905 = vpop.f32.mrb[0].mxu0
      %v2906 = vadd.f32 %v2214, %v2905
      %v2907 = vpop.f32.mrb[0].mxu0
      %v2908 = vadd.f32 %v2218, %v2907
      %v2909 = vpop.f32.mrb[0].mxu0
      %v2910 = vadd.f32 %v2214, %v2909
      %v2911 = vpop.f32.mrb[0].mxu0
      %v2912 = vadd.f32 %v2218, %v2911
      %2913 = vmatprep.mubr.bf16.mxu0 %v2150
      %2914 = vmatmul.mubr.bf16.gmra.mrb[0].mxu0 %v2149
      %v2915 = vpop.f32.mrb[0].mxu0
      %v2916 = vadd.f32 %v2214, %v2915
      %v2917 = vpop.f32.mrb[0].mxu0
      %v2918 = vadd.f32 %v2218, %v2917
      %v2919 = vpop.f32.mrb[0].mxu0
      %v2920 = vadd.f32 %v2214, %v2919
      %v2921 = vpop.f32.mrb[0].mxu0
      %v2922 = vadd.f32 %v2218, %v2921
      %2923 = vmatprep.mubr.bf16.mxu0 %v2152
      %2924 = vmatmul.mubr.bf16.gmra.mrb[0].mxu0 %v2151
      %v2925 = vpop.f32.mrb[0].mxu0
      %v2926 = vadd.f32 %v2214, %v2925
      %v2927 = vpop.f32.mrb[0].mxu0
      %v2928 = vadd.f32 %v2218, %v2927
      %v2929 = vpop.f32.mrb[0].mxu0
      %v2930 = vadd.f32 %v2214, %v2929
      %v2931 = vpop.f32.mrb[0].mxu0
      %v2932 = vadd.f32 %v2218, %v2931
      %2933 = vmatprep.mubr.bf16.mxu0 %v2154
      %2934 = vmatmul.mubr.bf16.gmra.mrb[0].mxu0 %v2153
      %v2935 = vpop.f32.mrb[0].mxu0
      %v2936 = vadd.f32 %v2214, %v2935
      %v2937 = vpop.f32.mrb[0].mxu0
      %v2938 = vadd.f32 %v2218, %v2937
      %v2939 = vpop.f32.mrb[0].mxu0
      %v2940 = vadd.f32 %v2214, %v2939
      %v2941 = vpop.f32.mrb[0].mxu0
      %v2942 = vadd.f32 %v2218, %v2941
      %2943 = vmatprep.mubr.bf16.mxu0 %v2156
      %2944 = vmatmul.mubr.bf16.gmra.mrb[0].mxu0 %v2155
      %v2945 = vpop.f32.mrb[0].mxu0
      %v2946 = vadd.f32 %v2214, %v2945
      %v2947 = vpop.f32.mrb[0].mxu0
      %v2948 = vadd.f32 %v2218, %v2947
      %v2949 = vpop.f32.mrb[0].mxu0
      %v2950 = vadd.f32 %v2214, %v2949
      %v2951 = vpop.f32.mrb[0].mxu0
      %v2952 = vadd.f32 %v2218, %v2951
      %2953 = vmatprep.mubr.bf16.mxu0 %v2158
      %2954 = vmatmul.mubr.bf16.gmra.mrb[0].mxu0 %v2157
      %v2955 = vpop.f32.mrb[0].mxu0
      %v2956 = vadd.f32 %v2214, %v2955
      %v2957 = vpop.f32.mrb[0].mxu0
      %v2958 = vadd.f32 %v2218, %v2957
      %v2959 = vpop.f32.mrb[0].mxu0
      %v2960 = vadd.f32 %v2214, %v2959
      %v2961 = vpop.f32.mrb[0].mxu0
      %v2962 = vadd.f32 %v2218, %v2961
      %2963 = vmatprep.mubr.bf16.mxu0 %v2160
      %2964 = vmatmul.mubr.bf16.gmra.mrb[0].mxu0 %v2159
      %v2965 = vpop.f32.mrb[0].mxu0
      %v2966 = vadd.f32 %v2214, %v2965
      %v2967 = vpop.f32.mrb[0].mxu0
      %v2968 = vadd.f32 %v2218, %v2967
      %v2969 = vpop.f32.mrb[0].mxu0
      %v2970 = vadd.f32 %v2214, %v2969
      %v2971 = vpop.f32.mrb[0].mxu0
      %v2972 = vadd.f32 %v2218, %v2971
      %2973 = vmatprep.mubr.bf16.mxu0 %v2162
      %2974 = vmatmul.mubr.bf16.gmra.mrb[0].mxu0 %v2161
      %v2975 = vpop.f32.mrb[0].mxu0
      %v2976 = vadd.f32 %v2214, %v2975
      %v2977 = vpop.f32.mrb[0].mxu0
      %v2978 = vadd.f32 %v2218, %v2977
      %v2979 = vpop.f32.mrb[0].mxu0
      %v2980 = vadd.f32 %v2214, %v2979
      %v2981 = vpop.f32.mrb[0].mxu0
      %v2982 = vadd.f32 %v2218, %v2981
      %2983 = vmatprep.mubr.bf16.mxu0 %v2164
      %2984 = vmatmul.mubr.bf16.gmra.mrb[0].mxu0 %v2163
      %v2985 = vpop.f32.mrb[0].mxu0
      %v2986 = vadd.f32 %v2214, %v2985
      %v2987 = vpop.f32.mrb[0].mxu0
      %v2988 = vadd.f32 %v2218, %v2987
      %v2989 = vpop.f32.mrb[0].mxu0
      %v2990 = vadd.f32 %v2214, %v2989
      %v2991 = vpop.f32.mrb[0].mxu0
      %v2992 = vadd.f32 %v2218, %v2991
      %2993 = vmatprep.mubr.bf16.mxu0 %v2166
      %2994 = vmatmul.mubr.bf16.gmra.mrb[0].mxu0 %v2165
      %v2995 = vpop.f32.mrb[0].mxu0
      %v2996 = vadd.f32 %v2214, %v2995
      %v2997 = vpop.f32.mrb[0].mxu0
      %v2998 = vadd.f32 %v2218, %v2997
      %v2999 = vpop.f32.mrb[0].mxu0
      %v3000 = vadd.f32 %v2214, %v2999
      %v3001 = vpop.f32.mrb[0].mxu0
      %v3002 = vadd.f32 %v2218, %v3001
      %3003 = vmatprep.mubr.bf16.mxu0 %v2168
      %3004 = vmatmul.mubr.bf16.gmra.mrb[0].mxu0 %v2167
      %v3005 = vpop.f32.mrb[0].mxu0
      %v3006 = vadd.f32 %v2214, %v3005
      %v3007 = vpop.f32.mrb[0].mxu0
      %v3008 = vadd.f32 %v2218, %v3007
      %v3009 = vpop.f32.mrb[0].mxu0
      %v3010 = vadd.f32 %v2214, %v3009
      %v3011 = vpop.f32.mrb[0].mxu0
      %v3012 = vadd.f32 %v2218, %v3011
      %3013 = vmatprep.mubr.bf16.mxu0 %v2170
      %3014 = vmatmul.mubr.bf16.gmra.mrb[0].mxu0 %v2169
      %v3015 = vpop.f32.mrb[0].mxu0
      %v3016 = vadd.f32 %v2214, %v3015
      %v3017 = vpop.f32.mrb[0].mxu0
      %v3018 = vadd.f32 %v2218, %v3017
      %v3019 = vpop.f32.mrb[0].mxu0
      %v3020 = vadd.f32 %v2214, %v3019
      %v3021 = vpop.f32.mrb[0].mxu0
      %v3022 = vadd.f32 %v2218, %v3021
      %3023 = vmatprep.mubr.bf16.mxu0 %v2172
      %3024 = vmatmul.mubr.bf16.gmra.mrb[0].mxu0 %v2171
      %v3025 = vpop.f32.mrb[0].mxu0
      %v3026 = vadd.f32 %v2214, %v3025
      %v3027 = vpop.f32.mrb[0].mxu0
      %v3028 = vadd.f32 %v2218, %v3027
      %v3029 = vpop.f32.mrb[0].mxu0
      %v3030 = vadd.f32 %v2214, %v3029
      %v3031 = vpop.f32.mrb[0].mxu0
      %v3032 = vadd.f32 %v2218, %v3031
      %3033 = vmatprep.mubr.bf16.mxu0 %v2174
      %3034 = vmatmul.mubr.bf16.gmra.mrb[0].mxu0 %v2173
      %v3035 = vpop.f32.mrb[0].mxu0
      %v3036 = vadd.f32 %v2214, %v3035
      %v3037 = vpop.f32.mrb[0].mxu0
      %v3038 = vadd.f32 %v2218, %v3037
      %v3039 = vpop.f32.mrb[0].mxu0
      %v3040 = vadd.f32 %v2214, %v3039
      %v3041 = vpop.f32.mrb[0].mxu0
      %v3042 = vadd.f32 %v2218, %v3041
      %3043 = vmatprep.mubr.bf16.mxu0 %v2176
      %3044 = vmatmul.mubr.bf16.gmra.mrb[0].mxu0 %v2175
      %v3045 = vpop.f32.mrb[0].mxu0
      %v3046 = vadd.f32 %v2214, %v3045
      %v3047 = vpop.f32.mrb[0].mxu0
      %v3048 = vadd.f32 %v2218, %v3047
      %v3049 = vpop.f32.mrb[0].mxu0
      %v3050 = vadd.f32 %v2214, %v3049
      %v3051 = vpop.f32.mrb[0].mxu0
      %v3052 = vadd.f32 %v2218, %v3051
      %3053 = vdwg.mxu0
      %v3054 = vmax.f32 %v2416, 0.0
      %v3055 = vmax.f32 %v2418, 0.0
      %v3056 = vmax.f32 %v2420, 0.0
      %v3057 = vmax.f32 %v2422, 0.0
      %v3058 = vmax.f32 %v2426, 0.0
      %v3059 = vmax.f32 %v2428, 0.0
      %v3060 = vmax.f32 %v2430, 0.0
      %v3061 = vmax.f32 %v2432, 0.0
      %v3062 = vmax.f32 %v2436, 0.0
      %v3063 = vmax.f32 %v2438, 0.0
      %v3064 = vmax.f32 %v2440, 0.0
      %v3065 = vmax.f32 %v2442, 0.0
      %v3066 = vmax.f32 %v2446, 0.0
      %v3067 = vmax.f32 %v2448, 0.0
      %v3068 = vmax.f32 %v2450, 0.0
      %v3069 = vmax.f32 %v2452, 0.0
      %v3070 = vmax.f32 %v2456, 0.0
      %v3071 = vmax.f32 %v2458, 0.0
      %v3072 = vmax.f32 %v2460, 0.0
      %v3073 = vmax.f32 %v2462, 0.0
      %v3074 = vmax.f32 %v2466, 0.0
      %v3075 = vmax.f32 %v2468, 0.0
      %v3076 = vmax.f32 %v2470, 0.0
      %v3077 = vmax.f32 %v2472, 0.0
      %v3078 = vmax.f32 %v2476, 0.0
      %v3079 = vmax.f32 %v2478, 0.0
      %v3080 = vmax.f32 %v2480, 0.0
      %v3081 = vmax.f32 %v2482, 0.0
      %v3082 = vmax.f32 %v2486, 0.0
      %v3083 = vmax.f32 %v2488, 0.0
      %v3084 = vmax.f32 %v2490, 0.0
      %v3085 = vmax.f32 %v2492, 0.0
      %v3086 = vmax.f32 %v2496, 0.0
      %v3087 = vmax.f32 %v2498, 0.0
      %v3088 = vmax.f32 %v2500, 0.0
      %v3089 = vmax.f32 %v2502, 0.0
      %v3090 = vmax.f32 %v2506, 0.0
      %v3091 = vmax.f32 %v2508, 0.0
      %v3092 = vmax.f32 %v2510, 0.0
      %v3093 = vmax.f32 %v2512, 0.0
      %v3094 = vmax.f32 %v2516, 0.0
      %v3095 = vmax.f32 %v2518, 0.0
      %v3096 = vmax.f32 %v2520, 0.0
      %v3097 = vmax.f32 %v2522, 0.0
      %v3098 = vmax.f32 %v2526, 0.0
      %v3099 = vmax.f32 %v2528, 0.0
      %v3100 = vmax.f32 %v2530, 0.0
      %v3101 = vmax.f32 %v2532, 0.0
      %v3102 = vmax.f32 %v2536, 0.0
      %v3103 = vmax.f32 %v2538, 0.0
      %v3104 = vmax.f32 %v2540, 0.0
      %v3105 = vmax.f32 %v2542, 0.0
      %v3106 = vmax.f32 %v2546, 0.0
      %v3107 = vmax.f32 %v2548, 0.0
      %v3108 = vmax.f32 %v2550, 0.0
      %v3109 = vmax.f32 %v2552, 0.0
      %v3110 = vmax.f32 %v2556, 0.0
      %v3111 = vmax.f32 %v2558, 0.0
      %v3112 = vmax.f32 %v2560, 0.0
      %v3113 = vmax.f32 %v2562, 0.0
      %v3114 = vmax.f32 %v2566, 0.0
      %v3115 = vmax.f32 %v2568, 0.0
      %v3116 = vmax.f32 %v2570, 0.0
      %v3117 = vmax.f32 %v2572, 0.0
      %v3118 = vmax.f32 %v2576, 0.0
      %v3119 = vmax.f32 %v2578, 0.0
      %v3120 = vmax.f32 %v2580, 0.0
      %v3121 = vmax.f32 %v2582, 0.0
      %v3122 = vmax.f32 %v2586, 0.0
      %v3123 = vmax.f32 %v2588, 0.0
      %v3124 = vmax.f32 %v2590, 0.0
      %v3125 = vmax.f32 %v2592, 0.0
      %v3126 = vmax.f32 %v2596, 0.0
      %v3127 = vmax.f32 %v2598, 0.0
      %v3128 = vmax.f32 %v2600, 0.0
      %v3129 = vmax.f32 %v2602, 0.0
      %v3130 = vmax.f32 %v2606, 0.0
      %v3131 = vmax.f32 %v2608, 0.0
      %v3132 = vmax.f32 %v2610, 0.0
      %v3133 = vmax.f32 %v2612, 0.0
      %v3134 = vmax.f32 %v2616, 0.0
      %v3135 = vmax.f32 %v2618, 0.0
      %v3136 = vmax.f32 %v2620, 0.0
      %v3137 = vmax.f32 %v2622, 0.0
      %v3138 = vmax.f32 %v2626, 0.0
      %v3139 = vmax.f32 %v2628, 0.0
      %v3140 = vmax.f32 %v2630, 0.0
      %v3141 = vmax.f32 %v2632, 0.0
      %v3142 = vmax.f32 %v2636, 0.0
      %v3143 = vmax.f32 %v2638, 0.0
      %v3144 = vmax.f32 %v2640, 0.0
      %v3145 = vmax.f32 %v2642, 0.0
      %v3146 = vmax.f32 %v2646, 0.0
      %v3147 = vmax.f32 %v2648, 0.0
      %v3148 = vmax.f32 %v2650, 0.0
      %v3149 = vmax.f32 %v2652, 0.0
      %v3150 = vmax.f32 %v2656, 0.0
      %v3151 = vmax.f32 %v2658, 0.0
      %v3152 = vmax.f32 %v2660, 0.0
      %v3153 = vmax.f32 %v2662, 0.0
      %v3154 = vmax.f32 %v2666, 0.0
      %v3155 = vmax.f32 %v2668, 0.0
      %v3156 = vmax.f32 %v2670, 0.0
      %v3157 = vmax.f32 %v2672, 0.0
      %v3158 = vmax.f32 %v2676, 0.0
      %v3159 = vmax.f32 %v2678, 0.0
      %v3160 = vmax.f32 %v2680, 0.0
      %v3161 = vmax.f32 %v2682, 0.0
      %v3162 = vmax.f32 %v2686, 0.0
      %v3163 = vmax.f32 %v2688, 0.0
      %v3164 = vmax.f32 %v2690, 0.0
      %v3165 = vmax.f32 %v2692, 0.0
      %v3166 = vmax.f32 %v2696, 0.0
      %v3167 = vmax.f32 %v2698, 0.0
      %v3168 = vmax.f32 %v2700, 0.0
      %v3169 = vmax.f32 %v2702, 0.0
      %v3170 = vmax.f32 %v2706, 0.0
      %v3171 = vmax.f32 %v2708, 0.0
      %v3172 = vmax.f32 %v2710, 0.0
      %v3173 = vmax.f32 %v2712, 0.0
      %v3174 = vmax.f32 %v2716, 0.0
      %v3175 = vmax.f32 %v2718, 0.0
      %v3176 = vmax.f32 %v2720, 0.0
      %v3177 = vmax.f32 %v2722, 0.0
      %v3178 = vmax.f32 %v2726, 0.0
      %v3179 = vmax.f32 %v2728, 0.0
      %v3180 = vmax.f32 %v2730, 0.0
      %v3181 = vmax.f32 %v2732, 0.0
      %v3182 = vmax.f32 %v2736, 0.0
      %v3183 = vmax.f32 %v2738, 0.0
      %v3184 = vmax.f32 %v2740, 0.0
      %v3185 = vmax.f32 %v2742, 0.0
      %v3186 = vmax.f32 %v2746, 0.0
      %v3187 = vmax.f32 %v2748, 0.0
      %v3188 = vmax.f32 %v2750, 0.0
      %v3189 = vmax.f32 %v2752, 0.0
      %v3190 = vmax.f32 %v2756, 0.0
      %v3191 = vmax.f32 %v2758, 0.0
      %v3192 = vmax.f32 %v2760, 0.0
      %v3193 = vmax.f32 %v2762, 0.0
      %v3194 = vmax.f32 %v2766, 0.0
      %v3195 = vmax.f32 %v2768, 0.0
      %v3196 = vmax.f32 %v2770, 0.0
      %v3197 = vmax.f32 %v2772, 0.0
      %v3198 = vmax.f32 %v2776, 0.0
      %v3199 = vmax.f32 %v2778, 0.0
      %v3200 = vmax.f32 %v2780, 0.0
      %v3201 = vmax.f32 %v2782, 0.0
      %v3202 = vmax.f32 %v2786, 0.0
      %v3203 = vmax.f32 %v2788, 0.0
      %v3204 = vmax.f32 %v2790, 0.0
      %v3205 = vmax.f32 %v2792, 0.0
      %v3206 = vmax.f32 %v2796, 0.0
      %v3207 = vmax.f32 %v2798, 0.0
      %v3208 = vmax.f32 %v2800, 0.0
      %v3209 = vmax.f32 %v2802, 0.0
      %v3210 = vmax.f32 %v2806, 0.0
      %v3211 = vmax.f32 %v2808, 0.0
      %v3212 = vmax.f32 %v2810, 0.0
      %v3213 = vmax.f32 %v2812, 0.0
      %v3214 = vmax.f32 %v2816, 0.0
      %v3215 = vmax.f32 %v2818, 0.0
      %v3216 = vmax.f32 %v2820, 0.0
      %v3217 = vmax.f32 %v2822, 0.0
      %v3218 = vmax.f32 %v2826, 0.0
      %v3219 = vmax.f32 %v2828, 0.0
      %v3220 = vmax.f32 %v2830, 0.0
      %v3221 = vmax.f32 %v2832, 0.0
      %v3222 = vmax.f32 %v2836, 0.0
      %v3223 = vmax.f32 %v2838, 0.0
      %v3224 = vmax.f32 %v2840, 0.0
      %v3225 = vmax.f32 %v2842, 0.0
      %v3226 = vmax.f32 %v2846, 0.0
      %v3227 = vmax.f32 %v2848, 0.0
      %v3228 = vmax.f32 %v2850, 0.0
      %v3229 = vmax.f32 %v2852, 0.0
      %v3230 = vmax.f32 %v2856, 0.0
      %v3231 = vmax.f32 %v2858, 0.0
      %v3232 = vmax.f32 %v2860, 0.0
      %v3233 = vmax.f32 %v2862, 0.0
      %v3234 = vmax.f32 %v2866, 0.0
      %v3235 = vmax.f32 %v2868, 0.0
      %v3236 = vmax.f32 %v2870, 0.0
      %v3237 = vmax.f32 %v2872, 0.0
      %v3238 = vmax.f32 %v2876, 0.0
      %v3239 = vmax.f32 %v2878, 0.0
      %v3240 = vmax.f32 %v2880, 0.0
      %v3241 = vmax.f32 %v2882, 0.0
      %v3242 = vmax.f32 %v2886, 0.0
      %v3243 = vmax.f32 %v2888, 0.0
      %v3244 = vmax.f32 %v2890, 0.0
      %v3245 = vmax.f32 %v2892, 0.0
      %v3246 = vmax.f32 %v2896, 0.0
      %v3247 = vmax.f32 %v2898, 0.0
      %v3248 = vmax.f32 %v2900, 0.0
      %v3249 = vmax.f32 %v2902, 0.0
      %v3250 = vmax.f32 %v2906, 0.0
      %v3251 = vmax.f32 %v2908, 0.0
      %v3252 = vmax.f32 %v2910, 0.0
      %v3253 = vmax.f32 %v2912, 0.0
      %v3254 = vmax.f32 %v2916, 0.0
      %v3255 = vmax.f32 %v2918, 0.0
      %v3256 = vmax.f32 %v2920, 0.0
      %v3257 = vmax.f32 %v2922, 0.0
      %v3258 = vmax.f32 %v2926, 0.0
      %v3259 = vmax.f32 %v2928, 0.0
      %v3260 = vmax.f32 %v2930, 0.0
      %v3261 = vmax.f32 %v2932, 0.0
      %v3262 = vmax.f32 %v2936, 0.0
      %v3263 = vmax.f32 %v2938, 0.0
      %v3264 = vmax.f32 %v2940, 0.0
      %v3265 = vmax.f32 %v2942, 0.0
      %v3266 = vmax.f32 %v2946, 0.0
      %v3267 = vmax.f32 %v2948, 0.0
      %v3268 = vmax.f32 %v2950, 0.0
      %v3269 = vmax.f32 %v2952, 0.0
      %v3270 = vmax.f32 %v2956, 0.0
      %v3271 = vmax.f32 %v2958, 0.0
      %v3272 = vmax.f32 %v2960, 0.0
      %v3273 = vmax.f32 %v2962, 0.0
      %v3274 = vmax.f32 %v2966, 0.0
      %v3275 = vmax.f32 %v2968, 0.0
      %v3276 = vmax.f32 %v2970, 0.0
      %v3277 = vmax.f32 %v2972, 0.0
      %v3278 = vmax.f32 %v2976, 0.0
      %v3279 = vmax.f32 %v2978, 0.0
      %v3280 = vmax.f32 %v2980, 0.0
      %v3281 = vmax.f32 %v2982, 0.0
      %v3282 = vmax.f32 %v2986, 0.0
      %v3283 = vmax.f32 %v2988, 0.0
      %v3284 = vmax.f32 %v2990, 0.0
      %v3285 = vmax.f32 %v2992, 0.0
      %v3286 = vmax.f32 %v2996, 0.0
      %v3287 = vmax.f32 %v2998, 0.0
      %v3288 = vmax.f32 %v3000, 0.0
      %v3289 = vmax.f32 %v3002, 0.0
      %v3290 = vmax.f32 %v3006, 0.0
      %v3291 = vmax.f32 %v3008, 0.0
      %v3292 = vmax.f32 %v3010, 0.0
      %v3293 = vmax.f32 %v3012, 0.0
      %v3294 = vmax.f32 %v3016, 0.0
      %v3295 = vmax.f32 %v3018, 0.0
      %v3296 = vmax.f32 %v3020, 0.0
      %v3297 = vmax.f32 %v3022, 0.0
      %v3298 = vmax.f32 %v3026, 0.0
      %v3299 = vmax.f32 %v3028, 0.0
      %v3300 = vmax.f32 %v3030, 0.0
      %v3301 = vmax.f32 %v3032, 0.0
      %v3302 = vmax.f32 %v3036, 0.0
      %v3303 = vmax.f32 %v3038, 0.0
      %v3304 = vmax.f32 %v3040, 0.0
      %v3305 = vmax.f32 %v3042, 0.0
      %v3306 = vmax.f32 %v3046, 0.0
      %v3307 = vmax.f32 %v3048, 0.0
      %v3308 = vmax.f32 %v3050, 0.0
      %v3309 = vmax.f32 %v3052, 0.0
      %v3310 = vpack.c.bf16 %v3056, %v3054
      %v3311 = vpack.c.bf16 %v3057, %v3055
      %v3312 = vpack.c.bf16 %v3060, %v3058
      %v3313 = vpack.c.bf16 %v3061, %v3059
      %v3314 = vpack.c.bf16 %v3064, %v3062
      %v3315 = vpack.c.bf16 %v3065, %v3063
      %v3316 = vpack.c.bf16 %v3068, %v3066
      %v3317 = vpack.c.bf16 %v3069, %v3067
      %v3318 = vpack.c.bf16 %v3072, %v3070
      %v3319 = vpack.c.bf16 %v3073, %v3071
      %v3320 = vpack.c.bf16 %v3076, %v3074
      %v3321 = vpack.c.bf16 %v3077, %v3075
      %v3322 = vpack.c.bf16 %v3080, %v3078
      %v3323 = vpack.c.bf16 %v3081, %v3079
      %v3324 = vpack.c.bf16 %v3084, %v3082
      %v3325 = vpack.c.bf16 %v3085, %v3083
      %v3326 = vpack.c.bf16 %v3088, %v3086
      %v3327 = vpack.c.bf16 %v3089, %v3087
      %v3328 = vpack.c.bf16 %v3092, %v3090
      %v3329 = vpack.c.bf16 %v3093, %v3091
      %v3330 = vpack.c.bf16 %v3096, %v3094
      %v3331 = vpack.c.bf16 %v3097, %v3095
      %v3332 = vpack.c.bf16 %v3100, %v3098
      %v3333 = vpack.c.bf16 %v3101, %v3099
      %v3334 = vpack.c.bf16 %v3104, %v3102
      %v3335 = vpack.c.bf16 %v3105, %v3103
      %v3336 = vpack.c.bf16 %v3108, %v3106
      %v3337 = vpack.c.bf16 %v3109, %v3107
      %v3338 = vpack.c.bf16 %v3112, %v3110
      %v3339 = vpack.c.bf16 %v3113, %v3111
      %v3340 = vpack.c.bf16 %v3116, %v3114
      %v3341 = vpack.c.bf16 %v3117, %v3115
      %v3342 = vpack.c.bf16 %v3120, %v3118
      %v3343 = vpack.c.bf16 %v3121, %v3119
      %v3344 = vpack.c.bf16 %v3124, %v3122
      %v3345 = vpack.c.bf16 %v3125, %v3123
      %v3346 = vpack.c.bf16 %v3128, %v3126
      %v3347 = vpack.c.bf16 %v3129, %v3127
      %v3348 = vpack.c.bf16 %v3132, %v3130
      %v3349 = vpack.c.bf16 %v3133, %v3131
      %v3350 = vpack.c.bf16 %v3136, %v3134
      %v3351 = vpack.c.bf16 %v3137, %v3135
      %v3352 = vpack.c.bf16 %v3140, %v3138
      %v3353 = vpack.c.bf16 %v3141, %v3139
      %v3354 = vpack.c.bf16 %v3144, %v3142
      %v3355 = vpack.c.bf16 %v3145, %v3143
      %v3356 = vpack.c.bf16 %v3148, %v3146
      %v3357 = vpack.c.bf16 %v3149, %v3147
      %v3358 = vpack.c.bf16 %v3152, %v3150
      %v3359 = vpack.c.bf16 %v3153, %v3151
      %v3360 = vpack.c.bf16 %v3156, %v3154
      %v3361 = vpack.c.bf16 %v3157, %v3155
      %v3362 = vpack.c.bf16 %v3160, %v3158
      %v3363 = vpack.c.bf16 %v3161, %v3159
      %v3364 = vpack.c.bf16 %v3164, %v3162
      %v3365 = vpack.c.bf16 %v3165, %v3163
      %v3366 = vpack.c.bf16 %v3168, %v3166
      %v3367 = vpack.c.bf16 %v3169, %v3167
      %v3368 = vpack.c.bf16 %v3172, %v3170
      %v3369 = vpack.c.bf16 %v3173, %v3171
      %v3370 = vpack.c.bf16 %v3176, %v3174
      %v3371 = vpack.c.bf16 %v3177, %v3175
      %v3372 = vpack.c.bf16 %v3180, %v3178
      %v3373 = vpack.c.bf16 %v3181, %v3179
      %v3374 = vpack.c.bf16 %v3184, %v3182
      %v3375 = vpack.c.bf16 %v3185, %v3183
      %v3376 = vpack.c.bf16 %v3188, %v3186
      %v3377 = vpack.c.bf16 %v3189, %v3187
      %v3378 = vpack.c.bf16 %v3192, %v3190
      %v3379 = vpack.c.bf16 %v3193, %v3191
      %v3380 = vpack.c.bf16 %v3196, %v3194
      %v3381 = vpack.c.bf16 %v3197, %v3195
      %v3382 = vpack.c.bf16 %v3200, %v3198
      %v3383 = vpack.c.bf16 %v3201, %v3199
      %v3384 = vpack.c.bf16 %v3204, %v3202
      %v3385 = vpack.c.bf16 %v3205, %v3203
      %v3386 = vpack.c.bf16 %v3208, %v3206
      %v3387 = vpack.c.bf16 %v3209, %v3207
      %v3388 = vpack.c.bf16 %v3212, %v3210
      %v3389 = vpack.c.bf16 %v3213, %v3211
      %v3390 = vpack.c.bf16 %v3216, %v3214
      %v3391 = vpack.c.bf16 %v3217, %v3215
      %v3392 = vpack.c.bf16 %v3220, %v3218
      %v3393 = vpack.c.bf16 %v3221, %v3219
      %v3394 = vpack.c.bf16 %v3224, %v3222
      %v3395 = vpack.c.bf16 %v3225, %v3223
      %v3396 = vpack.c.bf16 %v3228, %v3226
      %v3397 = vpack.c.bf16 %v3229, %v3227
      %v3398 = vpack.c.bf16 %v3232, %v3230
      %v3399 = vpack.c.bf16 %v3233, %v3231
      %v3400 = vpack.c.bf16 %v3236, %v3234
      %v3401 = vpack.c.bf16 %v3237, %v3235
      %v3402 = vpack.c.bf16 %v3240, %v3238
      %v3403 = vpack.c.bf16 %v3241, %v3239
      %v3404 = vpack.c.bf16 %v3244, %v3242
      %v3405 = vpack.c.bf16 %v3245, %v3243
      %v3406 = vpack.c.bf16 %v3248, %v3246
      %v3407 = vpack.c.bf16 %v3249, %v3247
      %v3408 = vpack.c.bf16 %v3252, %v3250
      %v3409 = vpack.c.bf16 %v3253, %v3251
      %v3410 = vpack.c.bf16 %v3256, %v3254
      %v3411 = vpack.c.bf16 %v3257, %v3255
      %v3412 = vpack.c.bf16 %v3260, %v3258
      %v3413 = vpack.c.bf16 %v3261, %v3259
      %v3414 = vpack.c.bf16 %v3264, %v3262
      %v3415 = vpack.c.bf16 %v3265, %v3263
      %v3416 = vpack.c.bf16 %v3268, %v3266
      %v3417 = vpack.c.bf16 %v3269, %v3267
      %v3418 = vpack.c.bf16 %v3272, %v3270
      %v3419 = vpack.c.bf16 %v3273, %v3271
      %v3420 = vpack.c.bf16 %v3276, %v3274
      %v3421 = vpack.c.bf16 %v3277, %v3275
      %v3422 = vpack.c.bf16 %v3280, %v3278
      %v3423 = vpack.c.bf16 %v3281, %v3279
      %v3424 = vpack.c.bf16 %v3284, %v3282
      %v3425 = vpack.c.bf16 %v3285, %v3283
      %v3426 = vpack.c.bf16 %v3288, %v3286
      %v3427 = vpack.c.bf16 %v3289, %v3287
      %v3428 = vpack.c.bf16 %v3292, %v3290
      %v3429 = vpack.c.bf16 %v3293, %v3291
      %v3430 = vpack.c.bf16 %v3296, %v3294
      %v3431 = vpack.c.bf16 %v3297, %v3295
      %v3432 = vpack.c.bf16 %v3300, %v3298
      %v3433 = vpack.c.bf16 %v3301, %v3299
      %v3434 = vpack.c.bf16 %v3304, %v3302
      %v3435 = vpack.c.bf16 %v3305, %v3303
      %v3436 = vpack.c.bf16 %v3308, %v3306
      %v3437 = vpack.c.bf16 %v3309, %v3307
      %v3438 = vld [vmem:[%s5] sm:$0xff]
      %v3439 = vld [vmem:[%s5 + $0x8] sm:$0xff]
      %v3440 = vld [vmem:[%s5 + $0x10] sm:$0xff]
      %v3441 = vld [vmem:[%s5 + $0x18] sm:$0xff]
      %v3442 = vld [vmem:[%s5 + $0x20] sm:$0xff]
      %v3443 = vld [vmem:[%s5 + $0x28] sm:$0xff]
      %v3444 = vld [vmem:[%s5 + $0x30] sm:$0xff]
      %v3445 = vld [vmem:[%s5 + $0x38] sm:$0xff]
      %v3446 = vld [vmem:[%s5 + $0x40] sm:$0xff]
      %v3447 = vld [vmem:[%s5 + $0x48] sm:$0xff]
      %v3448 = vld [vmem:[%s5 + $0x50] sm:$0xff]
      %v3449 = vld [vmem:[%s5 + $0x58] sm:$0xff]
      %v3450 = vld [vmem:[%s5 + $0x60] sm:$0xff]
      %v3451 = vld [vmem:[%s5 + $0x68] sm:$0xff]
      %v3452 = vld [vmem:[%s5 + $0x70] sm:$0xff]
      %v3453 = vld [vmem:[%s5 + $0x78] sm:$0xff]
      %v3454 = vld [vmem:[%s5 + $0x80] sm:$0xff]
      %v3455 = vld [vmem:[%s5 + $0x88] sm:$0xff]
      %v3456 = vld [vmem:[%s5 + $0x90] sm:$0xff]
      %v3457 = vld [vmem:[%s5 + $0x98] sm:$0xff]
      %v3458 = vld [vmem:[%s5 + $0xa0] sm:$0xff]
      %v3459 = vld [vmem:[%s5 + $0xa8] sm:$0xff]
      %v3460 = vld [vmem:[%s5 + $0xb0] sm:$0xff]
      %v3461 = vld [vmem:[%s5 + $0xb8] sm:$0xff]
      %v3462 = vld [vmem:[%s5 + $0xc0] sm:$0xff]
      %v3463 = vld [vmem:[%s5 + $0xc8] sm:$0xff]
      %v3464 = vld [vmem:[%s5 + $0xd0] sm:$0xff]
      %v3465 = vld [vmem:[%s5 + $0xd8] sm:$0xff]
      %v3466 = vld [vmem:[%s5 + $0xe0] sm:$0xff]
      %v3467 = vld [vmem:[%s5 + $0xe8] sm:$0xff]
      %v3468 = vld [vmem:[%s5 + $0xf0] sm:$0xff]
      %v3469 = vld [vmem:[%s5 + $0xf8] sm:$0xff]
      %v3470 = vld [vmem:[%s6] sm:$0x3]
      %v3472 = vlaneseq
      %v3473 = vshrl.u32 %v3472, 7
      %v3474 = vsub.s32 0, %v3473
      %v3475 = vrot.slane %v3470, %v3474
      %v3476 = vlaneseq
      %v3477 = vshrl.u32 %v3476, 7
      %v3478 = vsub.s32 1, %v3477
      %v3479 = vrot.slane %v3470, %v3478
      %v3514 = vunpack.c.l.b16 %v3438
      %v3515 = vunpack.c.h.b16 %v3438
      %v3516 = vunpack.c.l.b16 %v3439
      %v3517 = vunpack.c.h.b16 %v3439
      %v3518 = vunpack.c.l.b16 %v3440
      %v3519 = vunpack.c.h.b16 %v3440
      %v3520 = vunpack.c.l.b16 %v3441
      %v3521 = vunpack.c.h.b16 %v3441
      %v3522 = vunpack.c.l.b16 %v3442
      %v3523 = vunpack.c.h.b16 %v3442
      %v3524 = vunpack.c.l.b16 %v3443
      %v3525 = vunpack.c.h.b16 %v3443
      %v3526 = vunpack.c.l.b16 %v3444
      %v3527 = vunpack.c.h.b16 %v3444
      %v3528 = vunpack.c.l.b16 %v3445
      %v3529 = vunpack.c.h.b16 %v3445
      %v3530 = vunpack.c.l.b16 %v3446
      %v3531 = vunpack.c.h.b16 %v3446
      %v3532 = vunpack.c.l.b16 %v3447
      %v3533 = vunpack.c.h.b16 %v3447
      %v3534 = vunpack.c.l.b16 %v3448
      %v3535 = vunpack.c.h.b16 %v3448
      %v3536 = vunpack.c.l.b16 %v3449
      %v3537 = vunpack.c.h.b16 %v3449
      %v3538 = vunpack.c.l.b16 %v3450
      %v3539 = vunpack.c.h.b16 %v3450
      %v3540 = vunpack.c.l.b16 %v3451
      %v3541 = vunpack.c.h.b16 %v3451
      %v3542 = vunpack.c.l.b16 %v3452
      %v3543 = vunpack.c.h.b16 %v3452
      %v3544 = vunpack.c.l.b16 %v3453
      %v3545 = vunpack.c.h.b16 %v3453
      %v3546 = vunpack.c.l.b16 %v3454
      %v3547 = vunpack.c.h.b16 %v3454
      %v3548 = vunpack.c.l.b16 %v3455
      %v3549 = vunpack.c.h.b16 %v3455
      %v3550 = vunpack.c.l.b16 %v3456
      %v3551 = vunpack.c.h.b16 %v3456
      %v3552 = vunpack.c.l.b16 %v3457
      %v3553 = vunpack.c.h.b16 %v3457
      %v3554 = vunpack.c.l.b16 %v3458
      %v3555 = vunpack.c.h.b16 %v3458
      %v3556 = vunpack.c.l.b16 %v3459
      %v3557 = vunpack.c.h.b16 %v3459
      %v3558 = vunpack.c.l.b16 %v3460
      %v3559 = vunpack.c.h.b16 %v3460
      %v3560 = vunpack.c.l.b16 %v3461
      %v3561 = vunpack.c.h.b16 %v3461
      %v3562 = vunpack.c.l.b16 %v3462
      %v3563 = vunpack.c.h.b16 %v3462
      %v3564 = vunpack.c.l.b16 %v3463
      %v3565 = vunpack.c.h.b16 %v3463
      %v3566 = vunpack.c.l.b16 %v3464
      %v3567 = vunpack.c.h.b16 %v3464
      %v3568 = vunpack.c.l.b16 %v3465
      %v3569 = vunpack.c.h.b16 %v3465
      %v3570 = vunpack.c.l.b16 %v3466
      %v3571 = vunpack.c.h.b16 %v3466
      %v3572 = vunpack.c.l.b16 %v3467
      %v3573 = vunpack.c.h.b16 %v3467
      %v3574 = vunpack.c.l.b16 %v3468
      %v3575 = vunpack.c.h.b16 %v3468
      %v3576 = vunpack.c.l.b16 %v3469
      %v3577 = vunpack.c.h.b16 %v3469
      %v3578 = vpack.c.b16 %v3516, %v3514
      %v3579 = vpack.c.b16 %v3517, %v3515
      %v3580 = vpack.c.b16 %v3520, %v3518
      %v3581 = vpack.c.b16 %v3521, %v3519
      %v3582 = vpack.c.b16 %v3524, %v3522
      %v3583 = vpack.c.b16 %v3525, %v3523
      %v3584 = vpack.c.b16 %v3528, %v3526
      %v3585 = vpack.c.b16 %v3529, %v3527
      %v3586 = vpack.c.b16 %v3532, %v3530
      %v3587 = vpack.c.b16 %v3533, %v3531
      %v3588 = vpack.c.b16 %v3536, %v3534
      %v3589 = vpack.c.b16 %v3537, %v3535
      %v3590 = vpack.c.b16 %v3540, %v3538
      %v3591 = vpack.c.b16 %v3541, %v3539
      %v3592 = vpack.c.b16 %v3544, %v3542
      %v3593 = vpack.c.b16 %v3545, %v3543
      %v3594 = vpack.c.b16 %v3548, %v3546
      %v3595 = vpack.c.b16 %v3549, %v3547
      %v3596 = vpack.c.b16 %v3552, %v3550
      %v3597 = vpack.c.b16 %v3553, %v3551
      %v3598 = vpack.c.b16 %v3556, %v3554
      %v3599 = vpack.c.b16 %v3557, %v3555
      %v3600 = vpack.c.b16 %v3560, %v3558
      %v3601 = vpack.c.b16 %v3561, %v3559
      %v3602 = vpack.c.b16 %v3564, %v3562
      %v3603 = vpack.c.b16 %v3565, %v3563
      %v3604 = vpack.c.b16 %v3568, %v3566
      %v3605 = vpack.c.b16 %v3569, %v3567
      %v3606 = vpack.c.b16 %v3572, %v3570
      %v3607 = vpack.c.b16 %v3573, %v3571
      %v3608 = vpack.c.b16 %v3576, %v3574
      %v3609 = vpack.c.b16 %v3577, %v3575
      %3642 = vmatprep.subr.bf16.mxu0 %v3579
      %3643 = vmatpush1.bf16.msra.mxu0 %v3578
      %3644 = vmatprep.subr.bf16.mxu0 %v3581
      %3645 = vmatpush1.bf16.msra.mxu0 %v3580
      %3646 = vmatprep.subr.bf16.mxu0 %v3583
      %3647 = vmatpush1.bf16.msra.mxu0 %v3582
      %3648 = vmatprep.subr.bf16.mxu0 %v3585
      %3649 = vmatpush1.bf16.msra.mxu0 %v3584
      %3650 = vmatprep.subr.bf16.mxu0 %v3587
      %3651 = vmatpush1.bf16.msra.mxu0 %v3586
      %3652 = vmatprep.subr.bf16.mxu0 %v3589
      %3653 = vmatpush1.bf16.msra.mxu0 %v3588
      %3654 = vmatprep.subr.bf16.mxu0 %v3591
      %3655 = vmatpush1.bf16.msra.mxu0 %v3590
      %3656 = vmatprep.subr.bf16.mxu0 %v3593
      %3657 = vmatpush1.bf16.msra.mxu0 %v3592
      %3658 = vmatprep.subr.bf16.mxu0 %v3595
      %3659 = vmatpush1.bf16.msra.mxu0 %v3594
      %3660 = vmatprep.subr.bf16.mxu0 %v3597
      %3661 = vmatpush1.bf16.msra.mxu0 %v3596
      %3662 = vmatprep.subr.bf16.mxu0 %v3599
      %3663 = vmatpush1.bf16.msra.mxu0 %v3598
      %3664 = vmatprep.subr.bf16.mxu0 %v3601
      %3665 = vmatpush1.bf16.msra.mxu0 %v3600
      %3666 = vmatprep.subr.bf16.mxu0 %v3603
      %3667 = vmatpush1.bf16.msra.mxu0 %v3602
      %3668 = vmatprep.subr.bf16.mxu0 %v3605
      %3669 = vmatpush1.bf16.msra.mxu0 %v3604
      %3670 = vmatprep.subr.bf16.mxu0 %v3607
      %3671 = vmatpush1.bf16.msra.mxu0 %v3606
      %3672 = vmatprep.subr.bf16.mxu0 %v3609
      %3673 = vmatpush1.bf16.msra.mxu0 %v3608
      %3674 = vmatprep.mubr.bf16.mxu0 %v3311
      %3675 = vmatmul.mubr.bf16.gmra.mrb[0].mxu0 %v3310
      %v3676 = vpop.f32.mrb[0].mxu0
      %v3677 = vadd.f32 %v3475, %v3676
      %v3678 = vpop.f32.mrb[0].mxu0
      %v3679 = vadd.f32 %v3479, %v3678
      %v3680 = vpop.f32.mrb[0].mxu0
      %v3681 = vadd.f32 %v3475, %v3680
      %v3682 = vpop.f32.mrb[0].mxu0
      %v3683 = vadd.f32 %v3479, %v3682
      %3684 = vmatprep.mubr.bf16.mxu0 %v3313
      %3685 = vmatmul.mubr.bf16.gmra.mrb[0].mxu0 %v3312
      %v3686 = vpop.f32.mrb[0].mxu0
      %v3687 = vadd.f32 %v3475, %v3686
      %v3688 = vpop.f32.mrb[0].mxu0
      %v3689 = vadd.f32 %v3479, %v3688
      %v3690 = vpop.f32.mrb[0].mxu0
      %v3691 = vadd.f32 %v3475, %v3690
      %v3692 = vpop.f32.mrb[0].mxu0
      %v3693 = vadd.f32 %v3479, %v3692
      %3694 = vmatprep.mubr.bf16.mxu0 %v3315
      %3695 = vmatmul.mubr.bf16.gmra.mrb[0].mxu0 %v3314
      %v3696 = vpop.f32.mrb[0].mxu0
      %v3697 = vadd.f32 %v3475, %v3696
      %v3698 = vpop.f32.mrb[0].mxu0
      %v3699 = vadd.f32 %v3479, %v3698
      %v3700 = vpop.f32.mrb[0].mxu0
      %v3701 = vadd.f32 %v3475, %v3700
      %v3702 = vpop.f32.mrb[0].mxu0
      %v3703 = vadd.f32 %v3479, %v3702
      %3704 = vmatprep.mubr.bf16.mxu0 %v3317
      %3705 = vmatmul.mubr.bf16.gmra.mrb[0].mxu0 %v3316
      %v3706 = vpop.f32.mrb[0].mxu0
      %v3707 = vadd.f32 %v3475, %v3706
      %v3708 = vpop.f32.mrb[0].mxu0
      %v3709 = vadd.f32 %v3479, %v3708
      %v3710 = vpop.f32.mrb[0].mxu0
      %v3711 = vadd.f32 %v3475, %v3710
      %v3712 = vpop.f32.mrb[0].mxu0
      %v3713 = vadd.f32 %v3479, %v3712
      %3714 = vmatprep.mubr.bf16.mxu0 %v3319
      %3715 = vmatmul.mubr.bf16.gmra.mrb[0].mxu0 %v3318
      %v3716 = vpop.f32.mrb[0].mxu0
      %v3717 = vadd.f32 %v3475, %v3716
      %v3718 = vpop.f32.mrb[0].mxu0
      %v3719 = vadd.f32 %v3479, %v3718
      %v3720 = vpop.f32.mrb[0].mxu0
      %v3721 = vadd.f32 %v3475, %v3720
      %v3722 = vpop.f32.mrb[0].mxu0
      %v3723 = vadd.f32 %v3479, %v3722
      %3724 = vmatprep.mubr.bf16.mxu0 %v3321
      %3725 = vmatmul.mubr.bf16.gmra.mrb[0].mxu0 %v3320
      %v3726 = vpop.f32.mrb[0].mxu0
      %v3727 = vadd.f32 %v3475, %v3726
      %v3728 = vpop.f32.mrb[0].mxu0
      %v3729 = vadd.f32 %v3479, %v3728
      %v3730 = vpop.f32.mrb[0].mxu0
      %v3731 = vadd.f32 %v3475, %v3730
      %v3732 = vpop.f32.mrb[0].mxu0
      %v3733 = vadd.f32 %v3479, %v3732
      %3734 = vmatprep.mubr.bf16.mxu0 %v3323
      %3735 = vmatmul.mubr.bf16.gmra.mrb[0].mxu0 %v3322
      %v3736 = vpop.f32.mrb[0].mxu0
      %v3737 = vadd.f32 %v3475, %v3736
      %v3738 = vpop.f32.mrb[0].mxu0
      %v3739 = vadd.f32 %v3479, %v3738
      %v3740 = vpop.f32.mrb[0].mxu0
      %v3741 = vadd.f32 %v3475, %v3740
      %v3742 = vpop.f32.mrb[0].mxu0
      %v3743 = vadd.f32 %v3479, %v3742
      %3744 = vmatprep.mubr.bf16.mxu0 %v3325
      %3745 = vmatmul.mubr.bf16.gmra.mrb[0].mxu0 %v3324
      %v3746 = vpop.f32.mrb[0].mxu0
      %v3747 = vadd.f32 %v3475, %v3746
      %v3748 = vpop.f32.mrb[0].mxu0
      %v3749 = vadd.f32 %v3479, %v3748
      %v3750 = vpop.f32.mrb[0].mxu0
      %v3751 = vadd.f32 %v3475, %v3750
      %v3752 = vpop.f32.mrb[0].mxu0
      %v3753 = vadd.f32 %v3479, %v3752
      %3754 = vmatprep.mubr.bf16.mxu0 %v3327
      %3755 = vmatmul.mubr.bf16.gmra.mrb[0].mxu0 %v3326
      %v3756 = vpop.f32.mrb[0].mxu0
      %v3757 = vadd.f32 %v3475, %v3756
      %v3758 = vpop.f32.mrb[0].mxu0
      %v3759 = vadd.f32 %v3479, %v3758
      %v3760 = vpop.f32.mrb[0].mxu0
      %v3761 = vadd.f32 %v3475, %v3760
      %v3762 = vpop.f32.mrb[0].mxu0
      %v3763 = vadd.f32 %v3479, %v3762
      %3764 = vmatprep.mubr.bf16.mxu0 %v3329
      %3765 = vmatmul.mubr.bf16.gmra.mrb[0].mxu0 %v3328
      %v3766 = vpop.f32.mrb[0].mxu0
      %v3767 = vadd.f32 %v3475, %v3766
      %v3768 = vpop.f32.mrb[0].mxu0
      %v3769 = vadd.f32 %v3479, %v3768
      %v3770 = vpop.f32.mrb[0].mxu0
      %v3771 = vadd.f32 %v3475, %v3770
      %v3772 = vpop.f32.mrb[0].mxu0
      %v3773 = vadd.f32 %v3479, %v3772
      %3774 = vmatprep.mubr.bf16.mxu0 %v3331
      %3775 = vmatmul.mubr.bf16.gmra.mrb[0].mxu0 %v3330
      %v3776 = vpop.f32.mrb[0].mxu0
      %v3777 = vadd.f32 %v3475, %v3776
      %v3778 = vpop.f32.mrb[0].mxu0
      %v3779 = vadd.f32 %v3479, %v3778
      %v3780 = vpop.f32.mrb[0].mxu0
      %v3781 = vadd.f32 %v3475, %v3780
      %v3782 = vpop.f32.mrb[0].mxu0
      %v3783 = vadd.f32 %v3479, %v3782
      %3784 = vmatprep.mubr.bf16.mxu0 %v3333
      %3785 = vmatmul.mubr.bf16.gmra.mrb[0].mxu0 %v3332
      %v3786 = vpop.f32.mrb[0].mxu0
      %v3787 = vadd.f32 %v3475, %v3786
      %v3788 = vpop.f32.mrb[0].mxu0
      %v3789 = vadd.f32 %v3479, %v3788
      %v3790 = vpop.f32.mrb[0].mxu0
      %v3791 = vadd.f32 %v3475, %v3790
      %v3792 = vpop.f32.mrb[0].mxu0
      %v3793 = vadd.f32 %v3479, %v3792
      %3794 = vmatprep.mubr.bf16.mxu0 %v3335
      %3795 = vmatmul.mubr.bf16.gmra.mrb[0].mxu0 %v3334
      %v3796 = vpop.f32.mrb[0].mxu0
      %v3797 = vadd.f32 %v3475, %v3796
      %v3798 = vpop.f32.mrb[0].mxu0
      %v3799 = vadd.f32 %v3479, %v3798
      %v3800 = vpop.f32.mrb[0].mxu0
      %v3801 = vadd.f32 %v3475, %v3800
      %v3802 = vpop.f32.mrb[0].mxu0
      %v3803 = vadd.f32 %v3479, %v3802
      %3804 = vmatprep.mubr.bf16.mxu0 %v3337
      %3805 = vmatmul.mubr.bf16.gmra.mrb[0].mxu0 %v3336
      %v3806 = vpop.f32.mrb[0].mxu0
      %v3807 = vadd.f32 %v3475, %v3806
      %v3808 = vpop.f32.mrb[0].mxu0
      %v3809 = vadd.f32 %v3479, %v3808
      %v3810 = vpop.f32.mrb[0].mxu0
      %v3811 = vadd.f32 %v3475, %v3810
      %v3812 = vpop.f32.mrb[0].mxu0
      %v3813 = vadd.f32 %v3479, %v3812
      %3814 = vmatprep.mubr.bf16.mxu0 %v3339
      %3815 = vmatmul.mubr.bf16.gmra.mrb[0].mxu0 %v3338
      %v3816 = vpop.f32.mrb[0].mxu0
      %v3817 = vadd.f32 %v3475, %v3816
      %v3818 = vpop.f32.mrb[0].mxu0
      %v3819 = vadd.f32 %v3479, %v3818
      %v3820 = vpop.f32.mrb[0].mxu0
      %v3821 = vadd.f32 %v3475, %v3820
      %v3822 = vpop.f32.mrb[0].mxu0
      %v3823 = vadd.f32 %v3479, %v3822
      %3824 = vmatprep.mubr.bf16.mxu0 %v3341
      %3825 = vmatmul.mubr.bf16.gmra.mrb[0].mxu0 %v3340
      %v3826 = vpop.f32.mrb[0].mxu0
      %v3827 = vadd.f32 %v3475, %v3826
      %v3828 = vpop.f32.mrb[0].mxu0
      %v3829 = vadd.f32 %v3479, %v3828
      %v3830 = vpop.f32.mrb[0].mxu0
      %v3831 = vadd.f32 %v3475, %v3830
      %v3832 = vpop.f32.mrb[0].mxu0
      %v3833 = vadd.f32 %v3479, %v3832
      %3834 = vmatprep.mubr.bf16.mxu0 %v3343
      %3835 = vmatmul.mubr.bf16.gmra.mrb[0].mxu0 %v3342
      %v3836 = vpop.f32.mrb[0].mxu0
      %v3837 = vadd.f32 %v3475, %v3836
      %v3838 = vpop.f32.mrb[0].mxu0
      %v3839 = vadd.f32 %v3479, %v3838
      %v3840 = vpop.f32.mrb[0].mxu0
      %v3841 = vadd.f32 %v3475, %v3840
      %v3842 = vpop.f32.mrb[0].mxu0
      %v3843 = vadd.f32 %v3479, %v3842
      %3844 = vmatprep.mubr.bf16.mxu0 %v3345
      %3845 = vmatmul.mubr.bf16.gmra.mrb[0].mxu0 %v3344
      %v3846 = vpop.f32.mrb[0].mxu0
      %v3847 = vadd.f32 %v3475, %v3846
      %v3848 = vpop.f32.mrb[0].mxu0
      %v3849 = vadd.f32 %v3479, %v3848
      %v3850 = vpop.f32.mrb[0].mxu0
      %v3851 = vadd.f32 %v3475, %v3850
      %v3852 = vpop.f32.mrb[0].mxu0
      %v3853 = vadd.f32 %v3479, %v3852
      %3854 = vmatprep.mubr.bf16.mxu0 %v3347
      %3855 = vmatmul.mubr.bf16.gmra.mrb[0].mxu0 %v3346
      %v3856 = vpop.f32.mrb[0].mxu0
      %v3857 = vadd.f32 %v3475, %v3856
      %v3858 = vpop.f32.mrb[0].mxu0
      %v3859 = vadd.f32 %v3479, %v3858
      %v3860 = vpop.f32.mrb[0].mxu0
      %v3861 = vadd.f32 %v3475, %v3860
      %v3862 = vpop.f32.mrb[0].mxu0
      %v3863 = vadd.f32 %v3479, %v3862
      %3864 = vmatprep.mubr.bf16.mxu0 %v3349
      %3865 = vmatmul.mubr.bf16.gmra.mrb[0].mxu0 %v3348
      %v3866 = vpop.f32.mrb[0].mxu0
      %v3867 = vadd.f32 %v3475, %v3866
      %v3868 = vpop.f32.mrb[0].mxu0
      %v3869 = vadd.f32 %v3479, %v3868
      %v3870 = vpop.f32.mrb[0].mxu0
      %v3871 = vadd.f32 %v3475, %v3870
      %v3872 = vpop.f32.mrb[0].mxu0
      %v3873 = vadd.f32 %v3479, %v3872
      %3874 = vmatprep.mubr.bf16.mxu0 %v3351
      %3875 = vmatmul.mubr.bf16.gmra.mrb[0].mxu0 %v3350
      %v3876 = vpop.f32.mrb[0].mxu0
      %v3877 = vadd.f32 %v3475, %v3876
      %v3878 = vpop.f32.mrb[0].mxu0
      %v3879 = vadd.f32 %v3479, %v3878
      %v3880 = vpop.f32.mrb[0].mxu0
      %v3881 = vadd.f32 %v3475, %v3880
      %v3882 = vpop.f32.mrb[0].mxu0
      %v3883 = vadd.f32 %v3479, %v3882
      %3884 = vmatprep.mubr.bf16.mxu0 %v3353
      %3885 = vmatmul.mubr.bf16.gmra.mrb[0].mxu0 %v3352
      %v3886 = vpop.f32.mrb[0].mxu0
      %v3887 = vadd.f32 %v3475, %v3886
      %v3888 = vpop.f32.mrb[0].mxu0
      %v3889 = vadd.f32 %v3479, %v3888
      %v3890 = vpop.f32.mrb[0].mxu0
      %v3891 = vadd.f32 %v3475, %v3890
      %v3892 = vpop.f32.mrb[0].mxu0
      %v3893 = vadd.f32 %v3479, %v3892
      %3894 = vmatprep.mubr.bf16.mxu0 %v3355
      %3895 = vmatmul.mubr.bf16.gmra.mrb[0].mxu0 %v3354
      %v3896 = vpop.f32.mrb[0].mxu0
      %v3897 = vadd.f32 %v3475, %v3896
      %v3898 = vpop.f32.mrb[0].mxu0
      %v3899 = vadd.f32 %v3479, %v3898
      %v3900 = vpop.f32.mrb[0].mxu0
      %v3901 = vadd.f32 %v3475, %v3900
      %v3902 = vpop.f32.mrb[0].mxu0
      %v3903 = vadd.f32 %v3479, %v3902
      %3904 = vmatprep.mubr.bf16.mxu0 %v3357
      %3905 = vmatmul.mubr.bf16.gmra.mrb[0].mxu0 %v3356
      %v3906 = vpop.f32.mrb[0].mxu0
      %v3907 = vadd.f32 %v3475, %v3906
      %v3908 = vpop.f32.mrb[0].mxu0
      %v3909 = vadd.f32 %v3479, %v3908
      %v3910 = vpop.f32.mrb[0].mxu0
      %v3911 = vadd.f32 %v3475, %v3910
      %v3912 = vpop.f32.mrb[0].mxu0
      %v3913 = vadd.f32 %v3479, %v3912
      %3914 = vmatprep.mubr.bf16.mxu0 %v3359
      %3915 = vmatmul.mubr.bf16.gmra.mrb[0].mxu0 %v3358
      %v3916 = vpop.f32.mrb[0].mxu0
      %v3917 = vadd.f32 %v3475, %v3916
      %v3918 = vpop.f32.mrb[0].mxu0
      %v3919 = vadd.f32 %v3479, %v3918
      %v3920 = vpop.f32.mrb[0].mxu0
      %v3921 = vadd.f32 %v3475, %v3920
      %v3922 = vpop.f32.mrb[0].mxu0
      %v3923 = vadd.f32 %v3479, %v3922
      %3924 = vmatprep.mubr.bf16.mxu0 %v3361
      %3925 = vmatmul.mubr.bf16.gmra.mrb[0].mxu0 %v3360
      %v3926 = vpop.f32.mrb[0].mxu0
      %v3927 = vadd.f32 %v3475, %v3926
      %v3928 = vpop.f32.mrb[0].mxu0
      %v3929 = vadd.f32 %v3479, %v3928
      %v3930 = vpop.f32.mrb[0].mxu0
      %v3931 = vadd.f32 %v3475, %v3930
      %v3932 = vpop.f32.mrb[0].mxu0
      %v3933 = vadd.f32 %v3479, %v3932
      %3934 = vmatprep.mubr.bf16.mxu0 %v3363
      %3935 = vmatmul.mubr.bf16.gmra.mrb[0].mxu0 %v3362
      %v3936 = vpop.f32.mrb[0].mxu0
      %v3937 = vadd.f32 %v3475, %v3936
      %v3938 = vpop.f32.mrb[0].mxu0
      %v3939 = vadd.f32 %v3479, %v3938
      %v3940 = vpop.f32.mrb[0].mxu0
      %v3941 = vadd.f32 %v3475, %v3940
      %v3942 = vpop.f32.mrb[0].mxu0
      %v3943 = vadd.f32 %v3479, %v3942
      %3944 = vmatprep.mubr.bf16.mxu0 %v3365
      %3945 = vmatmul.mubr.bf16.gmra.mrb[0].mxu0 %v3364
      %v3946 = vpop.f32.mrb[0].mxu0
      %v3947 = vadd.f32 %v3475, %v3946
      %v3948 = vpop.f32.mrb[0].mxu0
      %v3949 = vadd.f32 %v3479, %v3948
      %v3950 = vpop.f32.mrb[0].mxu0
      %v3951 = vadd.f32 %v3475, %v3950
      %v3952 = vpop.f32.mrb[0].mxu0
      %v3953 = vadd.f32 %v3479, %v3952
      %3954 = vmatprep.mubr.bf16.mxu0 %v3367
      %3955 = vmatmul.mubr.bf16.gmra.mrb[0].mxu0 %v3366
      %v3956 = vpop.f32.mrb[0].mxu0
      %v3957 = vadd.f32 %v3475, %v3956
      %v3958 = vpop.f32.mrb[0].mxu0
      %v3959 = vadd.f32 %v3479, %v3958
      %v3960 = vpop.f32.mrb[0].mxu0
      %v3961 = vadd.f32 %v3475, %v3960
      %v3962 = vpop.f32.mrb[0].mxu0
      %v3963 = vadd.f32 %v3479, %v3962
      %3964 = vmatprep.mubr.bf16.mxu0 %v3369
      %3965 = vmatmul.mubr.bf16.gmra.mrb[0].mxu0 %v3368
      %v3966 = vpop.f32.mrb[0].mxu0
      %v3967 = vadd.f32 %v3475, %v3966
      %v3968 = vpop.f32.mrb[0].mxu0
      %v3969 = vadd.f32 %v3479, %v3968
      %v3970 = vpop.f32.mrb[0].mxu0
      %v3971 = vadd.f32 %v3475, %v3970
      %v3972 = vpop.f32.mrb[0].mxu0
      %v3973 = vadd.f32 %v3479, %v3972
      %3974 = vmatprep.mubr.bf16.mxu0 %v3371
      %3975 = vmatmul.mubr.bf16.gmra.mrb[0].mxu0 %v3370
      %v3976 = vpop.f32.mrb[0].mxu0
      %v3977 = vadd.f32 %v3475, %v3976
      %v3978 = vpop.f32.mrb[0].mxu0
      %v3979 = vadd.f32 %v3479, %v3978
      %v3980 = vpop.f32.mrb[0].mxu0
      %v3981 = vadd.f32 %v3475, %v3980
      %v3982 = vpop.f32.mrb[0].mxu0
      %v3983 = vadd.f32 %v3479, %v3982
      %3984 = vmatprep.mubr.bf16.mxu0 %v3373
      %3985 = vmatmul.mubr.bf16.gmra.mrb[0].mxu0 %v3372
      %v3986 = vpop.f32.mrb[0].mxu0
      %v3987 = vadd.f32 %v3475, %v3986
      %v3988 = vpop.f32.mrb[0].mxu0
      %v3989 = vadd.f32 %v3479, %v3988
      %v3990 = vpop.f32.mrb[0].mxu0
      %v3991 = vadd.f32 %v3475, %v3990
      %v3992 = vpop.f32.mrb[0].mxu0
      %v3993 = vadd.f32 %v3479, %v3992
      %3994 = vmatprep.mubr.bf16.mxu0 %v3375
      %3995 = vmatmul.mubr.bf16.gmra.mrb[0].mxu0 %v3374
      %v3996 = vpop.f32.mrb[0].mxu0
      %v3997 = vadd.f32 %v3475, %v3996
      %v3998 = vpop.f32.mrb[0].mxu0
      %v3999 = vadd.f32 %v3479, %v3998
      %v4000 = vpop.f32.mrb[0].mxu0
      %v4001 = vadd.f32 %v3475, %v4000
      %v4002 = vpop.f32.mrb[0].mxu0
      %v4003 = vadd.f32 %v3479, %v4002
      %4004 = vmatprep.mubr.bf16.mxu0 %v3377
      %4005 = vmatmul.mubr.bf16.gmra.mrb[0].mxu0 %v3376
      %v4006 = vpop.f32.mrb[0].mxu0
      %v4007 = vadd.f32 %v3475, %v4006
      %v4008 = vpop.f32.mrb[0].mxu0
      %v4009 = vadd.f32 %v3479, %v4008
      %v4010 = vpop.f32.mrb[0].mxu0
      %v4011 = vadd.f32 %v3475, %v4010
      %v4012 = vpop.f32.mrb[0].mxu0
      %v4013 = vadd.f32 %v3479, %v4012
      %4014 = vmatprep.mubr.bf16.mxu0 %v3379
      %4015 = vmatmul.mubr.bf16.gmra.mrb[0].mxu0 %v3378
      %v4016 = vpop.f32.mrb[0].mxu0
      %v4017 = vadd.f32 %v3475, %v4016
      %v4018 = vpop.f32.mrb[0].mxu0
      %v4019 = vadd.f32 %v3479, %v4018
      %v4020 = vpop.f32.mrb[0].mxu0
      %v4021 = vadd.f32 %v3475, %v4020
      %v4022 = vpop.f32.mrb[0].mxu0
      %v4023 = vadd.f32 %v3479, %v4022
      %4024 = vmatprep.mubr.bf16.mxu0 %v3381
      %4025 = vmatmul.mubr.bf16.gmra.mrb[0].mxu0 %v3380
      %v4026 = vpop.f32.mrb[0].mxu0
      %v4027 = vadd.f32 %v3475, %v4026
      %v4028 = vpop.f32.mrb[0].mxu0
      %v4029 = vadd.f32 %v3479, %v4028
      %v4030 = vpop.f32.mrb[0].mxu0
      %v4031 = vadd.f32 %v3475, %v4030
      %v4032 = vpop.f32.mrb[0].mxu0
      %v4033 = vadd.f32 %v3479, %v4032
      %4034 = vmatprep.mubr.bf16.mxu0 %v3383
      %4035 = vmatmul.mubr.bf16.gmra.mrb[0].mxu0 %v3382
      %v4036 = vpop.f32.mrb[0].mxu0
      %v4037 = vadd.f32 %v3475, %v4036
      %v4038 = vpop.f32.mrb[0].mxu0
      %v4039 = vadd.f32 %v3479, %v4038
      %v4040 = vpop.f32.mrb[0].mxu0
      %v4041 = vadd.f32 %v3475, %v4040
      %v4042 = vpop.f32.mrb[0].mxu0
      %v4043 = vadd.f32 %v3479, %v4042
      %4044 = vmatprep.mubr.bf16.mxu0 %v3385
      %4045 = vmatmul.mubr.bf16.gmra.mrb[0].mxu0 %v3384
      %v4046 = vpop.f32.mrb[0].mxu0
      %v4047 = vadd.f32 %v3475, %v4046
      %v4048 = vpop.f32.mrb[0].mxu0
      %v4049 = vadd.f32 %v3479, %v4048
      %v4050 = vpop.f32.mrb[0].mxu0
      %v4051 = vadd.f32 %v3475, %v4050
      %v4052 = vpop.f32.mrb[0].mxu0
      %v4053 = vadd.f32 %v3479, %v4052
      %4054 = vmatprep.mubr.bf16.mxu0 %v3387
      %4055 = vmatmul.mubr.bf16.gmra.mrb[0].mxu0 %v3386
      %v4056 = vpop.f32.mrb[0].mxu0
      %v4057 = vadd.f32 %v3475, %v4056
      %v4058 = vpop.f32.mrb[0].mxu0
      %v4059 = vadd.f32 %v3479, %v4058
      %v4060 = vpop.f32.mrb[0].mxu0
      %v4061 = vadd.f32 %v3475, %v4060
      %v4062 = vpop.f32.mrb[0].mxu0
      %v4063 = vadd.f32 %v3479, %v4062
      %4064 = vmatprep.mubr.bf16.mxu0 %v3389
      %4065 = vmatmul.mubr.bf16.gmra.mrb[0].mxu0 %v3388
      %v4066 = vpop.f32.mrb[0].mxu0
      %v4067 = vadd.f32 %v3475, %v4066
      %v4068 = vpop.f32.mrb[0].mxu0
      %v4069 = vadd.f32 %v3479, %v4068
      %v4070 = vpop.f32.mrb[0].mxu0
      %v4071 = vadd.f32 %v3475, %v4070
      %v4072 = vpop.f32.mrb[0].mxu0
      %v4073 = vadd.f32 %v3479, %v4072
      %4074 = vmatprep.mubr.bf16.mxu0 %v3391
      %4075 = vmatmul.mubr.bf16.gmra.mrb[0].mxu0 %v3390
      %v4076 = vpop.f32.mrb[0].mxu0
      %v4077 = vadd.f32 %v3475, %v4076
      %v4078 = vpop.f32.mrb[0].mxu0
      %v4079 = vadd.f32 %v3479, %v4078
      %v4080 = vpop.f32.mrb[0].mxu0
      %v4081 = vadd.f32 %v3475, %v4080
      %v4082 = vpop.f32.mrb[0].mxu0
      %v4083 = vadd.f32 %v3479, %v4082
      %4084 = vmatprep.mubr.bf16.mxu0 %v3393
      %4085 = vmatmul.mubr.bf16.gmra.mrb[0].mxu0 %v3392
      %v4086 = vpop.f32.mrb[0].mxu0
      %v4087 = vadd.f32 %v3475, %v4086
      %v4088 = vpop.f32.mrb[0].mxu0
      %v4089 = vadd.f32 %v3479, %v4088
      %v4090 = vpop.f32.mrb[0].mxu0
      %v4091 = vadd.f32 %v3475, %v4090
      %v4092 = vpop.f32.mrb[0].mxu0
      %v4093 = vadd.f32 %v3479, %v4092
      %4094 = vmatprep.mubr.bf16.mxu0 %v3395
      %4095 = vmatmul.mubr.bf16.gmra.mrb[0].mxu0 %v3394
      %v4096 = vpop.f32.mrb[0].mxu0
      %v4097 = vadd.f32 %v3475, %v4096
      %v4098 = vpop.f32.mrb[0].mxu0
      %v4099 = vadd.f32 %v3479, %v4098
      %v4100 = vpop.f32.mrb[0].mxu0
      %v4101 = vadd.f32 %v3475, %v4100
      %v4102 = vpop.f32.mrb[0].mxu0
      %v4103 = vadd.f32 %v3479, %v4102
      %4104 = vmatprep.mubr.bf16.mxu0 %v3397
      %4105 = vmatmul.mubr.bf16.gmra.mrb[0].mxu0 %v3396
      %v4106 = vpop.f32.mrb[0].mxu0
      %v4107 = vadd.f32 %v3475, %v4106
      %v4108 = vpop.f32.mrb[0].mxu0
      %v4109 = vadd.f32 %v3479, %v4108
      %v4110 = vpop.f32.mrb[0].mxu0
      %v4111 = vadd.f32 %v3475, %v4110
      %v4112 = vpop.f32.mrb[0].mxu0
      %v4113 = vadd.f32 %v3479, %v4112
      %4114 = vmatprep.mubr.bf16.mxu0 %v3399
      %4115 = vmatmul.mubr.bf16.gmra.mrb[0].mxu0 %v3398
      %v4116 = vpop.f32.mrb[0].mxu0
      %v4117 = vadd.f32 %v3475, %v4116
      %v4118 = vpop.f32.mrb[0].mxu0
      %v4119 = vadd.f32 %v3479, %v4118
      %v4120 = vpop.f32.mrb[0].mxu0
      %v4121 = vadd.f32 %v3475, %v4120
      %v4122 = vpop.f32.mrb[0].mxu0
      %v4123 = vadd.f32 %v3479, %v4122
      %4124 = vmatprep.mubr.bf16.mxu0 %v3401
      %4125 = vmatmul.mubr.bf16.gmra.mrb[0].mxu0 %v3400
      %v4126 = vpop.f32.mrb[0].mxu0
      %v4127 = vadd.f32 %v3475, %v4126
      %v4128 = vpop.f32.mrb[0].mxu0
      %v4129 = vadd.f32 %v3479, %v4128
      %v4130 = vpop.f32.mrb[0].mxu0
      %v4131 = vadd.f32 %v3475, %v4130
      %v4132 = vpop.f32.mrb[0].mxu0
      %v4133 = vadd.f32 %v3479, %v4132
      %4134 = vmatprep.mubr.bf16.mxu0 %v3403
      %4135 = vmatmul.mubr.bf16.gmra.mrb[0].mxu0 %v3402
      %v4136 = vpop.f32.mrb[0].mxu0
      %v4137 = vadd.f32 %v3475, %v4136
      %v4138 = vpop.f32.mrb[0].mxu0
      %v4139 = vadd.f32 %v3479, %v4138
      %v4140 = vpop.f32.mrb[0].mxu0
      %v4141 = vadd.f32 %v3475, %v4140
      %v4142 = vpop.f32.mrb[0].mxu0
      %v4143 = vadd.f32 %v3479, %v4142
      %4144 = vmatprep.mubr.bf16.mxu0 %v3405
      %4145 = vmatmul.mubr.bf16.gmra.mrb[0].mxu0 %v3404
      %v4146 = vpop.f32.mrb[0].mxu0
      %v4147 = vadd.f32 %v3475, %v4146
      %v4148 = vpop.f32.mrb[0].mxu0
      %v4149 = vadd.f32 %v3479, %v4148
      %v4150 = vpop.f32.mrb[0].mxu0
      %v4151 = vadd.f32 %v3475, %v4150
      %v4152 = vpop.f32.mrb[0].mxu0
      %v4153 = vadd.f32 %v3479, %v4152
      %4154 = vmatprep.mubr.bf16.mxu0 %v3407
      %4155 = vmatmul.mubr.bf16.gmra.mrb[0].mxu0 %v3406
      %v4156 = vpop.f32.mrb[0].mxu0
      %v4157 = vadd.f32 %v3475, %v4156
      %v4158 = vpop.f32.mrb[0].mxu0
      %v4159 = vadd.f32 %v3479, %v4158
      %v4160 = vpop.f32.mrb[0].mxu0
      %v4161 = vadd.f32 %v3475, %v4160
      %v4162 = vpop.f32.mrb[0].mxu0
      %v4163 = vadd.f32 %v3479, %v4162
      %4164 = vmatprep.mubr.bf16.mxu0 %v3409
      %4165 = vmatmul.mubr.bf16.gmra.mrb[0].mxu0 %v3408
      %v4166 = vpop.f32.mrb[0].mxu0
      %v4167 = vadd.f32 %v3475, %v4166
      %v4168 = vpop.f32.mrb[0].mxu0
      %v4169 = vadd.f32 %v3479, %v4168
      %v4170 = vpop.f32.mrb[0].mxu0
      %v4171 = vadd.f32 %v3475, %v4170
      %v4172 = vpop.f32.mrb[0].mxu0
      %v4173 = vadd.f32 %v3479, %v4172
      %4174 = vmatprep.mubr.bf16.mxu0 %v3411
      %4175 = vmatmul.mubr.bf16.gmra.mrb[0].mxu0 %v3410
      %v4176 = vpop.f32.mrb[0].mxu0
      %v4177 = vadd.f32 %v3475, %v4176
      %v4178 = vpop.f32.mrb[0].mxu0
      %v4179 = vadd.f32 %v3479, %v4178
      %v4180 = vpop.f32.mrb[0].mxu0
      %v4181 = vadd.f32 %v3475, %v4180
      %v4182 = vpop.f32.mrb[0].mxu0
      %v4183 = vadd.f32 %v3479, %v4182
      %4184 = vmatprep.mubr.bf16.mxu0 %v3413
      %4185 = vmatmul.mubr.bf16.gmra.mrb[0].mxu0 %v3412
      %v4186 = vpop.f32.mrb[0].mxu0
      %v4187 = vadd.f32 %v3475, %v4186
      %v4188 = vpop.f32.mrb[0].mxu0
      %v4189 = vadd.f32 %v3479, %v4188
      %v4190 = vpop.f32.mrb[0].mxu0
      %v4191 = vadd.f32 %v3475, %v4190
      %v4192 = vpop.f32.mrb[0].mxu0
      %v4193 = vadd.f32 %v3479, %v4192
      %4194 = vmatprep.mubr.bf16.mxu0 %v3415
      %4195 = vmatmul.mubr.bf16.gmra.mrb[0].mxu0 %v3414
      %v4196 = vpop.f32.mrb[0].mxu0
      %v4197 = vadd.f32 %v3475, %v4196
      %v4198 = vpop.f32.mrb[0].mxu0
      %v4199 = vadd.f32 %v3479, %v4198
      %v4200 = vpop.f32.mrb[0].mxu0
      %v4201 = vadd.f32 %v3475, %v4200
      %v4202 = vpop.f32.mrb[0].mxu0
      %v4203 = vadd.f32 %v3479, %v4202
      %4204 = vmatprep.mubr.bf16.mxu0 %v3417
      %4205 = vmatmul.mubr.bf16.gmra.mrb[0].mxu0 %v3416
      %v4206 = vpop.f32.mrb[0].mxu0
      %v4207 = vadd.f32 %v3475, %v4206
      %v4208 = vpop.f32.mrb[0].mxu0
      %v4209 = vadd.f32 %v3479, %v4208
      %v4210 = vpop.f32.mrb[0].mxu0
      %v4211 = vadd.f32 %v3475, %v4210
      %v4212 = vpop.f32.mrb[0].mxu0
      %v4213 = vadd.f32 %v3479, %v4212
      %4214 = vmatprep.mubr.bf16.mxu0 %v3419
      %4215 = vmatmul.mubr.bf16.gmra.mrb[0].mxu0 %v3418
      %v4216 = vpop.f32.mrb[0].mxu0
      %v4217 = vadd.f32 %v3475, %v4216
      %v4218 = vpop.f32.mrb[0].mxu0
      %v4219 = vadd.f32 %v3479, %v4218
      %v4220 = vpop.f32.mrb[0].mxu0
      %v4221 = vadd.f32 %v3475, %v4220
      %v4222 = vpop.f32.mrb[0].mxu0
      %v4223 = vadd.f32 %v3479, %v4222
      %4224 = vmatprep.mubr.bf16.mxu0 %v3421
      %4225 = vmatmul.mubr.bf16.gmra.mrb[0].mxu0 %v3420
      %v4226 = vpop.f32.mrb[0].mxu0
      %v4227 = vadd.f32 %v3475, %v4226
      %v4228 = vpop.f32.mrb[0].mxu0
      %v4229 = vadd.f32 %v3479, %v4228
      %v4230 = vpop.f32.mrb[0].mxu0
      %v4231 = vadd.f32 %v3475, %v4230
      %v4232 = vpop.f32.mrb[0].mxu0
      %v4233 = vadd.f32 %v3479, %v4232
      %4234 = vmatprep.mubr.bf16.mxu0 %v3423
      %4235 = vmatmul.mubr.bf16.gmra.mrb[0].mxu0 %v3422
      %v4236 = vpop.f32.mrb[0].mxu0
      %v4237 = vadd.f32 %v3475, %v4236
      %v4238 = vpop.f32.mrb[0].mxu0
      %v4239 = vadd.f32 %v3479, %v4238
      %v4240 = vpop.f32.mrb[0].mxu0
      %v4241 = vadd.f32 %v3475, %v4240
      %v4242 = vpop.f32.mrb[0].mxu0
      %v4243 = vadd.f32 %v3479, %v4242
      %4244 = vmatprep.mubr.bf16.mxu0 %v3425
      %4245 = vmatmul.mubr.bf16.gmra.mrb[0].mxu0 %v3424
      %v4246 = vpop.f32.mrb[0].mxu0
      %v4247 = vadd.f32 %v3475, %v4246
      %v4248 = vpop.f32.mrb[0].mxu0
      %v4249 = vadd.f32 %v3479, %v4248
      %v4250 = vpop.f32.mrb[0].mxu0
      %v4251 = vadd.f32 %v3475, %v4250
      %v4252 = vpop.f32.mrb[0].mxu0
      %v4253 = vadd.f32 %v3479, %v4252
      %4254 = vmatprep.mubr.bf16.mxu0 %v3427
      %4255 = vmatmul.mubr.bf16.gmra.mrb[0].mxu0 %v3426
      %v4256 = vpop.f32.mrb[0].mxu0
      %v4257 = vadd.f32 %v3475, %v4256
      %v4258 = vpop.f32.mrb[0].mxu0
      %v4259 = vadd.f32 %v3479, %v4258
      %v4260 = vpop.f32.mrb[0].mxu0
      %v4261 = vadd.f32 %v3475, %v4260
      %v4262 = vpop.f32.mrb[0].mxu0
      %v4263 = vadd.f32 %v3479, %v4262
      %4264 = vmatprep.mubr.bf16.mxu0 %v3429
      %4265 = vmatmul.mubr.bf16.gmra.mrb[0].mxu0 %v3428
      %v4266 = vpop.f32.mrb[0].mxu0
      %v4267 = vadd.f32 %v3475, %v4266
      %v4268 = vpop.f32.mrb[0].mxu0
      %v4269 = vadd.f32 %v3479, %v4268
      %v4270 = vpop.f32.mrb[0].mxu0
      %v4271 = vadd.f32 %v3475, %v4270
      %v4272 = vpop.f32.mrb[0].mxu0
      %v4273 = vadd.f32 %v3479, %v4272
      %4274 = vmatprep.mubr.bf16.mxu0 %v3431
      %4275 = vmatmul.mubr.bf16.gmra.mrb[0].mxu0 %v3430
      %v4276 = vpop.f32.mrb[0].mxu0
      %v4277 = vadd.f32 %v3475, %v4276
      %v4278 = vpop.f32.mrb[0].mxu0
      %v4279 = vadd.f32 %v3479, %v4278
      %v4280 = vpop.f32.mrb[0].mxu0
      %v4281 = vadd.f32 %v3475, %v4280
      %v4282 = vpop.f32.mrb[0].mxu0
      %v4283 = vadd.f32 %v3479, %v4282
      %4284 = vmatprep.mubr.bf16.mxu0 %v3433
      %4285 = vmatmul.mubr.bf16.gmra.mrb[0].mxu0 %v3432
      %v4286 = vpop.f32.mrb[0].mxu0
      %v4287 = vadd.f32 %v3475, %v4286
      %v4288 = vpop.f32.mrb[0].mxu0
      %v4289 = vadd.f32 %v3479, %v4288
      %v4290 = vpop.f32.mrb[0].mxu0
      %v4291 = vadd.f32 %v3475, %v4290
      %v4292 = vpop.f32.mrb[0].mxu0
      %v4293 = vadd.f32 %v3479, %v4292
      %4294 = vmatprep.mubr.bf16.mxu0 %v3435
      %4295 = vmatmul.mubr.bf16.gmra.mrb[0].mxu0 %v3434
      %v4296 = vpop.f32.mrb[0].mxu0
      %v4297 = vadd.f32 %v3475, %v4296
      %v4298 = vpop.f32.mrb[0].mxu0
      %v4299 = vadd.f32 %v3479, %v4298
      %v4300 = vpop.f32.mrb[0].mxu0
      %v4301 = vadd.f32 %v3475, %v4300
      %v4302 = vpop.f32.mrb[0].mxu0
      %v4303 = vadd.f32 %v3479, %v4302
      %4304 = vmatprep.mubr.bf16.mxu0 %v3437
      %4305 = vmatmul.mubr.bf16.gmra.mrb[0].mxu0 %v3436
      %v4306 = vpop.f32.mrb[0].mxu0
      %v4307 = vadd.f32 %v3475, %v4306
      %v4308 = vpop.f32.mrb[0].mxu0
      %v4309 = vadd.f32 %v3479, %v4308
      %v4310 = vpop.f32.mrb[0].mxu0
      %v4311 = vadd.f32 %v3475, %v4310
      %v4312 = vpop.f32.mrb[0].mxu0
      %v4313 = vadd.f32 %v3479, %v4312
      %4314 = vdwg.mxu0
      %v4315 = vmax.f32 %v3677, 0.0
      %v4316 = vmax.f32 %v3679, 0.0
      %v4317 = vmax.f32 %v3681, 0.0
      %v4318 = vmax.f32 %v3683, 0.0
      %v4319 = vmax.f32 %v3687, 0.0
      %v4320 = vmax.f32 %v3689, 0.0
      %v4321 = vmax.f32 %v3691, 0.0
      %v4322 = vmax.f32 %v3693, 0.0
      %v4323 = vmax.f32 %v3697, 0.0
      %v4324 = vmax.f32 %v3699, 0.0
      %v4325 = vmax.f32 %v3701, 0.0
      %v4326 = vmax.f32 %v3703, 0.0
      %v4327 = vmax.f32 %v3707, 0.0
      %v4328 = vmax.f32 %v3709, 0.0
      %v4329 = vmax.f32 %v3711, 0.0
      %v4330 = vmax.f32 %v3713, 0.0
      %v4331 = vmax.f32 %v3717, 0.0
      %v4332 = vmax.f32 %v3719, 0.0
      %v4333 = vmax.f32 %v3721, 0.0
      %v4334 = vmax.f32 %v3723, 0.0
      %v4335 = vmax.f32 %v3727, 0.0
      %v4336 = vmax.f32 %v3729, 0.0
      %v4337 = vmax.f32 %v3731, 0.0
      %v4338 = vmax.f32 %v3733, 0.0
      %v4339 = vmax.f32 %v3737, 0.0
      %v4340 = vmax.f32 %v3739, 0.0
      %v4341 = vmax.f32 %v3741, 0.0
      %v4342 = vmax.f32 %v3743, 0.0
      %v4343 = vmax.f32 %v3747, 0.0
      %v4344 = vmax.f32 %v3749, 0.0
      %v4345 = vmax.f32 %v3751, 0.0
      %v4346 = vmax.f32 %v3753, 0.0
      %v4347 = vmax.f32 %v3757, 0.0
      %v4348 = vmax.f32 %v3759, 0.0
      %v4349 = vmax.f32 %v3761, 0.0
      %v4350 = vmax.f32 %v3763, 0.0
      %v4351 = vmax.f32 %v3767, 0.0
      %v4352 = vmax.f32 %v3769, 0.0
      %v4353 = vmax.f32 %v3771, 0.0
      %v4354 = vmax.f32 %v3773, 0.0
      %v4355 = vmax.f32 %v3777, 0.0
      %v4356 = vmax.f32 %v3779, 0.0
      %v4357 = vmax.f32 %v3781, 0.0
      %v4358 = vmax.f32 %v3783, 0.0
      %v4359 = vmax.f32 %v3787, 0.0
      %v4360 = vmax.f32 %v3789, 0.0
      %v4361 = vmax.f32 %v3791, 0.0
      %v4362 = vmax.f32 %v3793, 0.0
      %v4363 = vmax.f32 %v3797, 0.0
      %v4364 = vmax.f32 %v3799, 0.0
      %v4365 = vmax.f32 %v3801, 0.0
      %v4366 = vmax.f32 %v3803, 0.0
      %v4367 = vmax.f32 %v3807, 0.0
      %v4368 = vmax.f32 %v3809, 0.0
      %v4369 = vmax.f32 %v3811, 0.0
      %v4370 = vmax.f32 %v3813, 0.0
      %v4371 = vmax.f32 %v3817, 0.0
      %v4372 = vmax.f32 %v3819, 0.0
      %v4373 = vmax.f32 %v3821, 0.0
      %v4374 = vmax.f32 %v3823, 0.0
      %v4375 = vmax.f32 %v3827, 0.0
      %v4376 = vmax.f32 %v3829, 0.0
      %v4377 = vmax.f32 %v3831, 0.0
      %v4378 = vmax.f32 %v3833, 0.0
      %v4379 = vmax.f32 %v3837, 0.0
      %v4380 = vmax.f32 %v3839, 0.0
      %v4381 = vmax.f32 %v3841, 0.0
      %v4382 = vmax.f32 %v3843, 0.0
      %v4383 = vmax.f32 %v3847, 0.0
      %v4384 = vmax.f32 %v3849, 0.0
      %v4385 = vmax.f32 %v3851, 0.0
      %v4386 = vmax.f32 %v3853, 0.0
      %v4387 = vmax.f32 %v3857, 0.0
      %v4388 = vmax.f32 %v3859, 0.0
      %v4389 = vmax.f32 %v3861, 0.0
      %v4390 = vmax.f32 %v3863, 0.0
      %v4391 = vmax.f32 %v3867, 0.0
      %v4392 = vmax.f32 %v3869, 0.0
      %v4393 = vmax.f32 %v3871, 0.0
      %v4394 = vmax.f32 %v3873, 0.0
      %v4395 = vmax.f32 %v3877, 0.0
      %v4396 = vmax.f32 %v3879, 0.0
      %v4397 = vmax.f32 %v3881, 0.0
      %v4398 = vmax.f32 %v3883, 0.0
      %v4399 = vmax.f32 %v3887, 0.0
      %v4400 = vmax.f32 %v3889, 0.0
      %v4401 = vmax.f32 %v3891, 0.0
      %v4402 = vmax.f32 %v3893, 0.0
      %v4403 = vmax.f32 %v3897, 0.0
      %v4404 = vmax.f32 %v3899, 0.0
      %v4405 = vmax.f32 %v3901, 0.0
      %v4406 = vmax.f32 %v3903, 0.0
      %v4407 = vmax.f32 %v3907, 0.0
      %v4408 = vmax.f32 %v3909, 0.0
      %v4409 = vmax.f32 %v3911, 0.0
      %v4410 = vmax.f32 %v3913, 0.0
      %v4411 = vmax.f32 %v3917, 0.0
      %v4412 = vmax.f32 %v3919, 0.0
      %v4413 = vmax.f32 %v3921, 0.0
      %v4414 = vmax.f32 %v3923, 0.0
      %v4415 = vmax.f32 %v3927, 0.0
      %v4416 = vmax.f32 %v3929, 0.0
      %v4417 = vmax.f32 %v3931, 0.0
      %v4418 = vmax.f32 %v3933, 0.0
      %v4419 = vmax.f32 %v3937, 0.0
      %v4420 = vmax.f32 %v3939, 0.0
      %v4421 = vmax.f32 %v3941, 0.0
      %v4422 = vmax.f32 %v3943, 0.0
      %v4423 = vmax.f32 %v3947, 0.0
      %v4424 = vmax.f32 %v3949, 0.0
      %v4425 = vmax.f32 %v3951, 0.0
      %v4426 = vmax.f32 %v3953, 0.0
      %v4427 = vmax.f32 %v3957, 0.0
      %v4428 = vmax.f32 %v3959, 0.0
      %v4429 = vmax.f32 %v3961, 0.0
      %v4430 = vmax.f32 %v3963, 0.0
      %v4431 = vmax.f32 %v3967, 0.0
      %v4432 = vmax.f32 %v3969, 0.0
      %v4433 = vmax.f32 %v3971, 0.0
      %v4434 = vmax.f32 %v3973, 0.0
      %v4435 = vmax.f32 %v3977, 0.0
      %v4436 = vmax.f32 %v3979, 0.0
      %v4437 = vmax.f32 %v3981, 0.0
      %v4438 = vmax.f32 %v3983, 0.0
      %v4439 = vmax.f32 %v3987, 0.0
      %v4440 = vmax.f32 %v3989, 0.0
      %v4441 = vmax.f32 %v3991, 0.0
      %v4442 = vmax.f32 %v3993, 0.0
      %v4443 = vmax.f32 %v3997, 0.0
      %v4444 = vmax.f32 %v3999, 0.0
      %v4445 = vmax.f32 %v4001, 0.0
      %v4446 = vmax.f32 %v4003, 0.0
      %v4447 = vmax.f32 %v4007, 0.0
      %v4448 = vmax.f32 %v4009, 0.0
      %v4449 = vmax.f32 %v4011, 0.0
      %v4450 = vmax.f32 %v4013, 0.0
      %v4451 = vmax.f32 %v4017, 0.0
      %v4452 = vmax.f32 %v4019, 0.0
      %v4453 = vmax.f32 %v4021, 0.0
      %v4454 = vmax.f32 %v4023, 0.0
      %v4455 = vmax.f32 %v4027, 0.0
      %v4456 = vmax.f32 %v4029, 0.0
      %v4457 = vmax.f32 %v4031, 0.0
      %v4458 = vmax.f32 %v4033, 0.0
      %v4459 = vmax.f32 %v4037, 0.0
      %v4460 = vmax.f32 %v4039, 0.0
      %v4461 = vmax.f32 %v4041, 0.0
      %v4462 = vmax.f32 %v4043, 0.0
      %v4463 = vmax.f32 %v4047, 0.0
      %v4464 = vmax.f32 %v4049, 0.0
      %v4465 = vmax.f32 %v4051, 0.0
      %v4466 = vmax.f32 %v4053, 0.0
      %v4467 = vmax.f32 %v4057, 0.0
      %v4468 = vmax.f32 %v4059, 0.0
      %v4469 = vmax.f32 %v4061, 0.0
      %v4470 = vmax.f32 %v4063, 0.0
      %v4471 = vmax.f32 %v4067, 0.0
      %v4472 = vmax.f32 %v4069, 0.0
      %v4473 = vmax.f32 %v4071, 0.0
      %v4474 = vmax.f32 %v4073, 0.0
      %v4475 = vmax.f32 %v4077, 0.0
      %v4476 = vmax.f32 %v4079, 0.0
      %v4477 = vmax.f32 %v4081, 0.0
      %v4478 = vmax.f32 %v4083, 0.0
      %v4479 = vmax.f32 %v4087, 0.0
      %v4480 = vmax.f32 %v4089, 0.0
      %v4481 = vmax.f32 %v4091, 0.0
      %v4482 = vmax.f32 %v4093, 0.0
      %v4483 = vmax.f32 %v4097, 0.0
      %v4484 = vmax.f32 %v4099, 0.0
      %v4485 = vmax.f32 %v4101, 0.0
      %v4486 = vmax.f32 %v4103, 0.0
      %v4487 = vmax.f32 %v4107, 0.0
      %v4488 = vmax.f32 %v4109, 0.0
      %v4489 = vmax.f32 %v4111, 0.0
      %v4490 = vmax.f32 %v4113, 0.0
      %v4491 = vmax.f32 %v4117, 0.0
      %v4492 = vmax.f32 %v4119, 0.0
      %v4493 = vmax.f32 %v4121, 0.0
      %v4494 = vmax.f32 %v4123, 0.0
      %v4495 = vmax.f32 %v4127, 0.0
      %v4496 = vmax.f32 %v4129, 0.0
      %v4497 = vmax.f32 %v4131, 0.0
      %v4498 = vmax.f32 %v4133, 0.0
      %v4499 = vmax.f32 %v4137, 0.0
      %v4500 = vmax.f32 %v4139, 0.0
      %v4501 = vmax.f32 %v4141, 0.0
      %v4502 = vmax.f32 %v4143, 0.0
      %v4503 = vmax.f32 %v4147, 0.0
      %v4504 = vmax.f32 %v4149, 0.0
      %v4505 = vmax.f32 %v4151, 0.0
      %v4506 = vmax.f32 %v4153, 0.0
      %v4507 = vmax.f32 %v4157, 0.0
      %v4508 = vmax.f32 %v4159, 0.0
      %v4509 = vmax.f32 %v4161, 0.0
      %v4510 = vmax.f32 %v4163, 0.0
      %v4511 = vmax.f32 %v4167, 0.0
      %v4512 = vmax.f32 %v4169, 0.0
      %v4513 = vmax.f32 %v4171, 0.0
      %v4514 = vmax.f32 %v4173, 0.0
      %v4515 = vmax.f32 %v4177, 0.0
      %v4516 = vmax.f32 %v4179, 0.0
      %v4517 = vmax.f32 %v4181, 0.0
      %v4518 = vmax.f32 %v4183, 0.0
      %v4519 = vmax.f32 %v4187, 0.0
      %v4520 = vmax.f32 %v4189, 0.0
      %v4521 = vmax.f32 %v4191, 0.0
      %v4522 = vmax.f32 %v4193, 0.0
      %v4523 = vmax.f32 %v4197, 0.0
      %v4524 = vmax.f32 %v4199, 0.0
      %v4525 = vmax.f32 %v4201, 0.0
      %v4526 = vmax.f32 %v4203, 0.0
      %v4527 = vmax.f32 %v4207, 0.0
      %v4528 = vmax.f32 %v4209, 0.0
      %v4529 = vmax.f32 %v4211, 0.0
      %v4530 = vmax.f32 %v4213, 0.0
      %v4531 = vmax.f32 %v4217, 0.0
      %v4532 = vmax.f32 %v4219, 0.0
      %v4533 = vmax.f32 %v4221, 0.0
      %v4534 = vmax.f32 %v4223, 0.0
      %v4535 = vmax.f32 %v4227, 0.0
      %v4536 = vmax.f32 %v4229, 0.0
      %v4537 = vmax.f32 %v4231, 0.0
      %v4538 = vmax.f32 %v4233, 0.0
      %v4539 = vmax.f32 %v4237, 0.0
      %v4540 = vmax.f32 %v4239, 0.0
      %v4541 = vmax.f32 %v4241, 0.0
      %v4542 = vmax.f32 %v4243, 0.0
      %v4543 = vmax.f32 %v4247, 0.0
      %v4544 = vmax.f32 %v4249, 0.0
      %v4545 = vmax.f32 %v4251, 0.0
      %v4546 = vmax.f32 %v4253, 0.0
      %v4547 = vmax.f32 %v4257, 0.0
      %v4548 = vmax.f32 %v4259, 0.0
      %v4549 = vmax.f32 %v4261, 0.0
      %v4550 = vmax.f32 %v4263, 0.0
      %v4551 = vmax.f32 %v4267, 0.0
      %v4552 = vmax.f32 %v4269, 0.0
      %v4553 = vmax.f32 %v4271, 0.0
      %v4554 = vmax.f32 %v4273, 0.0
      %v4555 = vmax.f32 %v4277, 0.0
      %v4556 = vmax.f32 %v4279, 0.0
      %v4557 = vmax.f32 %v4281, 0.0
      %v4558 = vmax.f32 %v4283, 0.0
      %v4559 = vmax.f32 %v4287, 0.0
      %v4560 = vmax.f32 %v4289, 0.0
      %v4561 = vmax.f32 %v4291, 0.0
      %v4562 = vmax.f32 %v4293, 0.0
      %v4563 = vmax.f32 %v4297, 0.0
      %v4564 = vmax.f32 %v4299, 0.0
      %v4565 = vmax.f32 %v4301, 0.0
      %v4566 = vmax.f32 %v4303, 0.0
      %v4567 = vmax.f32 %v4307, 0.0
      %v4568 = vmax.f32 %v4309, 0.0
      %v4569 = vmax.f32 %v4311, 0.0
      %v4570 = vmax.f32 %v4313, 0.0
      %v4571 = vpack.c.bf16 %v4317, %v4315
      %v4572 = vpack.c.bf16 %v4318, %v4316
      %v4573 = vpack.c.bf16 %v4321, %v4319
      %v4574 = vpack.c.bf16 %v4322, %v4320
      %v4575 = vpack.c.bf16 %v4325, %v4323
      %v4576 = vpack.c.bf16 %v4326, %v4324
      %v4577 = vpack.c.bf16 %v4329, %v4327
      %v4578 = vpack.c.bf16 %v4330, %v4328
      %v4579 = vpack.c.bf16 %v4333, %v4331
      %v4580 = vpack.c.bf16 %v4334, %v4332
      %v4581 = vpack.c.bf16 %v4337, %v4335
      %v4582 = vpack.c.bf16 %v4338, %v4336
      %v4583 = vpack.c.bf16 %v4341, %v4339
      %v4584 = vpack.c.bf16 %v4342, %v4340
      %v4585 = vpack.c.bf16 %v4345, %v4343
      %v4586 = vpack.c.bf16 %v4346, %v4344
      %v4587 = vpack.c.bf16 %v4349, %v4347
      %v4588 = vpack.c.bf16 %v4350, %v4348
      %v4589 = vpack.c.bf16 %v4353, %v4351
      %v4590 = vpack.c.bf16 %v4354, %v4352
      %v4591 = vpack.c.bf16 %v4357, %v4355
      %v4592 = vpack.c.bf16 %v4358, %v4356
      %v4593 = vpack.c.bf16 %v4361, %v4359
      %v4594 = vpack.c.bf16 %v4362, %v4360
      %v4595 = vpack.c.bf16 %v4365, %v4363
      %v4596 = vpack.c.bf16 %v4366, %v4364
      %v4597 = vpack.c.bf16 %v4369, %v4367
      %v4598 = vpack.c.bf16 %v4370, %v4368
      %v4599 = vpack.c.bf16 %v4373, %v4371
      %v4600 = vpack.c.bf16 %v4374, %v4372
      %v4601 = vpack.c.bf16 %v4377, %v4375
      %v4602 = vpack.c.bf16 %v4378, %v4376
      %v4603 = vpack.c.bf16 %v4381, %v4379
      %v4604 = vpack.c.bf16 %v4382, %v4380
      %v4605 = vpack.c.bf16 %v4385, %v4383
      %v4606 = vpack.c.bf16 %v4386, %v4384
      %v4607 = vpack.c.bf16 %v4389, %v4387
      %v4608 = vpack.c.bf16 %v4390, %v4388
      %v4609 = vpack.c.bf16 %v4393, %v4391
      %v4610 = vpack.c.bf16 %v4394, %v4392
      %v4611 = vpack.c.bf16 %v4397, %v4395
      %v4612 = vpack.c.bf16 %v4398, %v4396
      %v4613 = vpack.c.bf16 %v4401, %v4399
      %v4614 = vpack.c.bf16 %v4402, %v4400
      %v4615 = vpack.c.bf16 %v4405, %v4403
      %v4616 = vpack.c.bf16 %v4406, %v4404
      %v4617 = vpack.c.bf16 %v4409, %v4407
      %v4618 = vpack.c.bf16 %v4410, %v4408
      %v4619 = vpack.c.bf16 %v4413, %v4411
      %v4620 = vpack.c.bf16 %v4414, %v4412
      %v4621 = vpack.c.bf16 %v4417, %v4415
      %v4622 = vpack.c.bf16 %v4418, %v4416
      %v4623 = vpack.c.bf16 %v4421, %v4419
      %v4624 = vpack.c.bf16 %v4422, %v4420
      %v4625 = vpack.c.bf16 %v4425, %v4423
      %v4626 = vpack.c.bf16 %v4426, %v4424
      %v4627 = vpack.c.bf16 %v4429, %v4427
      %v4628 = vpack.c.bf16 %v4430, %v4428
      %v4629 = vpack.c.bf16 %v4433, %v4431
      %v4630 = vpack.c.bf16 %v4434, %v4432
      %v4631 = vpack.c.bf16 %v4437, %v4435
      %v4632 = vpack.c.bf16 %v4438, %v4436
      %v4633 = vpack.c.bf16 %v4441, %v4439
      %v4634 = vpack.c.bf16 %v4442, %v4440
      %v4635 = vpack.c.bf16 %v4445, %v4443
      %v4636 = vpack.c.bf16 %v4446, %v4444
      %v4637 = vpack.c.bf16 %v4449, %v4447
      %v4638 = vpack.c.bf16 %v4450, %v4448
      %v4639 = vpack.c.bf16 %v4453, %v4451
      %v4640 = vpack.c.bf16 %v4454, %v4452
      %v4641 = vpack.c.bf16 %v4457, %v4455
      %v4642 = vpack.c.bf16 %v4458, %v4456
      %v4643 = vpack.c.bf16 %v4461, %v4459
      %v4644 = vpack.c.bf16 %v4462, %v4460
      %v4645 = vpack.c.bf16 %v4465, %v4463
      %v4646 = vpack.c.bf16 %v4466, %v4464
      %v4647 = vpack.c.bf16 %v4469, %v4467
      %v4648 = vpack.c.bf16 %v4470, %v4468
      %v4649 = vpack.c.bf16 %v4473, %v4471
      %v4650 = vpack.c.bf16 %v4474, %v4472
      %v4651 = vpack.c.bf16 %v4477, %v4475
      %v4652 = vpack.c.bf16 %v4478, %v4476
      %v4653 = vpack.c.bf16 %v4481, %v4479
      %v4654 = vpack.c.bf16 %v4482, %v4480
      %v4655 = vpack.c.bf16 %v4485, %v4483
      %v4656 = vpack.c.bf16 %v4486, %v4484
      %v4657 = vpack.c.bf16 %v4489, %v4487
      %v4658 = vpack.c.bf16 %v4490, %v4488
      %v4659 = vpack.c.bf16 %v4493, %v4491
      %v4660 = vpack.c.bf16 %v4494, %v4492
      %v4661 = vpack.c.bf16 %v4497, %v4495
      %v4662 = vpack.c.bf16 %v4498, %v4496
      %v4663 = vpack.c.bf16 %v4501, %v4499
      %v4664 = vpack.c.bf16 %v4502, %v4500
      %v4665 = vpack.c.bf16 %v4505, %v4503
      %v4666 = vpack.c.bf16 %v4506, %v4504
      %v4667 = vpack.c.bf16 %v4509, %v4507
      %v4668 = vpack.c.bf16 %v4510, %v4508
      %v4669 = vpack.c.bf16 %v4513, %v4511
      %v4670 = vpack.c.bf16 %v4514, %v4512
      %v4671 = vpack.c.bf16 %v4517, %v4515
      %v4672 = vpack.c.bf16 %v4518, %v4516
      %v4673 = vpack.c.bf16 %v4521, %v4519
      %v4674 = vpack.c.bf16 %v4522, %v4520
      %v4675 = vpack.c.bf16 %v4525, %v4523
      %v4676 = vpack.c.bf16 %v4526, %v4524
      %v4677 = vpack.c.bf16 %v4529, %v4527
      %v4678 = vpack.c.bf16 %v4530, %v4528
      %v4679 = vpack.c.bf16 %v4533, %v4531
      %v4680 = vpack.c.bf16 %v4534, %v4532
      %v4681 = vpack.c.bf16 %v4537, %v4535
      %v4682 = vpack.c.bf16 %v4538, %v4536
      %v4683 = vpack.c.bf16 %v4541, %v4539
      %v4684 = vpack.c.bf16 %v4542, %v4540
      %v4685 = vpack.c.bf16 %v4545, %v4543
      %v4686 = vpack.c.bf16 %v4546, %v4544
      %v4687 = vpack.c.bf16 %v4549, %v4547
      %v4688 = vpack.c.bf16 %v4550, %v4548
      %v4689 = vpack.c.bf16 %v4553, %v4551
      %v4690 = vpack.c.bf16 %v4554, %v4552
      %v4691 = vpack.c.bf16 %v4557, %v4555
      %v4692 = vpack.c.bf16 %v4558, %v4556
      %v4693 = vpack.c.bf16 %v4561, %v4559
      %v4694 = vpack.c.bf16 %v4562, %v4560
      %v4695 = vpack.c.bf16 %v4565, %v4563
      %v4696 = vpack.c.bf16 %v4566, %v4564
      %v4697 = vpack.c.bf16 %v4569, %v4567
      %v4698 = vpack.c.bf16 %v4570, %v4568
      %v4699 = vld [vmem:[%s7] sm:$0xff]
      %v4700 = vld [vmem:[%s7 + $0x8] sm:$0xff]
      %v4701 = vld [vmem:[%s7 + $0x10] sm:$0xff]
      %v4702 = vld [vmem:[%s7 + $0x18] sm:$0xff]
      %v4703 = vld [vmem:[%s7 + $0x20] sm:$0xff]
      %v4704 = vld [vmem:[%s7 + $0x28] sm:$0xff]
      %v4705 = vld [vmem:[%s7 + $0x30] sm:$0xff]
      %v4706 = vld [vmem:[%s7 + $0x38] sm:$0xff]
      %v4707 = vld [vmem:[%s7 + $0x40] sm:$0xff]
      %v4708 = vld [vmem:[%s7 + $0x48] sm:$0xff]
      %v4709 = vld [vmem:[%s7 + $0x50] sm:$0xff]
      %v4710 = vld [vmem:[%s7 + $0x58] sm:$0xff]
      %v4711 = vld [vmem:[%s7 + $0x60] sm:$0xff]
      %v4712 = vld [vmem:[%s7 + $0x68] sm:$0xff]
      %v4713 = vld [vmem:[%s7 + $0x70] sm:$0xff]
      %v4714 = vld [vmem:[%s7 + $0x78] sm:$0xff]
      %v4715 = vld [vmem:[%s7 + $0x80] sm:$0xff]
      %v4716 = vld [vmem:[%s7 + $0x88] sm:$0xff]
      %v4717 = vld [vmem:[%s7 + $0x90] sm:$0xff]
      %v4718 = vld [vmem:[%s7 + $0x98] sm:$0xff]
      %v4719 = vld [vmem:[%s7 + $0xa0] sm:$0xff]
      %v4720 = vld [vmem:[%s7 + $0xa8] sm:$0xff]
      %v4721 = vld [vmem:[%s7 + $0xb0] sm:$0xff]
      %v4722 = vld [vmem:[%s7 + $0xb8] sm:$0xff]
      %v4723 = vld [vmem:[%s7 + $0xc0] sm:$0xff]
      %v4724 = vld [vmem:[%s7 + $0xc8] sm:$0xff]
      %v4725 = vld [vmem:[%s7 + $0xd0] sm:$0xff]
      %v4726 = vld [vmem:[%s7 + $0xd8] sm:$0xff]
      %v4727 = vld [vmem:[%s7 + $0xe0] sm:$0xff]
      %v4728 = vld [vmem:[%s7 + $0xe8] sm:$0xff]
      %v4729 = vld [vmem:[%s7 + $0xf0] sm:$0xff]
      %v4730 = vld [vmem:[%s7 + $0xf8] sm:$0xff]
      %v4731 = vld [vmem:[%s8] sm:$0x3]
      %v4733 = vlaneseq
      %v4734 = vshrl.u32 %v4733, 7
      %v4735 = vsub.s32 0, %v4734
      %v4736 = vrot.slane %v4731, %v4735
      %v4737 = vlaneseq
      %v4738 = vshrl.u32 %v4737, 7
      %v4739 = vsub.s32 1, %v4738
      %v4740 = vrot.slane %v4731, %v4739
      %v4775 = vunpack.c.l.b16 %v4699
      %v4776 = vunpack.c.h.b16 %v4699
      %v4777 = vunpack.c.l.b16 %v4700
      %v4778 = vunpack.c.h.b16 %v4700
      %v4779 = vunpack.c.l.b16 %v4701
      %v4780 = vunpack.c.h.b16 %v4701
      %v4781 = vunpack.c.l.b16 %v4702
      %v4782 = vunpack.c.h.b16 %v4702
      %v4783 = vunpack.c.l.b16 %v4703
      %v4784 = vunpack.c.h.b16 %v4703
      %v4785 = vunpack.c.l.b16 %v4704
      %v4786 = vunpack.c.h.b16 %v4704
      %v4787 = vunpack.c.l.b16 %v4705
      %v4788 = vunpack.c.h.b16 %v4705
      %v4789 = vunpack.c.l.b16 %v4706
      %v4790 = vunpack.c.h.b16 %v4706
      %v4791 = vunpack.c.l.b16 %v4707
      %v4792 = vunpack.c.h.b16 %v4707
      %v4793 = vunpack.c.l.b16 %v4708
      %v4794 = vunpack.c.h.b16 %v4708
      %v4795 = vunpack.c.l.b16 %v4709
      %v4796 = vunpack.c.h.b16 %v4709
      %v4797 = vunpack.c.l.b16 %v4710
      %v4798 = vunpack.c.h.b16 %v4710
      %v4799 = vunpack.c.l.b16 %v4711
      %v4800 = vunpack.c.h.b16 %v4711
      %v4801 = vunpack.c.l.b16 %v4712
      %v4802 = vunpack.c.h.b16 %v4712
      %v4803 = vunpack.c.l.b16 %v4713
      %v4804 = vunpack.c.h.b16 %v4713
      %v4805 = vunpack.c.l.b16 %v4714
      %v4806 = vunpack.c.h.b16 %v4714
      %v4807 = vunpack.c.l.b16 %v4715
      %v4808 = vunpack.c.h.b16 %v4715
      %v4809 = vunpack.c.l.b16 %v4716
      %v4810 = vunpack.c.h.b16 %v4716
      %v4811 = vunpack.c.l.b16 %v4717
      %v4812 = vunpack.c.h.b16 %v4717
      %v4813 = vunpack.c.l.b16 %v4718
      %v4814 = vunpack.c.h.b16 %v4718
      %v4815 = vunpack.c.l.b16 %v4719
      %v4816 = vunpack.c.h.b16 %v4719
      %v4817 = vunpack.c.l.b16 %v4720
      %v4818 = vunpack.c.h.b16 %v4720
      %v4819 = vunpack.c.l.b16 %v4721
      %v4820 = vunpack.c.h.b16 %v4721
      %v4821 = vunpack.c.l.b16 %v4722
      %v4822 = vunpack.c.h.b16 %v4722
      %v4823 = vunpack.c.l.b16 %v4723
      %v4824 = vunpack.c.h.b16 %v4723
      %v4825 = vunpack.c.l.b16 %v4724
      %v4826 = vunpack.c.h.b16 %v4724
      %v4827 = vunpack.c.l.b16 %v4725
      %v4828 = vunpack.c.h.b16 %v4725
      %v4829 = vunpack.c.l.b16 %v4726
      %v4830 = vunpack.c.h.b16 %v4726
      %v4831 = vunpack.c.l.b16 %v4727
      %v4832 = vunpack.c.h.b16 %v4727
      %v4833 = vunpack.c.l.b16 %v4728
      %v4834 = vunpack.c.h.b16 %v4728
      %v4835 = vunpack.c.l.b16 %v4729
      %v4836 = vunpack.c.h.b16 %v4729
      %v4837 = vunpack.c.l.b16 %v4730
      %v4838 = vunpack.c.h.b16 %v4730
      %v4839 = vpack.c.b16 %v4777, %v4775
      %v4840 = vpack.c.b16 %v4778, %v4776
      %v4841 = vpack.c.b16 %v4781, %v4779
      %v4842 = vpack.c.b16 %v4782, %v4780
      %v4843 = vpack.c.b16 %v4785, %v4783
      %v4844 = vpack.c.b16 %v4786, %v4784
      %v4845 = vpack.c.b16 %v4789, %v4787
      %v4846 = vpack.c.b16 %v4790, %v4788
      %v4847 = vpack.c.b16 %v4793, %v4791
      %v4848 = vpack.c.b16 %v4794, %v4792
      %v4849 = vpack.c.b16 %v4797, %v4795
      %v4850 = vpack.c.b16 %v4798, %v4796
      %v4851 = vpack.c.b16 %v4801, %v4799
      %v4852 = vpack.c.b16 %v4802, %v4800
      %v4853 = vpack.c.b16 %v4805, %v4803
      %v4854 = vpack.c.b16 %v4806, %v4804
      %v4855 = vpack.c.b16 %v4809, %v4807
      %v4856 = vpack.c.b16 %v4810, %v4808
      %v4857 = vpack.c.b16 %v4813, %v4811
      %v4858 = vpack.c.b16 %v4814, %v4812
      %v4859 = vpack.c.b16 %v4817, %v4815
      %v4860 = vpack.c.b16 %v4818, %v4816
      %v4861 = vpack.c.b16 %v4821, %v4819
      %v4862 = vpack.c.b16 %v4822, %v4820
      %v4863 = vpack.c.b16 %v4825, %v4823
      %v4864 = vpack.c.b16 %v4826, %v4824
      %v4865 = vpack.c.b16 %v4829, %v4827
      %v4866 = vpack.c.b16 %v4830, %v4828
      %v4867 = vpack.c.b16 %v4833, %v4831
      %v4868 = vpack.c.b16 %v4834, %v4832
      %v4869 = vpack.c.b16 %v4837, %v4835
      %v4870 = vpack.c.b16 %v4838, %v4836
      %4903 = vmatprep.subr.bf16.mxu0 %v4840
      %4904 = vmatpush1.bf16.msra.mxu0 %v4839
      %4905 = vmatprep.subr.bf16.mxu0 %v4842
      %4906 = vmatpush1.bf16.msra.mxu0 %v4841
      %4907 = vmatprep.subr.bf16.mxu0 %v4844
      %4908 = vmatpush1.bf16.msra.mxu0 %v4843
      %4909 = vmatprep.subr.bf16.mxu0 %v4846
      %4910 = vmatpush1.bf16.msra.mxu0 %v4845
      %4911 = vmatprep.subr.bf16.mxu0 %v4848
      %4912 = vmatpush1.bf16.msra.mxu0 %v4847
      %4913 = vmatprep.subr.bf16.mxu0 %v4850
      %4914 = vmatpush1.bf16.msra.mxu0 %v4849
      %4915 = vmatprep.subr.bf16.mxu0 %v4852
      %4916 = vmatpush1.bf16.msra.mxu0 %v4851
      %4917 = vmatprep.subr.bf16.mxu0 %v4854
      %4918 = vmatpush1.bf16.msra.mxu0 %v4853
      %4919 = vmatprep.subr.bf16.mxu0 %v4856
      %4920 = vmatpush1.bf16.msra.mxu0 %v4855
      %4921 = vmatprep.subr.bf16.mxu0 %v4858
      %4922 = vmatpush1.bf16.msra.mxu0 %v4857
      %4923 = vmatprep.subr.bf16.mxu0 %v4860
      %4924 = vmatpush1.bf16.msra.mxu0 %v4859
      %4925 = vmatprep.subr.bf16.mxu0 %v4862
      %4926 = vmatpush1.bf16.msra.mxu0 %v4861
      %4927 = vmatprep.subr.bf16.mxu0 %v4864
      %4928 = vmatpush1.bf16.msra.mxu0 %v4863
      %4929 = vmatprep.subr.bf16.mxu0 %v4866
      %4930 = vmatpush1.bf16.msra.mxu0 %v4865
      %4931 = vmatprep.subr.bf16.mxu0 %v4868
      %4932 = vmatpush1.bf16.msra.mxu0 %v4867
      %4933 = vmatprep.subr.bf16.mxu0 %v4870
      %4934 = vmatpush1.bf16.msra.mxu0 %v4869
      %4935 = vmatprep.mubr.bf16.mxu0 %v4572
      %4936 = vmatmul.mubr.bf16.gmra.mrb[0].mxu0 %v4571
      %v4937 = vpop.f32.mrb[0].mxu0
      %v4938 = vadd.f32 %v4736, %v4937
      %v4939 = vpop.f32.mrb[0].mxu0
      %v4940 = vadd.f32 %v4740, %v4939
      %v4941 = vpop.f32.mrb[0].mxu0
      %v4942 = vadd.f32 %v4736, %v4941
      %v4943 = vpop.f32.mrb[0].mxu0
      %v4944 = vadd.f32 %v4740, %v4943
      %4945 = vmatprep.mubr.bf16.mxu0 %v4574
      %4946 = vmatmul.mubr.bf16.gmra.mrb[0].mxu0 %v4573
      %v4947 = vpop.f32.mrb[0].mxu0
      %v4948 = vadd.f32 %v4736, %v4947
      %v4949 = vpop.f32.mrb[0].mxu0
      %v4950 = vadd.f32 %v4740, %v4949
      %v4951 = vpop.f32.mrb[0].mxu0
      %v4952 = vadd.f32 %v4736, %v4951
      %v4953 = vpop.f32.mrb[0].mxu0
      %v4954 = vadd.f32 %v4740, %v4953
      %4955 = vmatprep.mubr.bf16.mxu0 %v4576
      %4956 = vmatmul.mubr.bf16.gmra.mrb[0].mxu0 %v4575
      %v4957 = vpop.f32.mrb[0].mxu0
      %v4958 = vadd.f32 %v4736, %v4957
      %v4959 = vpop.f32.mrb[0].mxu0
      %v4960 = vadd.f32 %v4740, %v4959
      %v4961 = vpop.f32.mrb[0].mxu0
      %v4962 = vadd.f32 %v4736, %v4961
      %v4963 = vpop.f32.mrb[0].mxu0
      %v4964 = vadd.f32 %v4740, %v4963
      %4965 = vmatprep.mubr.bf16.mxu0 %v4578
      %4966 = vmatmul.mubr.bf16.gmra.mrb[0].mxu0 %v4577
      %v4967 = vpop.f32.mrb[0].mxu0
      %v4968 = vadd.f32 %v4736, %v4967
      %v4969 = vpop.f32.mrb[0].mxu0
      %v4970 = vadd.f32 %v4740, %v4969
      %v4971 = vpop.f32.mrb[0].mxu0
      %v4972 = vadd.f32 %v4736, %v4971
      %v4973 = vpop.f32.mrb[0].mxu0
      %v4974 = vadd.f32 %v4740, %v4973
      %4975 = vmatprep.mubr.bf16.mxu0 %v4580
      %4976 = vmatmul.mubr.bf16.gmra.mrb[0].mxu0 %v4579
      %v4977 = vpop.f32.mrb[0].mxu0
      %v4978 = vadd.f32 %v4736, %v4977
      %v4979 = vpop.f32.mrb[0].mxu0
      %v4980 = vadd.f32 %v4740, %v4979
      %v4981 = vpop.f32.mrb[0].mxu0
      %v4982 = vadd.f32 %v4736, %v4981
      %v4983 = vpop.f32.mrb[0].mxu0
      %v4984 = vadd.f32 %v4740, %v4983
      %4985 = vmatprep.mubr.bf16.mxu0 %v4582
      %4986 = vmatmul.mubr.bf16.gmra.mrb[0].mxu0 %v4581
      %v4987 = vpop.f32.mrb[0].mxu0
      %v4988 = vadd.f32 %v4736, %v4987
      %v4989 = vpop.f32.mrb[0].mxu0
      %v4990 = vadd.f32 %v4740, %v4989
      %v4991 = vpop.f32.mrb[0].mxu0
      %v4992 = vadd.f32 %v4736, %v4991
      %v4993 = vpop.f32.mrb[0].mxu0
      %v4994 = vadd.f32 %v4740, %v4993
      %4995 = vmatprep.mubr.bf16.mxu0 %v4584
      %4996 = vmatmul.mubr.bf16.gmra.mrb[0].mxu0 %v4583
      %v4997 = vpop.f32.mrb[0].mxu0
      %v4998 = vadd.f32 %v4736, %v4997
      %v4999 = vpop.f32.mrb[0].mxu0
      %v5000 = vadd.f32 %v4740, %v4999
      %v5001 = vpop.f32.mrb[0].mxu0
      %v5002 = vadd.f32 %v4736, %v5001
      %v5003 = vpop.f32.mrb[0].mxu0
      %v5004 = vadd.f32 %v4740, %v5003
      %5005 = vmatprep.mubr.bf16.mxu0 %v4586
      %5006 = vmatmul.mubr.bf16.gmra.mrb[0].mxu0 %v4585
      %v5007 = vpop.f32.mrb[0].mxu0
      %v5008 = vadd.f32 %v4736, %v5007
      %v5009 = vpop.f32.mrb[0].mxu0
      %v5010 = vadd.f32 %v4740, %v5009
      %v5011 = vpop.f32.mrb[0].mxu0
      %v5012 = vadd.f32 %v4736, %v5011
      %v5013 = vpop.f32.mrb[0].mxu0
      %v5014 = vadd.f32 %v4740, %v5013
      %5015 = vmatprep.mubr.bf16.mxu0 %v4588
      %5016 = vmatmul.mubr.bf16.gmra.mrb[0].mxu0 %v4587
      %v5017 = vpop.f32.mrb[0].mxu0
      %v5018 = vadd.f32 %v4736, %v5017
      %v5019 = vpop.f32.mrb[0].mxu0
      %v5020 = vadd.f32 %v4740, %v5019
      %v5021 = vpop.f32.mrb[0].mxu0
      %v5022 = vadd.f32 %v4736, %v5021
      %v5023 = vpop.f32.mrb[0].mxu0
      %v5024 = vadd.f32 %v4740, %v5023
      %5025 = vmatprep.mubr.bf16.mxu0 %v4590
      %5026 = vmatmul.mubr.bf16.gmra.mrb[0].mxu0 %v4589
      %v5027 = vpop.f32.mrb[0].mxu0
      %v5028 = vadd.f32 %v4736, %v5027
      %v5029 = vpop.f32.mrb[0].mxu0
      %v5030 = vadd.f32 %v4740, %v5029
      %v5031 = vpop.f32.mrb[0].mxu0
      %v5032 = vadd.f32 %v4736, %v5031
      %v5033 = vpop.f32.mrb[0].mxu0
      %v5034 = vadd.f32 %v4740, %v5033
      %5035 = vmatprep.mubr.bf16.mxu0 %v4592
      %5036 = vmatmul.mubr.bf16.gmra.mrb[0].mxu0 %v4591
      %v5037 = vpop.f32.mrb[0].mxu0
      %v5038 = vadd.f32 %v4736, %v5037
      %v5039 = vpop.f32.mrb[0].mxu0
      %v5040 = vadd.f32 %v4740, %v5039
      %v5041 = vpop.f32.mrb[0].mxu0
      %v5042 = vadd.f32 %v4736, %v5041
      %v5043 = vpop.f32.mrb[0].mxu0
      %v5044 = vadd.f32 %v4740, %v5043
      %5045 = vmatprep.mubr.bf16.mxu0 %v4594
      %5046 = vmatmul.mubr.bf16.gmra.mrb[0].mxu0 %v4593
      %v5047 = vpop.f32.mrb[0].mxu0
      %v5048 = vadd.f32 %v4736, %v5047
      %v5049 = vpop.f32.mrb[0].mxu0
      %v5050 = vadd.f32 %v4740, %v5049
      %v5051 = vpop.f32.mrb[0].mxu0
      %v5052 = vadd.f32 %v4736, %v5051
      %v5053 = vpop.f32.mrb[0].mxu0
      %v5054 = vadd.f32 %v4740, %v5053
      %5055 = vmatprep.mubr.bf16.mxu0 %v4596
      %5056 = vmatmul.mubr.bf16.gmra.mrb[0].mxu0 %v4595
      %v5057 = vpop.f32.mrb[0].mxu0
      %v5058 = vadd.f32 %v4736, %v5057
      %v5059 = vpop.f32.mrb[0].mxu0
      %v5060 = vadd.f32 %v4740, %v5059
      %v5061 = vpop.f32.mrb[0].mxu0
      %v5062 = vadd.f32 %v4736, %v5061
      %v5063 = vpop.f32.mrb[0].mxu0
      %v5064 = vadd.f32 %v4740, %v5063
      %5065 = vmatprep.mubr.bf16.mxu0 %v4598
      %5066 = vmatmul.mubr.bf16.gmra.mrb[0].mxu0 %v4597
      %v5067 = vpop.f32.mrb[0].mxu0
      %v5068 = vadd.f32 %v4736, %v5067
      %v5069 = vpop.f32.mrb[0].mxu0
      %v5070 = vadd.f32 %v4740, %v5069
      %v5071 = vpop.f32.mrb[0].mxu0
      %v5072 = vadd.f32 %v4736, %v5071
      %v5073 = vpop.f32.mrb[0].mxu0
      %v5074 = vadd.f32 %v4740, %v5073
      %5075 = vmatprep.mubr.bf16.mxu0 %v4600
      %5076 = vmatmul.mubr.bf16.gmra.mrb[0].mxu0 %v4599
      %v5077 = vpop.f32.mrb[0].mxu0
      %v5078 = vadd.f32 %v4736, %v5077
      %v5079 = vpop.f32.mrb[0].mxu0
      %v5080 = vadd.f32 %v4740, %v5079
      %v5081 = vpop.f32.mrb[0].mxu0
      %v5082 = vadd.f32 %v4736, %v5081
      %v5083 = vpop.f32.mrb[0].mxu0
      %v5084 = vadd.f32 %v4740, %v5083
      %5085 = vmatprep.mubr.bf16.mxu0 %v4602
      %5086 = vmatmul.mubr.bf16.gmra.mrb[0].mxu0 %v4601
      %v5087 = vpop.f32.mrb[0].mxu0
      %v5088 = vadd.f32 %v4736, %v5087
      %v5089 = vpop.f32.mrb[0].mxu0
      %v5090 = vadd.f32 %v4740, %v5089
      %v5091 = vpop.f32.mrb[0].mxu0
      %v5092 = vadd.f32 %v4736, %v5091
      %v5093 = vpop.f32.mrb[0].mxu0
      %v5094 = vadd.f32 %v4740, %v5093
      %5095 = vmatprep.mubr.bf16.mxu0 %v4604
      %5096 = vmatmul.mubr.bf16.gmra.mrb[0].mxu0 %v4603
      %v5097 = vpop.f32.mrb[0].mxu0
      %v5098 = vadd.f32 %v4736, %v5097
      %v5099 = vpop.f32.mrb[0].mxu0
      %v5100 = vadd.f32 %v4740, %v5099
      %v5101 = vpop.f32.mrb[0].mxu0
      %v5102 = vadd.f32 %v4736, %v5101
      %v5103 = vpop.f32.mrb[0].mxu0
      %v5104 = vadd.f32 %v4740, %v5103
      %5105 = vmatprep.mubr.bf16.mxu0 %v4606
      %5106 = vmatmul.mubr.bf16.gmra.mrb[0].mxu0 %v4605
      %v5107 = vpop.f32.mrb[0].mxu0
      %v5108 = vadd.f32 %v4736, %v5107
      %v5109 = vpop.f32.mrb[0].mxu0
      %v5110 = vadd.f32 %v4740, %v5109
      %v5111 = vpop.f32.mrb[0].mxu0
      %v5112 = vadd.f32 %v4736, %v5111
      %v5113 = vpop.f32.mrb[0].mxu0
      %v5114 = vadd.f32 %v4740, %v5113
      %5115 = vmatprep.mubr.bf16.mxu0 %v4608
      %5116 = vmatmul.mubr.bf16.gmra.mrb[0].mxu0 %v4607
      %v5117 = vpop.f32.mrb[0].mxu0
      %v5118 = vadd.f32 %v4736, %v5117
      %v5119 = vpop.f32.mrb[0].mxu0
      %v5120 = vadd.f32 %v4740, %v5119
      %v5121 = vpop.f32.mrb[0].mxu0
      %v5122 = vadd.f32 %v4736, %v5121
      %v5123 = vpop.f32.mrb[0].mxu0
      %v5124 = vadd.f32 %v4740, %v5123
      %5125 = vmatprep.mubr.bf16.mxu0 %v4610
      %5126 = vmatmul.mubr.bf16.gmra.mrb[0].mxu0 %v4609
      %v5127 = vpop.f32.mrb[0].mxu0
      %v5128 = vadd.f32 %v4736, %v5127
      %v5129 = vpop.f32.mrb[0].mxu0
      %v5130 = vadd.f32 %v4740, %v5129
      %v5131 = vpop.f32.mrb[0].mxu0
      %v5132 = vadd.f32 %v4736, %v5131
      %v5133 = vpop.f32.mrb[0].mxu0
      %v5134 = vadd.f32 %v4740, %v5133
      %5135 = vmatprep.mubr.bf16.mxu0 %v4612
      %5136 = vmatmul.mubr.bf16.gmra.mrb[0].mxu0 %v4611
      %v5137 = vpop.f32.mrb[0].mxu0
      %v5138 = vadd.f32 %v4736, %v5137
      %v5139 = vpop.f32.mrb[0].mxu0
      %v5140 = vadd.f32 %v4740, %v5139
      %v5141 = vpop.f32.mrb[0].mxu0
      %v5142 = vadd.f32 %v4736, %v5141
      %v5143 = vpop.f32.mrb[0].mxu0
      %v5144 = vadd.f32 %v4740, %v5143
      %5145 = vmatprep.mubr.bf16.mxu0 %v4614
      %5146 = vmatmul.mubr.bf16.gmra.mrb[0].mxu0 %v4613
      %v5147 = vpop.f32.mrb[0].mxu0
      %v5148 = vadd.f32 %v4736, %v5147
      %v5149 = vpop.f32.mrb[0].mxu0
      %v5150 = vadd.f32 %v4740, %v5149
      %v5151 = vpop.f32.mrb[0].mxu0
      %v5152 = vadd.f32 %v4736, %v5151
      %v5153 = vpop.f32.mrb[0].mxu0
      %v5154 = vadd.f32 %v4740, %v5153
      %5155 = vmatprep.mubr.bf16.mxu0 %v4616
      %5156 = vmatmul.mubr.bf16.gmra.mrb[0].mxu0 %v4615
      %v5157 = vpop.f32.mrb[0].mxu0
      %v5158 = vadd.f32 %v4736, %v5157
      %v5159 = vpop.f32.mrb[0].mxu0
      %v5160 = vadd.f32 %v4740, %v5159
      %v5161 = vpop.f32.mrb[0].mxu0
      %v5162 = vadd.f32 %v4736, %v5161
      %v5163 = vpop.f32.mrb[0].mxu0
      %v5164 = vadd.f32 %v4740, %v5163
      %5165 = vmatprep.mubr.bf16.mxu0 %v4618
      %5166 = vmatmul.mubr.bf16.gmra.mrb[0].mxu0 %v4617
      %v5167 = vpop.f32.mrb[0].mxu0
      %v5168 = vadd.f32 %v4736, %v5167
      %v5169 = vpop.f32.mrb[0].mxu0
      %v5170 = vadd.f32 %v4740, %v5169
      %v5171 = vpop.f32.mrb[0].mxu0
      %v5172 = vadd.f32 %v4736, %v5171
      %v5173 = vpop.f32.mrb[0].mxu0
      %v5174 = vadd.f32 %v4740, %v5173
      %5175 = vmatprep.mubr.bf16.mxu0 %v4620
      %5176 = vmatmul.mubr.bf16.gmra.mrb[0].mxu0 %v4619
      %v5177 = vpop.f32.mrb[0].mxu0
      %v5178 = vadd.f32 %v4736, %v5177
      %v5179 = vpop.f32.mrb[0].mxu0
      %v5180 = vadd.f32 %v4740, %v5179
      %v5181 = vpop.f32.mrb[0].mxu0
      %v5182 = vadd.f32 %v4736, %v5181
      %v5183 = vpop.f32.mrb[0].mxu0
      %v5184 = vadd.f32 %v4740, %v5183
      %5185 = vmatprep.mubr.bf16.mxu0 %v4622
      %5186 = vmatmul.mubr.bf16.gmra.mrb[0].mxu0 %v4621
      %v5187 = vpop.f32.mrb[0].mxu0
      %v5188 = vadd.f32 %v4736, %v5187
      %v5189 = vpop.f32.mrb[0].mxu0
      %v5190 = vadd.f32 %v4740, %v5189
      %v5191 = vpop.f32.mrb[0].mxu0
      %v5192 = vadd.f32 %v4736, %v5191
      %v5193 = vpop.f32.mrb[0].mxu0
      %v5194 = vadd.f32 %v4740, %v5193
      %5195 = vmatprep.mubr.bf16.mxu0 %v4624
      %5196 = vmatmul.mubr.bf16.gmra.mrb[0].mxu0 %v4623
      %v5197 = vpop.f32.mrb[0].mxu0
      %v5198 = vadd.f32 %v4736, %v5197
      %v5199 = vpop.f32.mrb[0].mxu0
      %v5200 = vadd.f32 %v4740, %v5199
      %v5201 = vpop.f32.mrb[0].mxu0
      %v5202 = vadd.f32 %v4736, %v5201
      %v5203 = vpop.f32.mrb[0].mxu0
      %v5204 = vadd.f32 %v4740, %v5203
      %5205 = vmatprep.mubr.bf16.mxu0 %v4626
      %5206 = vmatmul.mubr.bf16.gmra.mrb[0].mxu0 %v4625
      %v5207 = vpop.f32.mrb[0].mxu0
      %v5208 = vadd.f32 %v4736, %v5207
      %v5209 = vpop.f32.mrb[0].mxu0
      %v5210 = vadd.f32 %v4740, %v5209
      %v5211 = vpop.f32.mrb[0].mxu0
      %v5212 = vadd.f32 %v4736, %v5211
      %v5213 = vpop.f32.mrb[0].mxu0
      %v5214 = vadd.f32 %v4740, %v5213
      %5215 = vmatprep.mubr.bf16.mxu0 %v4628
      %5216 = vmatmul.mubr.bf16.gmra.mrb[0].mxu0 %v4627
      %v5217 = vpop.f32.mrb[0].mxu0
      %v5218 = vadd.f32 %v4736, %v5217
      %v5219 = vpop.f32.mrb[0].mxu0
      %v5220 = vadd.f32 %v4740, %v5219
      %v5221 = vpop.f32.mrb[0].mxu0
      %v5222 = vadd.f32 %v4736, %v5221
      %v5223 = vpop.f32.mrb[0].mxu0
      %v5224 = vadd.f32 %v4740, %v5223
      %5225 = vmatprep.mubr.bf16.mxu0 %v4630
      %5226 = vmatmul.mubr.bf16.gmra.mrb[0].mxu0 %v4629
      %v5227 = vpop.f32.mrb[0].mxu0
      %v5228 = vadd.f32 %v4736, %v5227
      %v5229 = vpop.f32.mrb[0].mxu0
      %v5230 = vadd.f32 %v4740, %v5229
      %v5231 = vpop.f32.mrb[0].mxu0
      %v5232 = vadd.f32 %v4736, %v5231
      %v5233 = vpop.f32.mrb[0].mxu0
      %v5234 = vadd.f32 %v4740, %v5233
      %5235 = vmatprep.mubr.bf16.mxu0 %v4632
      %5236 = vmatmul.mubr.bf16.gmra.mrb[0].mxu0 %v4631
      %v5237 = vpop.f32.mrb[0].mxu0
      %v5238 = vadd.f32 %v4736, %v5237
      %v5239 = vpop.f32.mrb[0].mxu0
      %v5240 = vadd.f32 %v4740, %v5239
      %v5241 = vpop.f32.mrb[0].mxu0
      %v5242 = vadd.f32 %v4736, %v5241
      %v5243 = vpop.f32.mrb[0].mxu0
      %v5244 = vadd.f32 %v4740, %v5243
      %5245 = vmatprep.mubr.bf16.mxu0 %v4634
      %5246 = vmatmul.mubr.bf16.gmra.mrb[0].mxu0 %v4633
      %v5247 = vpop.f32.mrb[0].mxu0
      %v5248 = vadd.f32 %v4736, %v5247
      %v5249 = vpop.f32.mrb[0].mxu0
      %v5250 = vadd.f32 %v4740, %v5249
      %v5251 = vpop.f32.mrb[0].mxu0
      %v5252 = vadd.f32 %v4736, %v5251
      %v5253 = vpop.f32.mrb[0].mxu0
      %v5254 = vadd.f32 %v4740, %v5253
      %5255 = vmatprep.mubr.bf16.mxu0 %v4636
      %5256 = vmatmul.mubr.bf16.gmra.mrb[0].mxu0 %v4635
      %v5257 = vpop.f32.mrb[0].mxu0
      %v5258 = vadd.f32 %v4736, %v5257
      %v5259 = vpop.f32.mrb[0].mxu0
      %v5260 = vadd.f32 %v4740, %v5259
      %v5261 = vpop.f32.mrb[0].mxu0
      %v5262 = vadd.f32 %v4736, %v5261
      %v5263 = vpop.f32.mrb[0].mxu0
      %v5264 = vadd.f32 %v4740, %v5263
      %5265 = vmatprep.mubr.bf16.mxu0 %v4638
      %5266 = vmatmul.mubr.bf16.gmra.mrb[0].mxu0 %v4637
      %v5267 = vpop.f32.mrb[0].mxu0
      %v5268 = vadd.f32 %v4736, %v5267
      %v5269 = vpop.f32.mrb[0].mxu0
      %v5270 = vadd.f32 %v4740, %v5269
      %v5271 = vpop.f32.mrb[0].mxu0
      %v5272 = vadd.f32 %v4736, %v5271
      %v5273 = vpop.f32.mrb[0].mxu0
      %v5274 = vadd.f32 %v4740, %v5273
      %5275 = vmatprep.mubr.bf16.mxu0 %v4640
      %5276 = vmatmul.mubr.bf16.gmra.mrb[0].mxu0 %v4639
      %v5277 = vpop.f32.mrb[0].mxu0
      %v5278 = vadd.f32 %v4736, %v5277
      %v5279 = vpop.f32.mrb[0].mxu0
      %v5280 = vadd.f32 %v4740, %v5279
      %v5281 = vpop.f32.mrb[0].mxu0
      %v5282 = vadd.f32 %v4736, %v5281
      %v5283 = vpop.f32.mrb[0].mxu0
      %v5284 = vadd.f32 %v4740, %v5283
      %5285 = vmatprep.mubr.bf16.mxu0 %v4642
      %5286 = vmatmul.mubr.bf16.gmra.mrb[0].mxu0 %v4641
      %v5287 = vpop.f32.mrb[0].mxu0
      %v5288 = vadd.f32 %v4736, %v5287
      %v5289 = vpop.f32.mrb[0].mxu0
      %v5290 = vadd.f32 %v4740, %v5289
      %v5291 = vpop.f32.mrb[0].mxu0
      %v5292 = vadd.f32 %v4736, %v5291
      %v5293 = vpop.f32.mrb[0].mxu0
      %v5294 = vadd.f32 %v4740, %v5293
      %5295 = vmatprep.mubr.bf16.mxu0 %v4644
      %5296 = vmatmul.mubr.bf16.gmra.mrb[0].mxu0 %v4643
      %v5297 = vpop.f32.mrb[0].mxu0
      %v5298 = vadd.f32 %v4736, %v5297
      %v5299 = vpop.f32.mrb[0].mxu0
      %v5300 = vadd.f32 %v4740, %v5299
      %v5301 = vpop.f32.mrb[0].mxu0
      %v5302 = vadd.f32 %v4736, %v5301
      %v5303 = vpop.f32.mrb[0].mxu0
      %v5304 = vadd.f32 %v4740, %v5303
      %5305 = vmatprep.mubr.bf16.mxu0 %v4646
      %5306 = vmatmul.mubr.bf16.gmra.mrb[0].mxu0 %v4645
      %v5307 = vpop.f32.mrb[0].mxu0
      %v5308 = vadd.f32 %v4736, %v5307
      %v5309 = vpop.f32.mrb[0].mxu0
      %v5310 = vadd.f32 %v4740, %v5309
      %v5311 = vpop.f32.mrb[0].mxu0
      %v5312 = vadd.f32 %v4736, %v5311
      %v5313 = vpop.f32.mrb[0].mxu0
      %v5314 = vadd.f32 %v4740, %v5313
      %5315 = vmatprep.mubr.bf16.mxu0 %v4648
      %5316 = vmatmul.mubr.bf16.gmra.mrb[0].mxu0 %v4647
      %v5317 = vpop.f32.mrb[0].mxu0
      %v5318 = vadd.f32 %v4736, %v5317
      %v5319 = vpop.f32.mrb[0].mxu0
      %v5320 = vadd.f32 %v4740, %v5319
      %v5321 = vpop.f32.mrb[0].mxu0
      %v5322 = vadd.f32 %v4736, %v5321
      %v5323 = vpop.f32.mrb[0].mxu0
      %v5324 = vadd.f32 %v4740, %v5323
      %5325 = vmatprep.mubr.bf16.mxu0 %v4650
      %5326 = vmatmul.mubr.bf16.gmra.mrb[0].mxu0 %v4649
      %v5327 = vpop.f32.mrb[0].mxu0
      %v5328 = vadd.f32 %v4736, %v5327
      %v5329 = vpop.f32.mrb[0].mxu0
      %v5330 = vadd.f32 %v4740, %v5329
      %v5331 = vpop.f32.mrb[0].mxu0
      %v5332 = vadd.f32 %v4736, %v5331
      %v5333 = vpop.f32.mrb[0].mxu0
      %v5334 = vadd.f32 %v4740, %v5333
      %5335 = vmatprep.mubr.bf16.mxu0 %v4652
      %5336 = vmatmul.mubr.bf16.gmra.mrb[0].mxu0 %v4651
      %v5337 = vpop.f32.mrb[0].mxu0
      %v5338 = vadd.f32 %v4736, %v5337
      %v5339 = vpop.f32.mrb[0].mxu0
      %v5340 = vadd.f32 %v4740, %v5339
      %v5341 = vpop.f32.mrb[0].mxu0
      %v5342 = vadd.f32 %v4736, %v5341
      %v5343 = vpop.f32.mrb[0].mxu0
      %v5344 = vadd.f32 %v4740, %v5343
      %5345 = vmatprep.mubr.bf16.mxu0 %v4654
      %5346 = vmatmul.mubr.bf16.gmra.mrb[0].mxu0 %v4653
      %v5347 = vpop.f32.mrb[0].mxu0
      %v5348 = vadd.f32 %v4736, %v5347
      %v5349 = vpop.f32.mrb[0].mxu0
      %v5350 = vadd.f32 %v4740, %v5349
      %v5351 = vpop.f32.mrb[0].mxu0
      %v5352 = vadd.f32 %v4736, %v5351
      %v5353 = vpop.f32.mrb[0].mxu0
      %v5354 = vadd.f32 %v4740, %v5353
      %5355 = vmatprep.mubr.bf16.mxu0 %v4656
      %5356 = vmatmul.mubr.bf16.gmra.mrb[0].mxu0 %v4655
      %v5357 = vpop.f32.mrb[0].mxu0
      %v5358 = vadd.f32 %v4736, %v5357
      %v5359 = vpop.f32.mrb[0].mxu0
      %v5360 = vadd.f32 %v4740, %v5359
      %v5361 = vpop.f32.mrb[0].mxu0
      %v5362 = vadd.f32 %v4736, %v5361
      %v5363 = vpop.f32.mrb[0].mxu0
      %v5364 = vadd.f32 %v4740, %v5363
      %5365 = vmatprep.mubr.bf16.mxu0 %v4658
      %5366 = vmatmul.mubr.bf16.gmra.mrb[0].mxu0 %v4657
      %v5367 = vpop.f32.mrb[0].mxu0
      %v5368 = vadd.f32 %v4736, %v5367
      %v5369 = vpop.f32.mrb[0].mxu0
      %v5370 = vadd.f32 %v4740, %v5369
      %v5371 = vpop.f32.mrb[0].mxu0
      %v5372 = vadd.f32 %v4736, %v5371
      %v5373 = vpop.f32.mrb[0].mxu0
      %v5374 = vadd.f32 %v4740, %v5373
      %5375 = vmatprep.mubr.bf16.mxu0 %v4660
      %5376 = vmatmul.mubr.bf16.gmra.mrb[0].mxu0 %v4659
      %v5377 = vpop.f32.mrb[0].mxu0
      %v5378 = vadd.f32 %v4736, %v5377
      %v5379 = vpop.f32.mrb[0].mxu0
      %v5380 = vadd.f32 %v4740, %v5379
      %v5381 = vpop.f32.mrb[0].mxu0
      %v5382 = vadd.f32 %v4736, %v5381
      %v5383 = vpop.f32.mrb[0].mxu0
      %v5384 = vadd.f32 %v4740, %v5383
      %5385 = vmatprep.mubr.bf16.mxu0 %v4662
      %5386 = vmatmul.mubr.bf16.gmra.mrb[0].mxu0 %v4661
      %v5387 = vpop.f32.mrb[0].mxu0
      %v5388 = vadd.f32 %v4736, %v5387
      %v5389 = vpop.f32.mrb[0].mxu0
      %v5390 = vadd.f32 %v4740, %v5389
      %v5391 = vpop.f32.mrb[0].mxu0
      %v5392 = vadd.f32 %v4736, %v5391
      %v5393 = vpop.f32.mrb[0].mxu0
      %v5394 = vadd.f32 %v4740, %v5393
      %5395 = vmatprep.mubr.bf16.mxu0 %v4664
      %5396 = vmatmul.mubr.bf16.gmra.mrb[0].mxu0 %v4663
      %v5397 = vpop.f32.mrb[0].mxu0
      %v5398 = vadd.f32 %v4736, %v5397
      %v5399 = vpop.f32.mrb[0].mxu0
      %v5400 = vadd.f32 %v4740, %v5399
      %v5401 = vpop.f32.mrb[0].mxu0
      %v5402 = vadd.f32 %v4736, %v5401
      %v5403 = vpop.f32.mrb[0].mxu0
      %v5404 = vadd.f32 %v4740, %v5403
      %5405 = vmatprep.mubr.bf16.mxu0 %v4666
      %5406 = vmatmul.mubr.bf16.gmra.mrb[0].mxu0 %v4665
      %v5407 = vpop.f32.mrb[0].mxu0
      %v5408 = vadd.f32 %v4736, %v5407
      %v5409 = vpop.f32.mrb[0].mxu0
      %v5410 = vadd.f32 %v4740, %v5409
      %v5411 = vpop.f32.mrb[0].mxu0
      %v5412 = vadd.f32 %v4736, %v5411
      %v5413 = vpop.f32.mrb[0].mxu0
      %v5414 = vadd.f32 %v4740, %v5413
      %5415 = vmatprep.mubr.bf16.mxu0 %v4668
      %5416 = vmatmul.mubr.bf16.gmra.mrb[0].mxu0 %v4667
      %v5417 = vpop.f32.mrb[0].mxu0
      %v5418 = vadd.f32 %v4736, %v5417
      %v5419 = vpop.f32.mrb[0].mxu0
      %v5420 = vadd.f32 %v4740, %v5419
      %v5421 = vpop.f32.mrb[0].mxu0
      %v5422 = vadd.f32 %v4736, %v5421
      %v5423 = vpop.f32.mrb[0].mxu0
      %v5424 = vadd.f32 %v4740, %v5423
      %5425 = vmatprep.mubr.bf16.mxu0 %v4670
      %5426 = vmatmul.mubr.bf16.gmra.mrb[0].mxu0 %v4669
      %v5427 = vpop.f32.mrb[0].mxu0
      %v5428 = vadd.f32 %v4736, %v5427
      %v5429 = vpop.f32.mrb[0].mxu0
      %v5430 = vadd.f32 %v4740, %v5429
      %v5431 = vpop.f32.mrb[0].mxu0
      %v5432 = vadd.f32 %v4736, %v5431
      %v5433 = vpop.f32.mrb[0].mxu0
      %v5434 = vadd.f32 %v4740, %v5433
      %5435 = vmatprep.mubr.bf16.mxu0 %v4672
      %5436 = vmatmul.mubr.bf16.gmra.mrb[0].mxu0 %v4671
      %v5437 = vpop.f32.mrb[0].mxu0
      %v5438 = vadd.f32 %v4736, %v5437
      %v5439 = vpop.f32.mrb[0].mxu0
      %v5440 = vadd.f32 %v4740, %v5439
      %v5441 = vpop.f32.mrb[0].mxu0
      %v5442 = vadd.f32 %v4736, %v5441
      %v5443 = vpop.f32.mrb[0].mxu0
      %v5444 = vadd.f32 %v4740, %v5443
      %5445 = vmatprep.mubr.bf16.mxu0 %v4674
      %5446 = vmatmul.mubr.bf16.gmra.mrb[0].mxu0 %v4673
      %v5447 = vpop.f32.mrb[0].mxu0
      %v5448 = vadd.f32 %v4736, %v5447
      %v5449 = vpop.f32.mrb[0].mxu0
      %v5450 = vadd.f32 %v4740, %v5449
      %v5451 = vpop.f32.mrb[0].mxu0
      %v5452 = vadd.f32 %v4736, %v5451
      %v5453 = vpop.f32.mrb[0].mxu0
      %v5454 = vadd.f32 %v4740, %v5453
      %5455 = vmatprep.mubr.bf16.mxu0 %v4676
      %5456 = vmatmul.mubr.bf16.gmra.mrb[0].mxu0 %v4675
      %v5457 = vpop.f32.mrb[0].mxu0
      %v5458 = vadd.f32 %v4736, %v5457
      %v5459 = vpop.f32.mrb[0].mxu0
      %v5460 = vadd.f32 %v4740, %v5459
      %v5461 = vpop.f32.mrb[0].mxu0
      %v5462 = vadd.f32 %v4736, %v5461
      %v5463 = vpop.f32.mrb[0].mxu0
      %v5464 = vadd.f32 %v4740, %v5463
      %5465 = vmatprep.mubr.bf16.mxu0 %v4678
      %5466 = vmatmul.mubr.bf16.gmra.mrb[0].mxu0 %v4677
      %v5467 = vpop.f32.mrb[0].mxu0
      %v5468 = vadd.f32 %v4736, %v5467
      %v5469 = vpop.f32.mrb[0].mxu0
      %v5470 = vadd.f32 %v4740, %v5469
      %v5471 = vpop.f32.mrb[0].mxu0
      %v5472 = vadd.f32 %v4736, %v5471
      %v5473 = vpop.f32.mrb[0].mxu0
      %v5474 = vadd.f32 %v4740, %v5473
      %5475 = vmatprep.mubr.bf16.mxu0 %v4680
      %5476 = vmatmul.mubr.bf16.gmra.mrb[0].mxu0 %v4679
      %v5477 = vpop.f32.mrb[0].mxu0
      %v5478 = vadd.f32 %v4736, %v5477
      %v5479 = vpop.f32.mrb[0].mxu0
      %v5480 = vadd.f32 %v4740, %v5479
      %v5481 = vpop.f32.mrb[0].mxu0
      %v5482 = vadd.f32 %v4736, %v5481
      %v5483 = vpop.f32.mrb[0].mxu0
      %v5484 = vadd.f32 %v4740, %v5483
      %5485 = vmatprep.mubr.bf16.mxu0 %v4682
      %5486 = vmatmul.mubr.bf16.gmra.mrb[0].mxu0 %v4681
      %v5487 = vpop.f32.mrb[0].mxu0
      %v5488 = vadd.f32 %v4736, %v5487
      %v5489 = vpop.f32.mrb[0].mxu0
      %v5490 = vadd.f32 %v4740, %v5489
      %v5491 = vpop.f32.mrb[0].mxu0
      %v5492 = vadd.f32 %v4736, %v5491
      %v5493 = vpop.f32.mrb[0].mxu0
      %v5494 = vadd.f32 %v4740, %v5493
      %5495 = vmatprep.mubr.bf16.mxu0 %v4684
      %5496 = vmatmul.mubr.bf16.gmra.mrb[0].mxu0 %v4683
      %v5497 = vpop.f32.mrb[0].mxu0
      %v5498 = vadd.f32 %v4736, %v5497
      %v5499 = vpop.f32.mrb[0].mxu0
      %v5500 = vadd.f32 %v4740, %v5499
      %v5501 = vpop.f32.mrb[0].mxu0
      %v5502 = vadd.f32 %v4736, %v5501
      %v5503 = vpop.f32.mrb[0].mxu0
      %v5504 = vadd.f32 %v4740, %v5503
      %5505 = vmatprep.mubr.bf16.mxu0 %v4686
      %5506 = vmatmul.mubr.bf16.gmra.mrb[0].mxu0 %v4685
      %v5507 = vpop.f32.mrb[0].mxu0
      %v5508 = vadd.f32 %v4736, %v5507
      %v5509 = vpop.f32.mrb[0].mxu0
      %v5510 = vadd.f32 %v4740, %v5509
      %v5511 = vpop.f32.mrb[0].mxu0
      %v5512 = vadd.f32 %v4736, %v5511
      %v5513 = vpop.f32.mrb[0].mxu0
      %v5514 = vadd.f32 %v4740, %v5513
      %5515 = vmatprep.mubr.bf16.mxu0 %v4688
      %5516 = vmatmul.mubr.bf16.gmra.mrb[0].mxu0 %v4687
      %v5517 = vpop.f32.mrb[0].mxu0
      %v5518 = vadd.f32 %v4736, %v5517
      %v5519 = vpop.f32.mrb[0].mxu0
      %v5520 = vadd.f32 %v4740, %v5519
      %v5521 = vpop.f32.mrb[0].mxu0
      %v5522 = vadd.f32 %v4736, %v5521
      %v5523 = vpop.f32.mrb[0].mxu0
      %v5524 = vadd.f32 %v4740, %v5523
      %5525 = vmatprep.mubr.bf16.mxu0 %v4690
      %5526 = vmatmul.mubr.bf16.gmra.mrb[0].mxu0 %v4689
      %v5527 = vpop.f32.mrb[0].mxu0
      %v5528 = vadd.f32 %v4736, %v5527
      %v5529 = vpop.f32.mrb[0].mxu0
      %v5530 = vadd.f32 %v4740, %v5529
      %v5531 = vpop.f32.mrb[0].mxu0
      %v5532 = vadd.f32 %v4736, %v5531
      %v5533 = vpop.f32.mrb[0].mxu0
      %v5534 = vadd.f32 %v4740, %v5533
      %5535 = vmatprep.mubr.bf16.mxu0 %v4692
      %5536 = vmatmul.mubr.bf16.gmra.mrb[0].mxu0 %v4691
      %v5537 = vpop.f32.mrb[0].mxu0
      %v5538 = vadd.f32 %v4736, %v5537
      %v5539 = vpop.f32.mrb[0].mxu0
      %v5540 = vadd.f32 %v4740, %v5539
      %v5541 = vpop.f32.mrb[0].mxu0
      %v5542 = vadd.f32 %v4736, %v5541
      %v5543 = vpop.f32.mrb[0].mxu0
      %v5544 = vadd.f32 %v4740, %v5543
      %5545 = vmatprep.mubr.bf16.mxu0 %v4694
      %5546 = vmatmul.mubr.bf16.gmra.mrb[0].mxu0 %v4693
      %v5547 = vpop.f32.mrb[0].mxu0
      %v5548 = vadd.f32 %v4736, %v5547
      %v5549 = vpop.f32.mrb[0].mxu0
      %v5550 = vadd.f32 %v4740, %v5549
      %v5551 = vpop.f32.mrb[0].mxu0
      %v5552 = vadd.f32 %v4736, %v5551
      %v5553 = vpop.f32.mrb[0].mxu0
      %v5554 = vadd.f32 %v4740, %v5553
      %5555 = vmatprep.mubr.bf16.mxu0 %v4696
      %5556 = vmatmul.mubr.bf16.gmra.mrb[0].mxu0 %v4695
      %v5557 = vpop.f32.mrb[0].mxu0
      %v5558 = vadd.f32 %v4736, %v5557
      %v5559 = vpop.f32.mrb[0].mxu0
      %v5560 = vadd.f32 %v4740, %v5559
      %v5561 = vpop.f32.mrb[0].mxu0
      %v5562 = vadd.f32 %v4736, %v5561
      %v5563 = vpop.f32.mrb[0].mxu0
      %v5564 = vadd.f32 %v4740, %v5563
      %5565 = vmatprep.mubr.bf16.mxu0 %v4698
      %5566 = vmatmul.mubr.bf16.gmra.mrb[0].mxu0 %v4697
      %v5567 = vpop.f32.mrb[0].mxu0
      %v5568 = vadd.f32 %v4736, %v5567
      %v5569 = vpop.f32.mrb[0].mxu0
      %v5570 = vadd.f32 %v4740, %v5569
      %v5571 = vpop.f32.mrb[0].mxu0
      %v5572 = vadd.f32 %v4736, %v5571
      %v5573 = vpop.f32.mrb[0].mxu0
      %v5574 = vadd.f32 %v4740, %v5573
      %5575 = vdwg.mxu0
      %v5576 = vmax.f32 %v4938, 0.0
      %v5577 = vmax.f32 %v4940, 0.0
      %v5578 = vmax.f32 %v4942, 0.0
      %v5579 = vmax.f32 %v4944, 0.0
      %v5580 = vmax.f32 %v4948, 0.0
      %v5581 = vmax.f32 %v4950, 0.0
      %v5582 = vmax.f32 %v4952, 0.0
      %v5583 = vmax.f32 %v4954, 0.0
      %v5584 = vmax.f32 %v4958, 0.0
      %v5585 = vmax.f32 %v4960, 0.0
      %v5586 = vmax.f32 %v4962, 0.0
      %v5587 = vmax.f32 %v4964, 0.0
      %v5588 = vmax.f32 %v4968, 0.0
      %v5589 = vmax.f32 %v4970, 0.0
      %v5590 = vmax.f32 %v4972, 0.0
      %v5591 = vmax.f32 %v4974, 0.0
      %v5592 = vmax.f32 %v4978, 0.0
      %v5593 = vmax.f32 %v4980, 0.0
      %v5594 = vmax.f32 %v4982, 0.0
      %v5595 = vmax.f32 %v4984, 0.0
      %v5596 = vmax.f32 %v4988, 0.0
      %v5597 = vmax.f32 %v4990, 0.0
      %v5598 = vmax.f32 %v4992, 0.0
      %v5599 = vmax.f32 %v4994, 0.0
      %v5600 = vmax.f32 %v4998, 0.0
      %v5601 = vmax.f32 %v5000, 0.0
      %v5602 = vmax.f32 %v5002, 0.0
      %v5603 = vmax.f32 %v5004, 0.0
      %v5604 = vmax.f32 %v5008, 0.0
      %v5605 = vmax.f32 %v5010, 0.0
      %v5606 = vmax.f32 %v5012, 0.0
      %v5607 = vmax.f32 %v5014, 0.0
      %v5608 = vmax.f32 %v5018, 0.0
      %v5609 = vmax.f32 %v5020, 0.0
      %v5610 = vmax.f32 %v5022, 0.0
      %v5611 = vmax.f32 %v5024, 0.0
      %v5612 = vmax.f32 %v5028, 0.0
      %v5613 = vmax.f32 %v5030, 0.0
      %v5614 = vmax.f32 %v5032, 0.0
      %v5615 = vmax.f32 %v5034, 0.0
      %v5616 = vmax.f32 %v5038, 0.0
      %v5617 = vmax.f32 %v5040, 0.0
      %v5618 = vmax.f32 %v5042, 0.0
      %v5619 = vmax.f32 %v5044, 0.0
      %v5620 = vmax.f32 %v5048, 0.0
      %v5621 = vmax.f32 %v5050, 0.0
      %v5622 = vmax.f32 %v5052, 0.0
      %v5623 = vmax.f32 %v5054, 0.0
      %v5624 = vmax.f32 %v5058, 0.0
      %v5625 = vmax.f32 %v5060, 0.0
      %v5626 = vmax.f32 %v5062, 0.0
      %v5627 = vmax.f32 %v5064, 0.0
      %v5628 = vmax.f32 %v5068, 0.0
      %v5629 = vmax.f32 %v5070, 0.0
      %v5630 = vmax.f32 %v5072, 0.0
      %v5631 = vmax.f32 %v5074, 0.0
      %v5632 = vmax.f32 %v5078, 0.0
      %v5633 = vmax.f32 %v5080, 0.0
      %v5634 = vmax.f32 %v5082, 0.0
      %v5635 = vmax.f32 %v5084, 0.0
      %v5636 = vmax.f32 %v5088, 0.0
      %v5637 = vmax.f32 %v5090, 0.0
      %v5638 = vmax.f32 %v5092, 0.0
      %v5639 = vmax.f32 %v5094, 0.0
      %v5640 = vmax.f32 %v5098, 0.0
      %v5641 = vmax.f32 %v5100, 0.0
      %v5642 = vmax.f32 %v5102, 0.0
      %v5643 = vmax.f32 %v5104, 0.0
      %v5644 = vmax.f32 %v5108, 0.0
      %v5645 = vmax.f32 %v5110, 0.0
      %v5646 = vmax.f32 %v5112, 0.0
      %v5647 = vmax.f32 %v5114, 0.0
      %v5648 = vmax.f32 %v5118, 0.0
      %v5649 = vmax.f32 %v5120, 0.0
      %v5650 = vmax.f32 %v5122, 0.0
      %v5651 = vmax.f32 %v5124, 0.0
      %v5652 = vmax.f32 %v5128, 0.0
      %v5653 = vmax.f32 %v5130, 0.0
      %v5654 = vmax.f32 %v5132, 0.0
      %v5655 = vmax.f32 %v5134, 0.0
      %v5656 = vmax.f32 %v5138, 0.0
      %v5657 = vmax.f32 %v5140, 0.0
      %v5658 = vmax.f32 %v5142, 0.0
      %v5659 = vmax.f32 %v5144, 0.0
      %v5660 = vmax.f32 %v5148, 0.0
      %v5661 = vmax.f32 %v5150, 0.0
      %v5662 = vmax.f32 %v5152, 0.0
      %v5663 = vmax.f32 %v5154, 0.0
      %v5664 = vmax.f32 %v5158, 0.0
      %v5665 = vmax.f32 %v5160, 0.0
      %v5666 = vmax.f32 %v5162, 0.0
      %v5667 = vmax.f32 %v5164, 0.0
      %v5668 = vmax.f32 %v5168, 0.0
      %v5669 = vmax.f32 %v5170, 0.0
      %v5670 = vmax.f32 %v5172, 0.0
      %v5671 = vmax.f32 %v5174, 0.0
      %v5672 = vmax.f32 %v5178, 0.0
      %v5673 = vmax.f32 %v5180, 0.0
      %v5674 = vmax.f32 %v5182, 0.0
      %v5675 = vmax.f32 %v5184, 0.0
      %v5676 = vmax.f32 %v5188, 0.0
      %v5677 = vmax.f32 %v5190, 0.0
      %v5678 = vmax.f32 %v5192, 0.0
      %v5679 = vmax.f32 %v5194, 0.0
      %v5680 = vmax.f32 %v5198, 0.0
      %v5681 = vmax.f32 %v5200, 0.0
      %v5682 = vmax.f32 %v5202, 0.0
      %v5683 = vmax.f32 %v5204, 0.0
      %v5684 = vmax.f32 %v5208, 0.0
      %v5685 = vmax.f32 %v5210, 0.0
      %v5686 = vmax.f32 %v5212, 0.0
      %v5687 = vmax.f32 %v5214, 0.0
      %v5688 = vmax.f32 %v5218, 0.0
      %v5689 = vmax.f32 %v5220, 0.0
      %v5690 = vmax.f32 %v5222, 0.0
      %v5691 = vmax.f32 %v5224, 0.0
      %v5692 = vmax.f32 %v5228, 0.0
      %v5693 = vmax.f32 %v5230, 0.0
      %v5694 = vmax.f32 %v5232, 0.0
      %v5695 = vmax.f32 %v5234, 0.0
      %v5696 = vmax.f32 %v5238, 0.0
      %v5697 = vmax.f32 %v5240, 0.0
      %v5698 = vmax.f32 %v5242, 0.0
      %v5699 = vmax.f32 %v5244, 0.0
      %v5700 = vmax.f32 %v5248, 0.0
      %v5701 = vmax.f32 %v5250, 0.0
      %v5702 = vmax.f32 %v5252, 0.0
      %v5703 = vmax.f32 %v5254, 0.0
      %v5704 = vmax.f32 %v5258, 0.0
      %v5705 = vmax.f32 %v5260, 0.0
      %v5706 = vmax.f32 %v5262, 0.0
      %v5707 = vmax.f32 %v5264, 0.0
      %v5708 = vmax.f32 %v5268, 0.0
      %v5709 = vmax.f32 %v5270, 0.0
      %v5710 = vmax.f32 %v5272, 0.0
      %v5711 = vmax.f32 %v5274, 0.0
      %v5712 = vmax.f32 %v5278, 0.0
      %v5713 = vmax.f32 %v5280, 0.0
      %v5714 = vmax.f32 %v5282, 0.0
      %v5715 = vmax.f32 %v5284, 0.0
      %v5716 = vmax.f32 %v5288, 0.0
      %v5717 = vmax.f32 %v5290, 0.0
      %v5718 = vmax.f32 %v5292, 0.0
      %v5719 = vmax.f32 %v5294, 0.0
      %v5720 = vmax.f32 %v5298, 0.0
      %v5721 = vmax.f32 %v5300, 0.0
      %v5722 = vmax.f32 %v5302, 0.0
      %v5723 = vmax.f32 %v5304, 0.0
      %v5724 = vmax.f32 %v5308, 0.0
      %v5725 = vmax.f32 %v5310, 0.0
      %v5726 = vmax.f32 %v5312, 0.0
      %v5727 = vmax.f32 %v5314, 0.0
      %v5728 = vmax.f32 %v5318, 0.0
      %v5729 = vmax.f32 %v5320, 0.0
      %v5730 = vmax.f32 %v5322, 0.0
      %v5731 = vmax.f32 %v5324, 0.0
      %v5732 = vmax.f32 %v5328, 0.0
      %v5733 = vmax.f32 %v5330, 0.0
      %v5734 = vmax.f32 %v5332, 0.0
      %v5735 = vmax.f32 %v5334, 0.0
      %v5736 = vmax.f32 %v5338, 0.0
      %v5737 = vmax.f32 %v5340, 0.0
      %v5738 = vmax.f32 %v5342, 0.0
      %v5739 = vmax.f32 %v5344, 0.0
      %v5740 = vmax.f32 %v5348, 0.0
      %v5741 = vmax.f32 %v5350, 0.0
      %v5742 = vmax.f32 %v5352, 0.0
      %v5743 = vmax.f32 %v5354, 0.0
      %v5744 = vmax.f32 %v5358, 0.0
      %v5745 = vmax.f32 %v5360, 0.0
      %v5746 = vmax.f32 %v5362, 0.0
      %v5747 = vmax.f32 %v5364, 0.0
      %v5748 = vmax.f32 %v5368, 0.0
      %v5749 = vmax.f32 %v5370, 0.0
      %v5750 = vmax.f32 %v5372, 0.0
      %v5751 = vmax.f32 %v5374, 0.0
      %v5752 = vmax.f32 %v5378, 0.0
      %v5753 = vmax.f32 %v5380, 0.0
      %v5754 = vmax.f32 %v5382, 0.0
      %v5755 = vmax.f32 %v5384, 0.0
      %v5756 = vmax.f32 %v5388, 0.0
      %v5757 = vmax.f32 %v5390, 0.0
      %v5758 = vmax.f32 %v5392, 0.0
      %v5759 = vmax.f32 %v5394, 0.0
      %v5760 = vmax.f32 %v5398, 0.0
      %v5761 = vmax.f32 %v5400, 0.0
      %v5762 = vmax.f32 %v5402, 0.0
      %v5763 = vmax.f32 %v5404, 0.0
      %v5764 = vmax.f32 %v5408, 0.0
      %v5765 = vmax.f32 %v5410, 0.0
      %v5766 = vmax.f32 %v5412, 0.0
      %v5767 = vmax.f32 %v5414, 0.0
      %v5768 = vmax.f32 %v5418, 0.0
      %v5769 = vmax.f32 %v5420, 0.0
      %v5770 = vmax.f32 %v5422, 0.0
      %v5771 = vmax.f32 %v5424, 0.0
      %v5772 = vmax.f32 %v5428, 0.0
      %v5773 = vmax.f32 %v5430, 0.0
      %v5774 = vmax.f32 %v5432, 0.0
      %v5775 = vmax.f32 %v5434, 0.0
      %v5776 = vmax.f32 %v5438, 0.0
      %v5777 = vmax.f32 %v5440, 0.0
      %v5778 = vmax.f32 %v5442, 0.0
      %v5779 = vmax.f32 %v5444, 0.0
      %v5780 = vmax.f32 %v5448, 0.0
      %v5781 = vmax.f32 %v5450, 0.0
      %v5782 = vmax.f32 %v5452, 0.0
      %v5783 = vmax.f32 %v5454, 0.0
      %v5784 = vmax.f32 %v5458, 0.0
      %v5785 = vmax.f32 %v5460, 0.0
      %v5786 = vmax.f32 %v5462, 0.0
      %v5787 = vmax.f32 %v5464, 0.0
      %v5788 = vmax.f32 %v5468, 0.0
      %v5789 = vmax.f32 %v5470, 0.0
      %v5790 = vmax.f32 %v5472, 0.0
      %v5791 = vmax.f32 %v5474, 0.0
      %v5792 = vmax.f32 %v5478, 0.0
      %v5793 = vmax.f32 %v5480, 0.0
      %v5794 = vmax.f32 %v5482, 0.0
      %v5795 = vmax.f32 %v5484, 0.0
      %v5796 = vmax.f32 %v5488, 0.0
      %v5797 = vmax.f32 %v5490, 0.0
      %v5798 = vmax.f32 %v5492, 0.0
      %v5799 = vmax.f32 %v5494, 0.0
      %v5800 = vmax.f32 %v5498, 0.0
      %v5801 = vmax.f32 %v5500, 0.0
      %v5802 = vmax.f32 %v5502, 0.0
      %v5803 = vmax.f32 %v5504, 0.0
      %v5804 = vmax.f32 %v5508, 0.0
      %v5805 = vmax.f32 %v5510, 0.0
      %v5806 = vmax.f32 %v5512, 0.0
      %v5807 = vmax.f32 %v5514, 0.0
      %v5808 = vmax.f32 %v5518, 0.0
      %v5809 = vmax.f32 %v5520, 0.0
      %v5810 = vmax.f32 %v5522, 0.0
      %v5811 = vmax.f32 %v5524, 0.0
      %v5812 = vmax.f32 %v5528, 0.0
      %v5813 = vmax.f32 %v5530, 0.0
      %v5814 = vmax.f32 %v5532, 0.0
      %v5815 = vmax.f32 %v5534, 0.0
      %v5816 = vmax.f32 %v5538, 0.0
      %v5817 = vmax.f32 %v5540, 0.0
      %v5818 = vmax.f32 %v5542, 0.0
      %v5819 = vmax.f32 %v5544, 0.0
      %v5820 = vmax.f32 %v5548, 0.0
      %v5821 = vmax.f32 %v5550, 0.0
      %v5822 = vmax.f32 %v5552, 0.0
      %v5823 = vmax.f32 %v5554, 0.0
      %v5824 = vmax.f32 %v5558, 0.0
      %v5825 = vmax.f32 %v5560, 0.0
      %v5826 = vmax.f32 %v5562, 0.0
      %v5827 = vmax.f32 %v5564, 0.0
      %v5828 = vmax.f32 %v5568, 0.0
      %v5829 = vmax.f32 %v5570, 0.0
      %v5830 = vmax.f32 %v5572, 0.0
      %v5831 = vmax.f32 %v5574, 0.0
      %v5832 = vld [vmem:[%s9] sm:$0x3]
      %v5833 = vld [vmem:[#allocation2] sm:$0x1]
      %5835 = vset.pattern.permute.xlu0 0
      %5836 = vperm.xlu0 %5835, %v5833
      %v5837 = vpop.permute.xlu0 %5836
      %v5839 = vlaneseq
      %v5840 = vshrl.u32 %v5839, 7
      %v5841 = vsub.s32 0, %v5840
      %v5842 = vrot.slane %v5837, %v5841
      %v5844 = vlaneseq
      %v5845 = vshrl.u32 %v5844, 7
      %v5846 = vsub.s32 0, %v5845
      %v5847 = vrot.slane %v5832, %v5846
      %v5848 = vlaneseq
      %v5849 = vshrl.u32 %v5848, 7
      %v5850 = vsub.s32 1, %v5849
      %v5851 = vrot.slane %v5832, %v5850
      %5854 = vmatprep.subr.mxu0 %v5577
      %5855 = vmatpush1.xpose.msra.mxu0 %v5576
      %5856 = vmatprep.subr.mxu0 %v5579
      %5857 = vmatpush1.xpose.msra.mxu0 %v5578
      %5858 = vmatprep.subr.mxu0 %v5581
      %5859 = vmatpush1.xpose.msra.mxu0 %v5580
      %5860 = vmatprep.subr.mxu0 %v5583
      %5861 = vmatpush1.xpose.msra.mxu0 %v5582
      %5862 = vmatprep.subr.mxu0 %v5585
      %5863 = vmatpush1.xpose.msra.mxu0 %v5584
      %5864 = vmatprep.subr.mxu0 %v5587
      %5865 = vmatpush1.xpose.msra.mxu0 %v5586
      %5866 = vmatprep.subr.mxu0 %v5589
      %5867 = vmatpush1.xpose.msra.mxu0 %v5588
      %5868 = vmatprep.subr.mxu0 %v5591
      %5869 = vmatpush1.xpose.msra.mxu0 %v5590
      %5870 = vmatprep.subr.mxu0 %v5593
      %5871 = vmatpush1.xpose.msra.mxu0 %v5592
      %5872 = vmatprep.subr.mxu0 %v5595
      %5873 = vmatpush1.xpose.msra.mxu0 %v5594
      %5874 = vmatprep.subr.mxu0 %v5597
      %5875 = vmatpush1.xpose.msra.mxu0 %v5596
      %5876 = vmatprep.subr.mxu0 %v5599
      %5877 = vmatpush1.xpose.msra.mxu0 %v5598
      %5878 = vmatprep.subr.mxu0 %v5601
      %5879 = vmatpush1.xpose.msra.mxu0 %v5600
      %5880 = vmatprep.subr.mxu0 %v5603
      %5881 = vmatpush1.xpose.msra.mxu0 %v5602
      %5882 = vmatprep.subr.mxu0 %v5605
      %5883 = vmatpush1.xpose.msra.mxu0 %v5604
      %5884 = vmatprep.subr.mxu0 %v5607
      %5885 = vmatpush1.xpose.msra.mxu0 %v5606
      %5886 = vmatprep.subr.mxu0 %v5609
      %5887 = vmatpush1.xpose.msra.mxu0 %v5608
      %5888 = vmatprep.subr.mxu0 %v5611
      %5889 = vmatpush1.xpose.msra.mxu0 %v5610
      %5890 = vmatprep.subr.mxu0 %v5613
      %5891 = vmatpush1.xpose.msra.mxu0 %v5612
      %5892 = vmatprep.subr.mxu0 %v5615
      %5893 = vmatpush1.xpose.msra.mxu0 %v5614
      %5894 = vmatprep.subr.mxu0 %v5617
      %5895 = vmatpush1.xpose.msra.mxu0 %v5616
      %5896 = vmatprep.subr.mxu0 %v5619
      %5897 = vmatpush1.xpose.msra.mxu0 %v5618
      %5898 = vmatprep.subr.mxu0 %v5621
      %5899 = vmatpush1.xpose.msra.mxu0 %v5620
      %5900 = vmatprep.subr.mxu0 %v5623
      %5901 = vmatpush1.xpose.msra.mxu0 %v5622
      %5902 = vmatprep.subr.mxu0 %v5625
      %5903 = vmatpush1.xpose.msra.mxu0 %v5624
      %5904 = vmatprep.subr.mxu0 %v5627
      %5905 = vmatpush1.xpose.msra.mxu0 %v5626
      %5906 = vmatprep.subr.mxu0 %v5629
      %5907 = vmatpush1.xpose.msra.mxu0 %v5628
      %5908 = vmatprep.subr.mxu0 %v5631
      %5909 = vmatpush1.xpose.msra.mxu0 %v5630
      %5910 = vmatprep.subr.mxu0 %v5633
      %5911 = vmatpush1.xpose.msra.mxu0 %v5632
      %5912 = vmatprep.subr.mxu0 %v5635
      %5913 = vmatpush1.xpose.msra.mxu0 %v5634
      %5914 = vmatprep.subr.mxu0 %v5637
      %5915 = vmatpush1.xpose.msra.mxu0 %v5636
      %5916 = vmatprep.subr.mxu0 %v5639
      %5917 = vmatpush1.xpose.msra.mxu0 %v5638
      %5918 = vmatprep.mubr.f32.mxu0 %v5851
      %5919 = vmatmul.mubr.f32.gmra.mrb[0].mxu0 %v5847
      %v5920 = vpop.f32.mrb[0].mxu0
      %v5921 = vadd.f32 %v5842, %v5920
      %v5922 = vpop.f32.mrb[0].mxu0
      %v5923 = vadd.f32 %v5842, %v5922
      %5924 = vdwg.mxu0
      %5925 = vmatprep.subr.mxu0 %v5641
      %5926 = vmatpush1.xpose.msra.mxu0 %v5640
      %5927 = vmatprep.subr.mxu0 %v5643
      %5928 = vmatpush1.xpose.msra.mxu0 %v5642
      %5929 = vmatprep.subr.mxu0 %v5645
      %5930 = vmatpush1.xpose.msra.mxu0 %v5644
      %5931 = vmatprep.subr.mxu0 %v5647
      %5932 = vmatpush1.xpose.msra.mxu0 %v5646
      %5933 = vmatprep.subr.mxu0 %v5649
      %5934 = vmatpush1.xpose.msra.mxu0 %v5648
      %5935 = vmatprep.subr.mxu0 %v5651
      %5936 = vmatpush1.xpose.msra.mxu0 %v5650
      %5937 = vmatprep.subr.mxu0 %v5653
      %5938 = vmatpush1.xpose.msra.mxu0 %v5652
      %5939 = vmatprep.subr.mxu0 %v5655
      %5940 = vmatpush1.xpose.msra.mxu0 %v5654
      %5941 = vmatprep.subr.mxu0 %v5657
      %5942 = vmatpush1.xpose.msra.mxu0 %v5656
      %5943 = vmatprep.subr.mxu0 %v5659
      %5944 = vmatpush1.xpose.msra.mxu0 %v5658
      %5945 = vmatprep.subr.mxu0 %v5661
      %5946 = vmatpush1.xpose.msra.mxu0 %v5660
      %5947 = vmatprep.subr.mxu0 %v5663
      %5948 = vmatpush1.xpose.msra.mxu0 %v5662
      %5949 = vmatprep.subr.mxu0 %v5665
      %5950 = vmatpush1.xpose.msra.mxu0 %v5664
      %5951 = vmatprep.subr.mxu0 %v5667
      %5952 = vmatpush1.xpose.msra.mxu0 %v5666
      %5953 = vmatprep.subr.mxu0 %v5669
      %5954 = vmatpush1.xpose.msra.mxu0 %v5668
      %5955 = vmatprep.subr.mxu0 %v5671
      %5956 = vmatpush1.xpose.msra.mxu0 %v5670
      %5957 = vmatprep.subr.mxu0 %v5673
      %5958 = vmatpush1.xpose.msra.mxu0 %v5672
      %5959 = vmatprep.subr.mxu0 %v5675
      %5960 = vmatpush1.xpose.msra.mxu0 %v5674
      %5961 = vmatprep.subr.mxu0 %v5677
      %5962 = vmatpush1.xpose.msra.mxu0 %v5676
      %5963 = vmatprep.subr.mxu0 %v5679
      %5964 = vmatpush1.xpose.msra.mxu0 %v5678
      %5965 = vmatprep.subr.mxu0 %v5681
      %5966 = vmatpush1.xpose.msra.mxu0 %v5680
      %5967 = vmatprep.subr.mxu0 %v5683
      %5968 = vmatpush1.xpose.msra.mxu0 %v5682
      %5969 = vmatprep.subr.mxu0 %v5685
      %5970 = vmatpush1.xpose.msra.mxu0 %v5684
      %5971 = vmatprep.subr.mxu0 %v5687
      %5972 = vmatpush1.xpose.msra.mxu0 %v5686
      %5973 = vmatprep.subr.mxu0 %v5689
      %5974 = vmatpush1.xpose.msra.mxu0 %v5688
      %5975 = vmatprep.subr.mxu0 %v5691
      %5976 = vmatpush1.xpose.msra.mxu0 %v5690
      %5977 = vmatprep.subr.mxu0 %v5693
      %5978 = vmatpush1.xpose.msra.mxu0 %v5692
      %5979 = vmatprep.subr.mxu0 %v5695
      %5980 = vmatpush1.xpose.msra.mxu0 %v5694
      %5981 = vmatprep.subr.mxu0 %v5697
      %5982 = vmatpush1.xpose.msra.mxu0 %v5696
      %5983 = vmatprep.subr.mxu0 %v5699
      %5984 = vmatpush1.xpose.msra.mxu0 %v5698
      %5985 = vmatprep.subr.mxu0 %v5701
      %5986 = vmatpush1.xpose.msra.mxu0 %v5700
      %5987 = vmatprep.subr.mxu0 %v5703
      %5988 = vmatpush1.xpose.msra.mxu0 %v5702
      %5989 = vmatprep.mubr.f32.mxu0 %v5851
      %5990 = vmatmul.mubr.f32.gmra.mrb[0].mxu0 %v5847
      %v5991 = vpop.f32.mrb[0].mxu0
      %v5992 = vadd.f32 %v5842, %v5991
      %v5993 = vpop.f32.mrb[0].mxu0
      %v5994 = vadd.f32 %v5842, %v5993
      %5995 = vdwg.mxu0
      %5996 = vmatprep.subr.mxu0 %v5705
      %5997 = vmatpush1.xpose.msra.mxu0 %v5704
      %5998 = vmatprep.subr.mxu0 %v5707
      %5999 = vmatpush1.xpose.msra.mxu0 %v5706
      %6000 = vmatprep.subr.mxu0 %v5709
      %6001 = vmatpush1.xpose.msra.mxu0 %v5708
      %6002 = vmatprep.subr.mxu0 %v5711
      %6003 = vmatpush1.xpose.msra.mxu0 %v5710
      %6004 = vmatprep.subr.mxu0 %v5713
      %6005 = vmatpush1.xpose.msra.mxu0 %v5712
      %6006 = vmatprep.subr.mxu0 %v5715
      %6007 = vmatpush1.xpose.msra.mxu0 %v5714
      %6008 = vmatprep.subr.mxu0 %v5717
      %6009 = vmatpush1.xpose.msra.mxu0 %v5716
      %6010 = vmatprep.subr.mxu0 %v5719
      %6011 = vmatpush1.xpose.msra.mxu0 %v5718
      %6012 = vmatprep.subr.mxu0 %v5721
      %6013 = vmatpush1.xpose.msra.mxu0 %v5720
      %6014 = vmatprep.subr.mxu0 %v5723
      %6015 = vmatpush1.xpose.msra.mxu0 %v5722
      %6016 = vmatprep.subr.mxu0 %v5725
      %6017 = vmatpush1.xpose.msra.mxu0 %v5724
      %6018 = vmatprep.subr.mxu0 %v5727
      %6019 = vmatpush1.xpose.msra.mxu0 %v5726
      %6020 = vmatprep.subr.mxu0 %v5729
      %6021 = vmatpush1.xpose.msra.mxu0 %v5728
      %6022 = vmatprep.subr.mxu0 %v5731
      %6023 = vmatpush1.xpose.msra.mxu0 %v5730
      %6024 = vmatprep.subr.mxu0 %v5733
      %6025 = vmatpush1.xpose.msra.mxu0 %v5732
      %6026 = vmatprep.subr.mxu0 %v5735
      %6027 = vmatpush1.xpose.msra.mxu0 %v5734
      %6028 = vmatprep.subr.mxu0 %v5737
      %6029 = vmatpush1.xpose.msra.mxu0 %v5736
      %6030 = vmatprep.subr.mxu0 %v5739
      %6031 = vmatpush1.xpose.msra.mxu0 %v5738
      %6032 = vmatprep.subr.mxu0 %v5741
      %6033 = vmatpush1.xpose.msra.mxu0 %v5740
      %6034 = vmatprep.subr.mxu0 %v5743
      %6035 = vmatpush1.xpose.msra.mxu0 %v5742
      %6036 = vmatprep.subr.mxu0 %v5745
      %6037 = vmatpush1.xpose.msra.mxu0 %v5744
      %6038 = vmatprep.subr.mxu0 %v5747
      %6039 = vmatpush1.xpose.msra.mxu0 %v5746
      %6040 = vmatprep.subr.mxu0 %v5749
      %6041 = vmatpush1.xpose.msra.mxu0 %v5748
      %6042 = vmatprep.subr.mxu0 %v5751
      %6043 = vmatpush1.xpose.msra.mxu0 %v5750
      %6044 = vmatprep.subr.mxu0 %v5753
      %6045 = vmatpush1.xpose.msra.mxu0 %v5752
      %6046 = vmatprep.subr.mxu0 %v5755
      %6047 = vmatpush1.xpose.msra.mxu0 %v5754
      %6048 = vmatprep.subr.mxu0 %v5757
      %6049 = vmatpush1.xpose.msra.mxu0 %v5756
      %6050 = vmatprep.subr.mxu0 %v5759
      %6051 = vmatpush1.xpose.msra.mxu0 %v5758
      %6052 = vmatprep.subr.mxu0 %v5761
      %6053 = vmatpush1.xpose.msra.mxu0 %v5760
      %6054 = vmatprep.subr.mxu0 %v5763
      %6055 = vmatpush1.xpose.msra.mxu0 %v5762
      %6056 = vmatprep.subr.mxu0 %v5765
      %6057 = vmatpush1.xpose.msra.mxu0 %v5764
      %6058 = vmatprep.subr.mxu0 %v5767
      %6059 = vmatpush1.xpose.msra.mxu0 %v5766
      %6060 = vmatprep.mubr.f32.mxu0 %v5851
      %6061 = vmatmul.mubr.f32.gmra.mrb[0].mxu0 %v5847
      %v6062 = vpop.f32.mrb[0].mxu0
      %v6063 = vadd.f32 %v5842, %v6062
      %v6064 = vpop.f32.mrb[0].mxu0
      %v6065 = vadd.f32 %v5842, %v6064
      %6066 = vdwg.mxu0
      %6067 = vmatprep.subr.mxu0 %v5769
      %6068 = vmatpush1.xpose.msra.mxu0 %v5768
      %6069 = vmatprep.subr.mxu0 %v5771
      %6070 = vmatpush1.xpose.msra.mxu0 %v5770
      %6071 = vmatprep.subr.mxu0 %v5773
      %6072 = vmatpush1.xpose.msra.mxu0 %v5772
      %6073 = vmatprep.subr.mxu0 %v5775
      %6074 = vmatpush1.xpose.msra.mxu0 %v5774
      %6075 = vmatprep.subr.mxu0 %v5777
      %6076 = vmatpush1.xpose.msra.mxu0 %v5776
      %6077 = vmatprep.subr.mxu0 %v5779
      %6078 = vmatpush1.xpose.msra.mxu0 %v5778
      %6079 = vmatprep.subr.mxu0 %v5781
      %6080 = vmatpush1.xpose.msra.mxu0 %v5780
      %6081 = vmatprep.subr.mxu0 %v5783
      %6082 = vmatpush1.xpose.msra.mxu0 %v5782
      %6083 = vmatprep.subr.mxu0 %v5785
      %6084 = vmatpush1.xpose.msra.mxu0 %v5784
      %6085 = vmatprep.subr.mxu0 %v5787
      %6086 = vmatpush1.xpose.msra.mxu0 %v5786
      %6087 = vmatprep.subr.mxu0 %v5789
      %6088 = vmatpush1.xpose.msra.mxu0 %v5788
      %6089 = vmatprep.subr.mxu0 %v5791
      %6090 = vmatpush1.xpose.msra.mxu0 %v5790
      %6091 = vmatprep.subr.mxu0 %v5793
      %6092 = vmatpush1.xpose.msra.mxu0 %v5792
      %6093 = vmatprep.subr.mxu0 %v5795
      %6094 = vmatpush1.xpose.msra.mxu0 %v5794
      %6095 = vmatprep.subr.mxu0 %v5797
      %6096 = vmatpush1.xpose.msra.mxu0 %v5796
      %6097 = vmatprep.subr.mxu0 %v5799
      %6098 = vmatpush1.xpose.msra.mxu0 %v5798
      %6099 = vmatprep.subr.mxu0 %v5801
      %6100 = vmatpush1.xpose.msra.mxu0 %v5800
      %6101 = vmatprep.subr.mxu0 %v5803
      %6102 = vmatpush1.xpose.msra.mxu0 %v5802
      %6103 = vmatprep.subr.mxu0 %v5805
      %6104 = vmatpush1.xpose.msra.mxu0 %v5804
      %6105 = vmatprep.subr.mxu0 %v5807
      %6106 = vmatpush1.xpose.msra.mxu0 %v5806
      %6107 = vmatprep.subr.mxu0 %v5809
      %6108 = vmatpush1.xpose.msra.mxu0 %v5808
      %6109 = vmatprep.subr.mxu0 %v5811
      %6110 = vmatpush1.xpose.msra.mxu0 %v5810
      %6111 = vmatprep.subr.mxu0 %v5813
      %6112 = vmatpush1.xpose.msra.mxu0 %v5812
      %6113 = vmatprep.subr.mxu0 %v5815
      %6114 = vmatpush1.xpose.msra.mxu0 %v5814
      %6115 = vmatprep.subr.mxu0 %v5817
      %6116 = vmatpush1.xpose.msra.mxu0 %v5816
      %6117 = vmatprep.subr.mxu0 %v5819
      %6118 = vmatpush1.xpose.msra.mxu0 %v5818
      %6119 = vmatprep.subr.mxu0 %v5821
      %6120 = vmatpush1.xpose.msra.mxu0 %v5820
      %6121 = vmatprep.subr.mxu0 %v5823
      %6122 = vmatpush1.xpose.msra.mxu0 %v5822
      %6123 = vmatprep.subr.mxu0 %v5825
      %6124 = vmatpush1.xpose.msra.mxu0 %v5824
      %6125 = vmatprep.subr.mxu0 %v5827
      %6126 = vmatpush1.xpose.msra.mxu0 %v5826
      %6127 = vmatprep.subr.mxu0 %v5829
      %6128 = vmatpush1.xpose.msra.mxu0 %v5828
      %6129 = vmatprep.subr.mxu0 %v5831
      %6130 = vmatpush1.xpose.msra.mxu0 %v5830
      %6131 = vmatprep.mubr.f32.mxu0 %v5851
      %6132 = vmatmul.mubr.f32.gmra.mrb[0].mxu0 %v5847
      %v6133 = vpop.f32.mrb[0].mxu0
      %v6134 = vadd.f32 %v5842, %v6133
      %v6135 = vpop.f32.mrb[0].mxu0
      %v6136 = vadd.f32 %v5842, %v6135
      %6137 = vdwg.mxu0
      %v6138 = vsub.f32 0.0, %v5921
      %v6139 = vsub.f32 0.0, %v5923
      %v6140 = vsub.f32 0.0, %v5992
      %v6141 = vsub.f32 0.0, %v5994
      %v6142 = vsub.f32 0.0, %v6063
      %v6143 = vsub.f32 0.0, %v6065
      %v6144 = vsub.f32 0.0, %v6134
      %v6145 = vsub.f32 0.0, %v6136
      %v6146 = vmul.f32 %v6138, 1.442695
      %v6147 = vpow.pop %v6146
      %v6148 = vmul.f32 %v6139, 1.442695
      %v6149 = vpow.pop %v6148
      %v6150 = vmul.f32 %v6140, 1.442695
      %v6151 = vpow.pop %v6150
      %v6152 = vmul.f32 %v6141, 1.442695
      %v6153 = vpow.pop %v6152
      %v6154 = vmul.f32 %v6142, 1.442695
      %v6155 = vpow.pop %v6154
      %v6156 = vmul.f32 %v6143, 1.442695
      %v6157 = vpow.pop %v6156
      %v6158 = vmul.f32 %v6144, 1.442695
      %v6159 = vpow.pop %v6158
      %v6160 = vmul.f32 %v6145, 1.442695
      %v6161 = vpow.pop %v6160
      %v6162 = vadd.f32 %v6147, 1.0
      %v6163 = vadd.f32 %v6149, 1.0
      %v6164 = vadd.f32 %v6151, 1.0
      %v6165 = vadd.f32 %v6153, 1.0
      %v6166 = vadd.f32 %v6155, 1.0
      %v6167 = vadd.f32 %v6157, 1.0
      %v6168 = vadd.f32 %v6159, 1.0
      %v6169 = vadd.f32 %v6161, 1.0
      %v6170 = vrcp.pop %v6162
      %v6171 = vrcp.pop %v6163
      %v6172 = vrcp.pop %v6164
      %v6173 = vrcp.pop %v6165
      %v6174 = vrcp.pop %v6166
      %v6175 = vrcp.pop %v6167
      %v6176 = vrcp.pop %v6168
      %v6177 = vrcp.pop %v6169
      %v6186 = vcombine.low %v6170, %v6171
      %v6187 = vcombine.low %v6172, %v6173
      %v6188 = vcombine.low %v6174, %v6175
      %v6189 = vcombine.low %v6176, %v6177
      %v6191 = vunpack.c.l.s4 1966171168
      %v6192 = vunpack.c.0.s8 %v6191
      %v6193 = vlaneseq
      %v6194 = vshrl.u32 %v6193, 7
      %v6195 = vsub.s32 %v6192, %v6194
      %v6196 = vrot.slane %v6186, %v6195
      %v6198 = vunpack.c.l.s4 1966171168
      %v6199 = vunpack.c.0.s8 %v6198
      %v6200 = vlaneseq
      %v6201 = vshrl.u32 %v6200, 7
      %v6202 = vsub.s32 %v6199, %v6201
      %v6203 = vrot.slane %v6187, %v6202
      %v6205 = vunpack.c.l.s4 1966171168
      %v6206 = vunpack.c.0.s8 %v6205
      %v6207 = vlaneseq
      %v6208 = vshrl.u32 %v6207, 7
      %v6209 = vsub.s32 %v6206, %v6208
      %v6210 = vrot.slane %v6188, %v6209
      %v6212 = vunpack.c.l.s4 1966171168
      %v6213 = vunpack.c.0.s8 %v6212
      %v6214 = vlaneseq
      %v6215 = vshrl.u32 %v6214, 7
      %v6216 = vsub.s32 %v6213, %v6215
      %v6217 = vrot.slane %v6189, %v6216
      %v6218 = vcombine.low %v6196, %v6203
      %v6219 = vcombine.low %v6210, %v6217
      %v6221 = vunpack.c.l.s4 1966171168
      %v6222 = vunpack.c.0.s8 %v6221
      %v6223 = vlaneseq
      %v6224 = vshrl.u32 %v6223, 7
      %v6225 = vsub.s32 %v6222, %v6224
      %v6226 = vrot.slane %v6218, %v6225
      %v6228 = vunpack.c.l.s4 1966171168
      %v6229 = vunpack.c.0.s8 %v6228
      %v6230 = vlaneseq
      %v6231 = vshrl.u32 %v6230, 7
      %v6232 = vsub.s32 %v6229, %v6231
      %v6233 = vrot.slane %v6219, %v6232
      %v6234 = vcombine.low %v6226, %v6233
      %6236 = vst [vmem:[%s391] sm:$0xff] %v6234
      %s6237 = smul.u32 8, %s24
      %p6238 = scmp.lt.s32.totalorder %s6237, 15
      %s6239 = scalar_select %p6238, %s6237, 15
      %s6240 = scalar_lea.vmem %s11, %s6239
      // Predicated region
      $region65: #{implicit_mask_forward.1} parent=63 // pred_check
        %p6241 = pneg %p278
      $region66: #{implicit_mask_forward.1} parent=63 // pred_check_branch
        %6243 = sbr.rel (%p6241) target = $region68
      $region67: #{implicit_mask_forward.1} parent=63 // pred_region
        %s6244 = smul.u32 8, %s24
      $region68: #{implicit_mask_forward.1} parent=63 // pred_fallthru
        _
    $region64: #{implicit_mask_forward.1} parent=5 // pred_fallthru
      _
    %p6245 = scmp.le.s32.totalorder 2, %s19
    // Predicated region
    $region69: #{implicit_mask_forward.1} parent=5 // pred_check
      %p6246 = pneg %p6245
    $region70: #{implicit_mask_forward.1} parent=5 // pred_check_branch
      %6248 = sbr.rel (%p6246) target = $region72
    $region71: #{implicit_mask_forward.1} parent=5 // pred_region
      %s6249 = ssub.s32 %s19, 2
      // Predicated region
      $region73: #{implicit_mask_forward.1} parent=71 // pred_check
        %p6250 = pneg %p284
      $region74: #{implicit_mask_forward.1} parent=71 // pred_check_branch
        %6252 = sbr.rel (%p6250) target = $region76
      $region75: #{implicit_mask_forward.1} parent=71 // pred_region
        %s6253 = smul.u32 8, %s25
        %p6254 = scmp.lt.s32.totalorder %s6253, 15
        %s6255 = scalar_select %p6254, %s6253, 15
        %s6256 = scalar_lea.vmem %s11, %s6255
      $region76: #{implicit_mask_forward.1} parent=71 // pred_fallthru
        _
    $region72: #{implicit_mask_forward.1} parent=5 // pred_fallthru
      _
  $region6: #{implicit_mask_forward.1} parent=0 // loop_footer
    %s23 = sadd.s32 1, %s19
  $region7: #{implicit_mask_forward.1} parent=0 // loop_footer_branch
    %18 = sbr.rel target = $region3
  $region8: #{implicit_mask_forward.1} parent=0 // loop_exit
    _

</llo_original>
